<compile_context>
chip_gen: v5e
topology: v5e:2x2
jax: 0.10.0
libtpu: 0.0.40
codegen_flags: <defaults>
</compile_context>

<pallas_src>
import jax
import jax.numpy as jnp
import numpy as np
from jax.experimental import pallas as pl
from jax.experimental.pallas import tpu as pltpu

_BN_EPS = 1e-5


# ------------------------------ pallas plumbing ------------------------------

def _vspec():
    return pl.BlockSpec(memory_space=pltpu.MemorySpace.VMEM)


def _pcall(kernel, out_shapes, *arrays):
    # Whole-array VMEM blocks: activations are tiny (< 100 KiB), so no grid.
    # TODO(synk): gridded variant for v7x (64 MiB VMEM, 2 TCs): tile M with a
    # multiple-of-128 "parallel" axis, restructure BN into accumulate/finalize
    # partial sums, and set CompilerParams(vmem_limit_bytes=...) per tile.
    return pl.pallas_call(
        kernel,
        out_shape=tuple(jax.ShapeDtypeStruct(s, jnp.float32) for s in out_shapes),
        in_specs=[_vspec() for _ in arrays],
        out_specs=tuple(_vspec() for _ in out_shapes),
    )(*arrays)


def _bn_relu(y, gamma, beta):
    # One-pass batch-norm (training-mode batch stats, biased variance) + ReLU.
    # y: (C, M); gamma/beta: (C, 1); stats per channel over the lane axis.
    # NOTE: assumes the full (unpadded) M axis is present in this block.
    inv_m = 1.0 / y.shape[1]
    s1 = jnp.sum(y, axis=1, keepdims=True)
    s2 = jnp.sum(y * y, axis=1, keepdims=True)
    mean = s1 * inv_m
    var = jnp.maximum(s2 * inv_m - mean * mean, 0.0)
    y_hat = (y - mean) * jax.lax.rsqrt(var + _BN_EPS)
    return jnp.maximum(y_hat * gamma + beta, 0.0)


# --------------------------------- kernels -----------------------------------

def _ffc_entry_kernel(x_ref, w_ref, g_ref, b_ref, oxl_ref, l2g_ref, x1_ref):
    # x: (C_in, M) = [x_l ; x_g] stacked on channels.
    # w: (out_cl + out_cg + c_half, C_in) block weight (prebuilt, gates folded):
    #   rows [0 : out_cl)                  -> [w_l2l | 3*w_g2l]   -> out_xl
    #   rows [out_cl : out_cl+out_cg)      -> [1*w_l2g | 0]       -> l2g term
    #   rows [out_cl+out_cg : ]            -> [0 | w_conv1]       -> BN+ReLU -> x1
    y = jnp.dot(w_ref[...], x_ref[...], preferred_element_type=jnp.float32)
    cl = oxl_ref.shape[0]
    cg = l2g_ref.shape[0]
    oxl_ref[...] = y[:cl]
    l2g_ref[...] = y[cl:cl + cg]
    x1_ref[...] = _bn_relu(y[cl + cg:], g_ref[...], b_ref[...])


def _fu2_conv_bn_relu_kernel(xr_fu_ref, xi_fu_ref, xr_lfu_ref, xi_lfu_ref,
                             wr_fu_ref, wi_fu_ref, g_fu_ref, b_fu_ref,
                             wr_lfu_ref, wi_lfu_ref, g_lfu_ref, b_lfu_ref,
                             o_fu_ref, o_lfu_ref):
    # Both FourierUnit convs (FU over x1's spectrum, LFU over the split
    # spectrum) fused into a single launch.  Inputs are the FFT real/imag
    # parts in blocked channel order; for each branch:
    #   y (2c, M) = Wr @ real + Wi @ imag, then BN + ReLU.
    y_fu = (jnp.dot(wr_fu_ref[...], xr_fu_ref[...],
                    preferred_element_type=jnp.float32)
            + jnp.dot(wi_fu_ref[...], xi_fu_ref[...],
                      preferred_element_type=jnp.float32))
    o_fu_ref[...] = _bn_relu(y_fu, g_fu_ref[...], b_fu_ref[...])

    y_lfu = (jnp.dot(wr_lfu_ref[...], xr_lfu_ref[...],
                     preferred_element_type=jnp.float32)
             + jnp.dot(wi_lfu_ref[...], xi_lfu_ref[...],
                       preferred_element_type=jnp.float32))
    o_lfu_ref[...] = _bn_relu(y_lfu, g_lfu_ref[...], b_lfu_ref[...])


def _conv2_add_kernel(x1_ref, fu_ref, lfu_ref, w_ref, add_ref,
                      o_main_ref, o_lfu_ref):
    # SpectralTransform conv2 with the FFC global-path combine folded in:
    #   o_main = W_conv2 @ (x1 + fu) + l2g_term           (full M lanes)
    #   o_lfu  = W_conv2 @ lfu_untiled                    (M/4 lanes)
    # Since conv2 is a 1x1 conv, conv2(tile(lfu)) == tile(conv2(lfu)); the
    # spatial replication is applied outside, fused with the output transpose.
    s = x1_ref[...] + fu_ref[...]
    o_main_ref[...] = (jnp.dot(w_ref[...], s, preferred_element_type=jnp.float32)
                       + add_ref[...])
    o_lfu_ref[...] = jnp.dot(w_ref[...], lfu_ref[...],
                             preferred_element_type=jnp.float32)


# --------------------------- parameter preparation ----------------------------

def prepare_params(params):
    """One-time (outside the traced forward) weight/param preprocessing."""
    p = params
    st = p['st']
    out_cl, in_cl = p['w_l2l'].shape
    out_cg = p['w_l2g'].shape[0]
    in_cg = p['w_g2l'].shape[1]
    c_half = st['w_conv1'].shape[0]
    g2l_gate, l2g_gate = 3.0, 1.0

    # Fused entry block-weight: [l2l | 3*g2l ; l2g | 0 ; 0 | conv1]
    w_entry = jnp.concatenate([
        jnp.concatenate([p['w_l2l'], g2l_gate * p['w_g2l']], axis=1),
        jnp.concatenate([l2g_gate * p['w_l2g'],
                         jnp.zeros((out_cg, in_cg), jnp.float32)], axis=1),
        jnp.concatenate([jnp.zeros((c_half, in_cl), jnp.float32),
                         st['w_conv1']], axis=1),
    ], axis=0)

    def blocked(w, g, b):
        # De-interleave PyTorch's [r0,i0,r1,i1,...] channel order into blocked
        # [real..., imag...] order (rows and cols) for the FourierUnit conv.
        c2 = w.shape[0]
        c = c2 // 2
        perm = np.concatenate([np.arange(0, c2, 2), np.arange(1, c2, 2)])
        wp = w[perm][:, perm]
        return (wp[:, :c], wp[:, c:],
                g[perm].reshape(c2, 1), b[perm].reshape(c2, 1))

    wr_fu, wi_fu, g_fu, b_fu = blocked(st['w_fu'], st['bn_fu_g'], st['bn_fu_b'])
    wr_lfu, wi_lfu, g_lfu, b_lfu = blocked(st['w_lfu'], st['bn_lfu_g'],
                                           st['bn_lfu_b'])

    return {
        'w_entry': w_entry,
        'bn1_g': st['bn1_g'].reshape(c_half, 1),
        'bn1_b': st['bn1_b'].reshape(c_half, 1),
        'wr_fu': wr_fu, 'wi_fu': wi_fu, 'g_fu': g_fu, 'b_fu': b_fu,
        'wr_lfu': wr_lfu, 'wi_lfu': wi_lfu, 'g_lfu': g_lfu, 'b_lfu': b_lfu,
        'w_conv2': st['w_conv2'],
    }


# ------------------------------ forward pass ----------------------------------

def ffc_forward(x_l, x_g, pp):
    B, in_cl, H, W = x_l.shape
    in_cg = x_g.shape[1]
    M = B * H * W
    out_cg, c_half = pp['w_conv2'].shape
    out_cl = pp['w_entry'].shape[0] - out_cg - c_half

    # ---- single layout conversion at the module boundary: NCHW -> (C, M) ----
    # TODO(synk): at production resolution, subsume this transpose into a
    # batch-gridded BlockSpec on the entry kernel (needs BN accumulate/finalize).
    xc = jnp.transpose(jnp.concatenate([x_l, x_g], axis=1), (1, 0, 2, 3))
    x2d = xc.reshape(in_cl + in_cg, M)

    # ---- launch 1: fused entry matmul (l2l + 3*g2l, l2g term, conv1+BN+ReLU) --
    out_xl2d, l2g2d, x1_2d = _pcall(
        _ffc_entry_kernel,
        ((out_cl, M), (out_cg, M), (c_half, M)),
        x2d, pp['w_entry'], pp['bn1_g'], pp['bn1_b'])

    # ---- SpectralTransform (global path); stride==1 -> downsample=Identity ---
    x1 = x1_2d.reshape(c_half, B, H, W)

    # FU branch spectrum.
    # TODO(synk): rfft2/irfft2 have no Pallas TPU equivalent; they run in XLA.
    Wf = W // 2 + 1
    mf_fu = B * H * Wf
    ff_fu = jnp.fft.rfft2(x1, axes=(-2, -1), norm='ortho')     # (c,B,H,Wf) complex
    xr_fu = jnp.real(ff_fu).reshape(c_half, mf_fu)
    xi_fu = jnp.imag(ff_fu).reshape(c_half, mf_fu)

    # LFU branch: quarter channels split into 2x2 spatial blocks stacked on C.
    H2, W2 = H // 2, W // 2
    xs = x1[:c_half // 4]
    xs = jnp.concatenate(jnp.split(xs, 2, axis=2), axis=0)
    xs = jnp.concatenate(jnp.split(xs, 2, axis=3), axis=0)      # (c_half,B,H2,W2)
    Wf2 = W2 // 2 + 1
    mf_lfu = B * H2 * Wf2
    ff_lfu = jnp.fft.rfft2(xs, axes=(-2, -1), norm='ortho')
    xr_lfu = jnp.real(ff_lfu).reshape(c_half, mf_lfu)
    xi_lfu = jnp.imag(ff_lfu).reshape(c_half, mf_lfu)

    # ---- launch 2: both FourierUnit convs (+BN+ReLU) in one pallas_call ------
    y_fu, y_lfu = _pcall(
        _fu2_conv_bn_relu_kernel,
        ((2 * c_half, mf_fu), (2 * c_half, mf_lfu)),
        xr_fu, xi_fu, xr_lfu, xi_lfu,
        pp['wr_fu'], pp['wi_fu'], pp['g_fu'], pp['b_fu'],
        pp['wr_lfu'], pp['wi_lfu'], pp['g_lfu'], pp['b_lfu'])

    fu = jnp.fft.irfft2(
        jax.lax.complex(y_fu[:c_half].reshape(c_half, B, H, Wf),
                        y_fu[c_half:].reshape(c_half, B, H, Wf)),
        s=(H, W), axes=(-2, -1), norm='ortho')                   # (c,B,H,W)
    lfu = jnp.fft.irfft2(
        jax.lax.complex(y_lfu[:c_half].reshape(c_half, B, H2, Wf2),
                        y_lfu[c_half:].reshape(c_half, B, H2, Wf2)),
        s=(H2, W2), axes=(-2, -1), norm='ortho')                 # (c,B,H2,W2)

    # ---- launch 3: conv2 (+ folded l2g add) + conv2 of the untiled LFU -------
    m_lfu = B * H2 * W2
    xg_main2d, xg_lfu2d = _pcall(
        _conv2_add_kernel, ((out_cg, M), (out_cg, m_lfu)),
        x1_2d, fu.reshape(c_half, M), lfu.reshape(c_half, m_lfu),
        pp['w_conv2'], l2g2d)

    # ---- output assembly: LFU 2x2 spatial replication fused with the single
    # (C,M) -> NCHW conversion back at the module boundary --------------------
    out_xl = jnp.transpose(out_xl2d.reshape(out_cl, B, H, W), (1, 0, 2, 3))
    out_xg4 = (xg_main2d.reshape(out_cg, B, H, W)
               + jnp.tile(xg_lfu2d.reshape(out_cg, B, H2, W2), (1, 1, 2, 2)))
    out_xg = jnp.transpose(out_xg4, (1, 0, 2, 3))
    return out_xl, out_xg


# --------------------------- pure-JAX reference ------------------------------
# Mirrors the PyTorch module exactly (NCHW, interleaved FourierUnit channels,
# training-mode BatchNorm).  Weights stored as (C_out, C_in) (1x1 conv).

def _ref_conv(x, w):
    return jnp.einsum('oc,nchw->nohw', w, x,
                      precision=jax.lax.Precision.HIGHEST)


def _ref_bn_relu(y, g, b):
    mean = jnp.mean(y, axis=(0, 2, 3), keepdims=True)
    var = jnp.mean(jnp.square(y - mean), axis=(0, 2, 3), keepdims=True)
    yh = (y - mean) * jax.lax.rsqrt(var + _BN_EPS)
    return jnp.maximum(yh * g.reshape(1, -1, 1, 1) + b.reshape(1, -1, 1, 1), 0.0)


def _ref_fourier_unit(x, w, g, b):
    bsz, c, h, wdt = x.shape
    wf = wdt // 2 + 1
    ff = jnp.fft.rfft2(x, axes=(-2, -1), norm='ortho')
    ff = jnp.stack((jnp.real(ff), jnp.imag(ff)), axis=-1)          # (b,c,h,wf,2)
    ff = jnp.transpose(ff, (0, 1, 4, 2, 3)).reshape(bsz, 2 * c, h, wf)
    y = _ref_bn_relu(_ref_conv(ff, w), g, b)
    y = jnp.transpose(y.reshape(bsz, c, 2, h, wf), (0, 1, 3, 4, 2))
    return jnp.fft.irfft2(jax.lax.complex(y[..., 0], y[..., 1]),
                          s=(h, wdt), axes=(-2, -1), norm='ortho')


def _ref_spectral(x, p):
    x1 = _ref_bn_relu(_ref_conv(x, p['w_conv1']), p['bn1_g'], p['bn1_b'])
    fu_out = _ref_fourier_unit(x1, p['w_fu'], p['bn_fu_g'], p['bn_fu_b'])
    n, c, h, w = x1.shape
    xs = x1[:, :c // 4]
    xs = jnp.concatenate(jnp.split(xs, 2, axis=-2), axis=1)
    xs = jnp.concatenate(jnp.split(xs, 2, axis=-1), axis=1)
    xs = _ref_fourier_unit(xs, p['w_lfu'], p['bn_lfu_g'], p['bn_lfu_b'])
    xs = jnp.tile(xs, (1, 1, 2, 2))
    return _ref_conv(x1 + fu_out + xs, p['w_conv2'])


def _ref_ffc(x_l, x_g, params):
    out_xl = _ref_conv(x_l, params['w_l2l']) + 3.0 * _ref_conv(x_g, params['w_g2l'])
    out_xg = 1.0 * _ref_conv(x_l, params['w_l2g']) + _ref_spectral(x_g, params['st'])
    return out_xl, out_xg


# ------------------------------------ main ------------------------------------

if __name__ == "__main__":
    B, H, W = 2, 16, 16
    in_channels, out_channels = 16, 16
    ratio_gin = ratio_gout = 0.5
    in_cg = int(in_channels * ratio_gin)
    in_cl = in_channels - in_cg
    out_cg = int(out_channels * ratio_gout)
    out_cl = out_channels - out_cg
    c_half = out_cg // 2  # SpectralTransform hidden channels

    key = jax.random.PRNGKey(0)
    ks = jax.random.split(key, 10)

    def mk_w(k, cout, cin):
        # 1x1 conv weights stored as (C_out, C_in)
        return jax.random.normal(k, (cout, cin), jnp.float32) / jnp.sqrt(float(cin))

    params = {
        'w_l2l': mk_w(ks[0], out_cl, in_cl),
        'w_l2g': mk_w(ks[1], out_cg, in_cl),
        'w_g2l': mk_w(ks[2], out_cl, in_cg),
        'st': {
            'w_conv1': mk_w(ks[3], c_half, in_cg),
            'bn1_g': jnp.ones((c_half,), jnp.float32),
            'bn1_b': jnp.zeros((c_half,), jnp.float32),
            'w_fu': mk_w(ks[4], 2 * c_half, 2 * c_half),
            'bn_fu_g': jnp.ones((2 * c_half,), jnp.float32),
            'bn_fu_b': jnp.zeros((2 * c_half,), jnp.float32),
            'w_lfu': mk_w(ks[5], 2 * c_half, 2 * c_half),
            'bn_lfu_g': jnp.ones((2 * c_half,), jnp.float32),
            'bn_lfu_b': jnp.zeros((2 * c_half,), jnp.float32),
            'w_conv2': mk_w(ks[6], out_cg, c_half),
        },
    }

    x_l = jax.random.normal(ks[7], (B, in_cl, H, W), jnp.float32)
    x_g = jax.random.normal(ks[8], (B, in_cg, H, W), jnp.float32)

    # One-time weight preprocessing (outside the traced/jitted forward).
    pp = prepare_params(params)
    jax.block_until_ready(pp)

    out_xl, out_xg = jax.jit(ffc_forward)(x_l, x_g, pp)
    jax.block_until_ready((out_xl, out_xg))

    assert out_xl.shape == (B, out_cl, H, W)
    assert out_xg.shape == (B, out_cg, H, W)

    ref_xl, ref_xg = _ref_ffc(x_l, x_g, params)
    np.testing.assert_allclose(np.asarray(out_xl), np.asarray(ref_xl),
                               rtol=2e-3, atol=2e-3)
    np.testing.assert_allclose(np.asarray(out_xg), np.asarray(ref_xg),
                               rtol=2e-3, atol=2e-3)

    print("KERNEL_OK")
</pallas_src>

<mosaic_0001>
module attributes {stable_mosaic.version = 11 : i64} {
  func.func @_ffc_entry_kernel(%arg0: memref<16x512xf32, #tpu.memory_space<vmem>>, %arg1: memref<20x16xf32, #tpu.memory_space<vmem>>, %arg2: memref<4x1xf32, #tpu.memory_space<vmem>>, %arg3: memref<4x1xf32, #tpu.memory_space<vmem>>, %arg4: memref<8x512xf32, #tpu.memory_space<vmem>>, %arg5: memref<8x512xf32, #tpu.memory_space<vmem>>, %arg6: memref<4x512xf32, #tpu.memory_space<vmem>>) attributes {dimension_semantics = [], scalar_prefetch = 0 : i64, scratch_operands = 0 : i64, tpu.core_type = #tpu.core_type<tc>} {
    %c0 = arith.constant 0 : index
    %c0_0 = arith.constant 0 : index
    %0 = vector.load %arg1[%c0, %c0_0] : memref<20x16xf32, #tpu.memory_space<vmem>>, vector<20x16xf32>
    %c0_1 = arith.constant 0 : index
    %c0_2 = arith.constant 0 : index
    %1 = vector.load %arg0[%c0_1, %c0_2] : memref<16x512xf32, #tpu.memory_space<vmem>>, vector<16x512xf32>
    %cst = arith.constant dense<0.000000e+00> : vector<20x512xf32>
    %2 = tpu.matmul %0, %1, %cst {dimension_numbers = #tpu.dot_dimension_numbers<[1], [0], [0], [1], [0, 0, 1, 1], [], []>} : vector<20x16xf32>, vector<16x512xf32>, vector<20x512xf32> -> vector<20x512xf32>
    %3 = vector.extract_strided_slice %2 {offsets = [0, 0], sizes = [8, 512], strides = [1, 1]} : vector<20x512xf32> to vector<8x512xf32>
    %c0_3 = arith.constant 0 : index
    %c0_4 = arith.constant 0 : index
    %4 = vector.load %arg4[%c0_3, %c0_4] : memref<8x512xf32, #tpu.memory_space<vmem>>, vector<8x512xf32>
    tpu.vector_store %arg4[%c0_3, %c0_4], %3 {strides = array<i32>} : memref<8x512xf32, #tpu.memory_space<vmem>>, vector<8x512xf32>,
    %5 = vector.extract_strided_slice %2 {offsets = [8, 0], sizes = [8, 512], strides = [1, 1]} : vector<20x512xf32> to vector<8x512xf32>
    %c0_5 = arith.constant 0 : index
    %c0_6 = arith.constant 0 : index
    %6 = vector.load %arg5[%c0_5, %c0_6] : memref<8x512xf32, #tpu.memory_space<vmem>>, vector<8x512xf32>
    tpu.vector_store %arg5[%c0_5, %c0_6], %5 {strides = array<i32>} : memref<8x512xf32, #tpu.memory_space<vmem>>, vector<8x512xf32>,
    %7 = vector.extract_strided_slice %2 {offsets = [16, 0], sizes = [4, 512], strides = [1, 1]} : vector<20x512xf32> to vector<4x512xf32>
    %c0_7 = arith.constant 0 : index
    %c0_8 = arith.constant 0 : index
    %8 = vector.load %arg2[%c0_7, %c0_8] : memref<4x1xf32, #tpu.memory_space<vmem>>, vector<4x1xf32>
    %c0_9 = arith.constant 0 : index
    %c0_10 = arith.constant 0 : index
    %9 = vector.load %arg3[%c0_9, %c0_10] : memref<4x1xf32, #tpu.memory_space<vmem>>, vector<4x1xf32>
    %cst_11 = arith.constant dense<0.000000e+00> : vector<4xf32>
    %10 = vector.multi_reduction <add>, %7, %cst_11 [1] : vector<4x512xf32> to vector<4xf32>
    %11 = vector.shape_cast %10 : vector<4xf32> to vector<4x1xf32>
    %12 = arith.mulf %7, %7 : vector<4x512xf32>
    %cst_12 = arith.constant dense<0.000000e+00> : vector<4xf32>
    %13 = vector.multi_reduction <add>, %12, %cst_12 [1] : vector<4x512xf32> to vector<4xf32>
    %14 = vector.shape_cast %13 : vector<4xf32> to vector<4x1xf32>
    %cst_13 = arith.constant 0.001953125 : f32
    %15 = vector.broadcast %cst_13 : f32 to vector<4x1xf32>
    %16 = arith.mulf %11, %15 : vector<4x1xf32>
    %cst_14 = arith.constant 0.001953125 : f32
    %17 = vector.broadcast %cst_14 : f32 to vector<4x1xf32>
    %18 = arith.mulf %14, %17 : vector<4x1xf32>
    %19 = arith.mulf %16, %16 : vector<4x1xf32>
    %20 = arith.subf %18, %19 : vector<4x1xf32>
    %cst_15 = arith.constant 0.000000e+00 : f32
    %21 = vector.broadcast %cst_15 : f32 to vector<4x1xf32>
    %22 = arith.maximumf %20, %21 : vector<4x1xf32>
    %23 = vector.broadcast %16 : vector<4x1xf32> to vector<4x512xf32>
    %24 = arith.subf %7, %23 : vector<4x512xf32>
    %cst_16 = arith.constant 9.99999974E-6 : f32
    %25 = vector.broadcast %cst_16 : f32 to vector<4x1xf32>
    %26 = arith.addf %22, %25 : vector<4x1xf32>
    %27 = math.rsqrt %26 : vector<4x1xf32>
    %28 = vector.broadcast %27 : vector<4x1xf32> to vector<4x512xf32>
    %29 = arith.mulf %24, %28 : vector<4x512xf32>
    %30 = vector.broadcast %8 : vector<4x1xf32> to vector<4x512xf32>
    %31 = arith.mulf %29, %30 : vector<4x512xf32>
    %32 = vector.broadcast %9 : vector<4x1xf32> to vector<4x512xf32>
    %33 = arith.addf %31, %32 : vector<4x512xf32>
    %cst_17 = arith.constant 0.000000e+00 : f32
    %34 = vector.broadcast %cst_17 : f32 to vector<4x512xf32>
    %35 = arith.maximumf %33, %34 : vector<4x512xf32>
    %c0_18 = arith.constant 0 : index
    %c0_19 = arith.constant 0 : index
    %36 = vector.load %arg6[%c0_18, %c0_19] : memref<4x512xf32, #tpu.memory_space<vmem>>, vector<4x512xf32>
    tpu.vector_store %arg6[%c0_18, %c0_19], %35 {strides = array<i32>} : memref<4x512xf32, #tpu.memory_space<vmem>>, vector<4x512xf32>,
    return
  }
}

module attributes {stable_mosaic.version = 11 : i64} {
  func.func @_fu2_conv_bn_relu_kernel(%arg0: memref<4x288xf32, #tpu.memory_space<vmem>>, %arg1: memref<4x288xf32, #tpu.memory_space<vmem>>, %arg2: memref<4x80xf32, #tpu.memory_space<vmem>>, %arg3: memref<4x80xf32, #tpu.memory_space<vmem>>, %arg4: memref<8x4xf32, #tpu.memory_space<vmem>>, %arg5: memref<8x4xf32, #tpu.memory_space<vmem>>, %arg6: memref<8x1xf32, #tpu.memory_space<vmem>>, %arg7: memref<8x1xf32, #tpu.memory_space<vmem>>, %arg8: memref<8x4xf32, #tpu.memory_space<vmem>>, %arg9: memref<8x4xf32, #tpu.memory_space<vmem>>, %arg10: memref<8x1xf32, #tpu.memory_space<vmem>>, %arg11: memref<8x1xf32, #tpu.memory_space<vmem>>, %arg12: memref<8x288xf32, #tpu.memory_space<vmem>>, %arg13: memref<8x80xf32, #tpu.memory_space<vmem>>) attributes {dimension_semantics = [], scalar_prefetch = 0 : i64, scratch_operands = 0 : i64, tpu.core_type = #tpu.core_type<tc>} {
    %c0 = arith.constant 0 : index
    %c0_0 = arith.constant 0 : index
    %0 = vector.load %arg4[%c0, %c0_0] : memref<8x4xf32, #tpu.memory_space<vmem>>, vector<8x4xf32>
    %c0_1 = arith.constant 0 : index
    %c0_2 = arith.constant 0 : index
    %1 = vector.load %arg0[%c0_1, %c0_2] : memref<4x288xf32, #tpu.memory_space<vmem>>, vector<4x288xf32>
    %cst = arith.constant dense<0.000000e+00> : vector<8x288xf32>
    %2 = tpu.matmul %0, %1, %cst {dimension_numbers = #tpu.dot_dimension_numbers<[1], [0], [0], [1], [0, 0, 1, 1], [], []>} : vector<8x4xf32>, vector<4x288xf32>, vector<8x288xf32> -> vector<8x288xf32>
    %c0_3 = arith.constant 0 : index
    %c0_4 = arith.constant 0 : index
    %3 = vector.load %arg5[%c0_3, %c0_4] : memref<8x4xf32, #tpu.memory_space<vmem>>, vector<8x4xf32>
    %c0_5 = arith.constant 0 : index
    %c0_6 = arith.constant 0 : index
    %4 = vector.load %arg1[%c0_5, %c0_6] : memref<4x288xf32, #tpu.memory_space<vmem>>, vector<4x288xf32>
    %cst_7 = arith.constant dense<0.000000e+00> : vector<8x288xf32>
    %5 = tpu.matmul %3, %4, %cst_7 {dimension_numbers = #tpu.dot_dimension_numbers<[1], [0], [0], [1], [0, 0, 1, 1], [], []>} : vector<8x4xf32>, vector<4x288xf32>, vector<8x288xf32> -> vector<8x288xf32>
    %6 = arith.addf %2, %5 : vector<8x288xf32>
    %c0_8 = arith.constant 0 : index
    %c0_9 = arith.constant 0 : index
    %7 = vector.load %arg6[%c0_8, %c0_9] : memref<8x1xf32, #tpu.memory_space<vmem>>, vector<8x1xf32>
    %c0_10 = arith.constant 0 : index
    %c0_11 = arith.constant 0 : index
    %8 = vector.load %arg7[%c0_10, %c0_11] : memref<8x1xf32, #tpu.memory_space<vmem>>, vector<8x1xf32>
    %cst_12 = arith.constant dense<0.000000e+00> : vector<8xf32>
    %9 = vector.multi_reduction <add>, %6, %cst_12 [1] : vector<8x288xf32> to vector<8xf32>
    %10 = vector.shape_cast %9 : vector<8xf32> to vector<8x1xf32>
    %11 = arith.mulf %6, %6 : vector<8x288xf32>
    %cst_13 = arith.constant dense<0.000000e+00> : vector<8xf32>
    %12 = vector.multi_reduction <add>, %11, %cst_13 [1] : vector<8x288xf32> to vector<8xf32>
    %13 = vector.shape_cast %12 : vector<8xf32> to vector<8x1xf32>
    %cst_14 = arith.constant 0.00347222225 : f32
    %14 = vector.broadcast %cst_14 : f32 to vector<8x1xf32>
    %15 = arith.mulf %10, %14 : vector<8x1xf32>
    %cst_15 = arith.constant 0.00347222225 : f32
    %16 = vector.broadcast %cst_15 : f32 to vector<8x1xf32>
    %17 = arith.mulf %13, %16 : vector<8x1xf32>
    %18 = arith.mulf %15, %15 : vector<8x1xf32>
    %19 = arith.subf %17, %18 : vector<8x1xf32>
    %cst_16 = arith.constant 0.000000e+00 : f32
    %20 = vector.broadcast %cst_16 : f32 to vector<8x1xf32>
    %21 = arith.maximumf %19, %20 : vector<8x1xf32>
    %22 = vector.broadcast %15 : vector<8x1xf32> to vector<8x288xf32>
    %23 = arith.subf %6, %22 : vector<8x288xf32>
    %cst_17 = arith.constant 9.99999974E-6 : f32
    %24 = vector.broadcast %cst_17 : f32 to vector<8x1xf32>
    %25 = arith.addf %21, %24 : vector<8x1xf32>
    %26 = math.rsqrt %25 : vector<8x1xf32>
    %27 = vector.broadcast %26 : vector<8x1xf32> to vector<8x288xf32>
    %28 = arith.mulf %23, %27 : vector<8x288xf32>
    %29 = vector.broadcast %7 : vector<8x1xf32> to vector<8x288xf32>
    %30 = arith.mulf %28, %29 : vector<8x288xf32>
    %31 = vector.broadcast %8 : vector<8x1xf32> to vector<8x288xf32>
    %32 = arith.addf %30, %31 : vector<8x288xf32>
    %cst_18 = arith.constant 0.000000e+00 : f32
    %33 = vector.broadcast %cst_18 : f32 to vector<8x288xf32>
    %34 = arith.maximumf %32, %33 : vector<8x288xf32>
    %c0_19 = arith.constant 0 : index
    %c0_20 = arith.constant 0 : index
    %35 = vector.load %arg12[%c0_19, %c0_20] : memref<8x288xf32, #tpu.memory_space<vmem>>, vector<8x288xf32>
    tpu.vector_store %arg12[%c0_19, %c0_20], %34 {strides = array<i32>} : memref<8x288xf32, #tpu.memory_space<vmem>>, vector<8x288xf32>,
    %c0_21 = arith.constant 0 : index
    %c0_22 = arith.constant 0 : index
    %36 = vector.load %arg8[%c0_21, %c0_22] : memref<8x4xf32, #tpu.memory_space<vmem>>, vector<8x4xf32>
    %c0_23 = arith.constant 0 : index
    %c0_24 = arith.constant 0 : index
    %37 = vector.load %arg2[%c0_23, %c0_24] : memref<4x80xf32, #tpu.memory_space<vmem>>, vector<4x80xf32>
    %cst_25 = arith.constant dense<0.000000e+00> : vector<8x80xf32>
    %38 = tpu.matmul %36, %37, %cst_25 {dimension_numbers = #tpu.dot_dimension_numbers<[1], [0], [0], [1], [0, 0, 1, 1], [], []>} : vector<8x4xf32>, vector<4x80xf32>, vector<8x80xf32> -> vector<8x80xf32>
    %c0_26 = arith.constant 0 : index
    %c0_27 = arith.constant 0 : index
    %39 = vector.load %arg9[%c0_26, %c0_27] : memref<8x4xf32, #tpu.memory_space<vmem>>, vector<8x4xf32>
    %c0_28 = arith.constant 0 : index
    %c0_29 = arith.constant 0 : index
    %40 = vector.load %arg3[%c0_28, %c0_29] : memref<4x80xf32, #tpu.memory_space<vmem>>, vector<4x80xf32>
    %cst_30 = arith.constant dense<0.000000e+00> : vector<8x80xf32>
    %41 = tpu.matmul %39, %40, %cst_30 {dimension_numbers = #tpu.dot_dimension_numbers<[1], [0], [0], [1], [0, 0, 1, 1], [], []>} : vector<8x4xf32>, vector<4x80xf32>, vector<8x80xf32> -> vector<8x80xf32>
    %42 = arith.addf %38, %41 : vector<8x80xf32>
    %c0_31 = arith.constant 0 : index
    %c0_32 = arith.constant 0 : index
    %43 = vector.load %arg10[%c0_31, %c0_32] : memref<8x1xf32, #tpu.memory_space<vmem>>, vector<8x1xf32>
    %c0_33 = arith.constant 0 : index
    %c0_34 = arith.constant 0 : index
    %44 = vector.load %arg11[%c0_33, %c0_34] : memref<8x1xf32, #tpu.memory_space<vmem>>, vector<8x1xf32>
    %cst_35 = arith.constant dense<0.000000e+00> : vector<8xf32>
    %45 = vector.multi_reduction <add>, %42, %cst_35 [1] : vector<8x80xf32> to vector<8xf32>
    %46 = vector.shape_cast %45 : vector<8xf32> to vector<8x1xf32>
    %47 = arith.mulf %42, %42 : vector<8x80xf32>
    %cst_36 = arith.constant dense<0.000000e+00> : vector<8xf32>
    %48 = vector.multi_reduction <add>, %47, %cst_36 [1] : vector<8x80xf32> to vector<8xf32>
    %49 = vector.shape_cast %48 : vector<8xf32> to vector<8x1xf32>
    %cst_37 = arith.constant 1.250000e-02 : f32
    %50 = vector.broadcast %cst_37 : f32 to vector<8x1xf32>
    %51 = arith.mulf %46, %50 : vector<8x1xf32>
    %cst_38 = arith.constant 1.250000e-02 : f32
    %52 = vector.broadcast %cst_38 : f32 to vector<8x1xf32>
    %53 = arith.mulf %49, %52 : vector<8x1xf32>
    %54 = arith.mulf %51, %51 : vector<8x1xf32>
    %55 = arith.subf %53, %54 : vector<8x1xf32>
    %cst_39 = arith.constant 0.000000e+00 : f32
    %56 = vector.broadcast %cst_39 : f32 to vector<8x1xf32>
    %57 = arith.maximumf %55, %56 : vector<8x1xf32>
    %58 = vector.broadcast %51 : vector<8x1xf32> to vector<8x80xf32>
    %59 = arith.subf %42, %58 : vector<8x80xf32>
    %cst_40 = arith.constant 9.99999974E-6 : f32
    %60 = vector.broadcast %cst_40 : f32 to vector<8x1xf32>
    %61 = arith.addf %57, %60 : vector<8x1xf32>
    %62 = math.rsqrt %61 : vector<8x1xf32>
    %63 = vector.broadcast %62 : vector<8x1xf32> to vector<8x80xf32>
    %64 = arith.mulf %59, %63 : vector<8x80xf32>
    %65 = vector.broadcast %43 : vector<8x1xf32> to vector<8x80xf32>
    %66 = arith.mulf %64, %65 : vector<8x80xf32>
    %67 = vector.broadcast %44 : vector<8x1xf32> to vector<8x80xf32>
    %68 = arith.addf %66, %67 : vector<8x80xf32>
    %cst_41 = arith.constant 0.000000e+00 : f32
    %69 = vector.broadcast %cst_41 : f32 to vector<8x80xf32>
    %70 = arith.maximumf %68, %69 : vector<8x80xf32>
    %c0_42 = arith.constant 0 : index
    %c0_43 = arith.constant 0 : index
    %71 = vector.load %arg13[%c0_42, %c0_43] : memref<8x80xf32, #tpu.memory_space<vmem>>, vector<8x80xf32>
    tpu.vector_store %arg13[%c0_42, %c0_43], %70 {strides = array<i32>} : memref<8x80xf32, #tpu.memory_space<vmem>>, vector<8x80xf32>,
    return
  }
}

module attributes {stable_mosaic.version = 11 : i64} {
  func.func @_conv2_add_kernel(%arg0: memref<4x512xf32, #tpu.memory_space<vmem>>, %arg1: memref<4x512xf32, #tpu.memory_space<vmem>>, %arg2: memref<4x128xf32, #tpu.memory_space<vmem>>, %arg3: memref<8x4xf32, #tpu.memory_space<vmem>>, %arg4: memref<8x512xf32, #tpu.memory_space<vmem>>, %arg5: memref<8x512xf32, #tpu.memory_space<vmem>>, %arg6: memref<8x128xf32, #tpu.memory_space<vmem>>) attributes {dimension_semantics = [], scalar_prefetch = 0 : i64, scratch_operands = 0 : i64, tpu.core_type = #tpu.core_type<tc>} {
    %c0 = arith.constant 0 : index
    %c0_0 = arith.constant 0 : index
    %0 = vector.load %arg0[%c0, %c0_0] : memref<4x512xf32, #tpu.memory_space<vmem>>, vector<4x512xf32>
    %c0_1 = arith.constant 0 : index
    %c0_2 = arith.constant 0 : index
    %1 = vector.load %arg1[%c0_1, %c0_2] : memref<4x512xf32, #tpu.memory_space<vmem>>, vector<4x512xf32>
    %2 = arith.addf %0, %1 : vector<4x512xf32>
    %c0_3 = arith.constant 0 : index
    %c0_4 = arith.constant 0 : index
    %3 = vector.load %arg3[%c0_3, %c0_4] : memref<8x4xf32, #tpu.memory_space<vmem>>, vector<8x4xf32>
    %cst = arith.constant dense<0.000000e+00> : vector<8x512xf32>
    %4 = tpu.matmul %3, %2, %cst {dimension_numbers = #tpu.dot_dimension_numbers<[1], [0], [0], [1], [0, 0, 1, 1], [], []>} : vector<8x4xf32>, vector<4x512xf32>, vector<8x512xf32> -> vector<8x512xf32>
    %c0_5 = arith.constant 0 : index
    %c0_6 = arith.constant 0 : index
    %5 = vector.load %arg4[%c0_5, %c0_6] : memref<8x512xf32, #tpu.memory_space<vmem>>, vector<8x512xf32>
    %6 = arith.addf %4, %5 : vector<8x512xf32>
    %c0_7 = arith.constant 0 : index
    %c0_8 = arith.constant 0 : index
    %7 = vector.load %arg5[%c0_7, %c0_8] : memref<8x512xf32, #tpu.memory_space<vmem>>, vector<8x512xf32>
    tpu.vector_store %arg5[%c0_7, %c0_8], %6 {strides = array<i32>} : memref<8x512xf32, #tpu.memory_space<vmem>>, vector<8x512xf32>,
    %c0_9 = arith.constant 0 : index
    %c0_10 = arith.constant 0 : index
    %8 = vector.load %arg3[%c0_9, %c0_10] : memref<8x4xf32, #tpu.memory_space<vmem>>, vector<8x4xf32>
    %c0_11 = arith.constant 0 : index
    %c0_12 = arith.constant 0 : index
    %9 = vector.load %arg2[%c0_11, %c0_12] : memref<4x128xf32, #tpu.memory_space<vmem>>, vector<4x128xf32>
    %cst_13 = arith.constant dense<0.000000e+00> : vector<8x128xf32>
    %10 = tpu.matmul %8, %9, %cst_13 {dimension_numbers = #tpu.dot_dimension_numbers<[1], [0], [0], [1], [0, 0, 1, 1], [], []>} : vector<8x4xf32>, vector<4x128xf32>, vector<8x128xf32> -> vector<8x128xf32>
    %c0_14 = arith.constant 0 : index
    %c0_15 = arith.constant 0 : index
    %11 = vector.load %arg6[%c0_14, %c0_15] : memref<8x128xf32, #tpu.memory_space<vmem>>, vector<8x128xf32>
    tpu.vector_store %arg6[%c0_14, %c0_15], %10 {strides = array<i32>} : memref<8x128xf32, #tpu.memory_space<vmem>>, vector<8x128xf32>,
    return
  }
}

</mosaic_0001>

<llo_original>
// kernel: ffc_forward.3
$region0: #{ffc_forward.3}
  #allocation0 [shape = 'u32[]', space=smem, size = 0x4, offset = 0x4, fixed_abs, tag = 'smem constant byte address 0x4 - core index']
  #allocation1 [shape = 'u32[72,128]{1,0:T(1,128)}', space=vmem, size = 0x9000, scoped, tag = 'internal scratch']
  %s0 = inlined_call_operand.vmem [shape: f32[16,512], index: 0, kind: input, shape index: {}]
  %s1 = inlined_call_operand.vmem [shape: f32[20,16], index: 1, kind: input, shape index: {}]
  %s2 = inlined_call_operand.vmem [shape: f32[4,1], index: 2, kind: input, shape index: {}]
  %s3 = inlined_call_operand.vmem [shape: f32[4,1], index: 3, kind: input, shape index: {}]
  %s4 = inlined_call_operand.vmem [shape: f32[8,512], index: 4, kind: output, shape index: {0}]
  %s5 = inlined_call_operand.vmem [shape: f32[8,512], index: 5, kind: output, shape index: {1}]
  %s6 = inlined_call_operand.vmem [shape: f32[4,512], index: 6, kind: output, shape index: {2}]
  %7 = xla_tuple %s4, %s5, %s6
  %s8 = sld [smem:[#allocation0]]
  $region42: #{ffc_forward.3} parent=0
    _
  %s10 = ssub.s32 1, %s8
  %s11 = scalar_select 0, %s10, %s8
  // Predicated region
  $region2: #{ffc_forward.3} parent=0 // pred_check
    _
  $region3: #{ffc_forward.3} parent=0 // pred_check_branch
    %13 = sbr.rel (0) target = $region5
  $region4: #{ffc_forward.3} parent=0 // pred_region
    _
  $region5: #{ffc_forward.3} parent=0 // pred_fallthru
    _
  // Predicated region
  $region6: #{ffc_forward.3} parent=0 // pred_check
    _
  $region7: #{ffc_forward.3} parent=0 // pred_check_branch
    %15 = sbr.rel (0) target = $region9
  $region8: #{ffc_forward.3} parent=0 // pred_region
    _
  $region9: #{ffc_forward.3} parent=0 // pred_fallthru
    _
  // Predicated region
  $region10: #{ffc_forward.3} parent=0 // pred_check
    _
  $region11: #{ffc_forward.3} parent=0 // pred_check_branch
    %17 = sbr.rel (0) target = $region13
  $region12: #{ffc_forward.3} parent=0 // pred_region
    _
  $region13: #{ffc_forward.3} parent=0 // pred_fallthru
    _
  // Predicated region
  $region14: #{ffc_forward.3} parent=0 // pred_check
    _
  $region15: #{ffc_forward.3} parent=0 // pred_check_branch
    %19 = sbr.rel (0) target = $region17
  $region16: #{ffc_forward.3} parent=0 // pred_region
    _
  $region17: #{ffc_forward.3} parent=0 // pred_fallthru
    _
  %v20 = vld [vmem:[%s1] sm:$0xff]
  %v21 = vld [vmem:[%s1 + $0x8] sm:$0xff]
  %v22 = vld [vmem:[%s1 + $0x10] sm:$0xf]
  %v23 = vld [vmem:[%s0] sm:$0xff]
  %v24 = vld [vmem:[%s0 + $0x8] sm:$0xff]
  %v25 = vld [vmem:[%s0 + $0x10] sm:$0xff]
  %v26 = vld [vmem:[%s0 + $0x18] sm:$0xff]
  %v27 = vld [vmem:[%s0 + $0x20] sm:$0xff]
  %v28 = vld [vmem:[%s0 + $0x28] sm:$0xff]
  %v29 = vld [vmem:[%s0 + $0x30] sm:$0xff]
  %v30 = vld [vmem:[%s0 + $0x38] sm:$0xff]
  %vm31 = vcmask 130048
  %v33 = vsel %vm31, %v20, 0
  %v36 = vsel %vm31, %v21, 0
  %v39 = vsel %vm31, %v22, 0
  %41 = vmatpush.msra.mxu0 0.0
  %42 = vmatpush.msra.mxu0 0.0
  %43 = vmatpush.msra.mxu0 0.0
  %44 = vmatpush.msra.mxu0 0.0
  %45 = vmatpush.msra.mxu0 0.0
  %46 = vmatpush.msra.mxu0 0.0
  %47 = vmatpush.msra.mxu0 0.0
  %48 = vmatpush.msra.mxu0 0.0
  %49 = vmatpush.msra.mxu0 0.0
  %50 = vmatpush.msra.mxu0 0.0
  %51 = vmatpush.msra.mxu0 0.0
  %52 = vmatpush.msra.mxu0 0.0
  %53 = vmatpush.msra.mxu0 0.0
  %54 = vmatpush.msra.mxu0 0.0
  %55 = vmatpush.msra.mxu0 %v27
  %56 = vmatpush.msra.mxu0 %v23
  %57 = vmatmul.f32.gmra.mxu0 %v33
  %v58 = vpop.f32.mrf.mxu0
  %v59 = vadd.f32 0.0, %v58
  %60 = vmatmul.f32.gmra.mxu0 %v36
  %v61 = vpop.f32.mrf.mxu0
  %v62 = vadd.f32 0.0, %v61
  %63 = vmatmul.f32.gmra.mxu0 %v39
  %v64 = vpop.f32.mrf.mxu0
  %v65 = vadd.f32 0.0, %v64
  %66 = vdwg.mxu0
  %67 = vmatpush.msra.mxu0 0.0
  %68 = vmatpush.msra.mxu0 0.0
  %69 = vmatpush.msra.mxu0 0.0
  %70 = vmatpush.msra.mxu0 0.0
  %71 = vmatpush.msra.mxu0 0.0
  %72 = vmatpush.msra.mxu0 0.0
  %73 = vmatpush.msra.mxu0 0.0
  %74 = vmatpush.msra.mxu0 0.0
  %75 = vmatpush.msra.mxu0 0.0
  %76 = vmatpush.msra.mxu0 0.0
  %77 = vmatpush.msra.mxu0 0.0
  %78 = vmatpush.msra.mxu0 0.0
  %79 = vmatpush.msra.mxu0 0.0
  %80 = vmatpush.msra.mxu0 0.0
  %81 = vmatpush.msra.mxu0 %v28
  %82 = vmatpush.msra.mxu0 %v24
  %83 = vmatmul.f32.gmra.mxu0 %v33
  %v84 = vpop.f32.mrf.mxu0
  %v85 = vadd.f32 0.0, %v84
  %86 = vmatmul.f32.gmra.mxu0 %v36
  %v87 = vpop.f32.mrf.mxu0
  %v88 = vadd.f32 0.0, %v87
  %89 = vmatmul.f32.gmra.mxu0 %v39
  %v90 = vpop.f32.mrf.mxu0
  %v91 = vadd.f32 0.0, %v90
  %92 = vdwg.mxu0
  %93 = vmatpush.msra.mxu0 0.0
  %94 = vmatpush.msra.mxu0 0.0
  %95 = vmatpush.msra.mxu0 0.0
  %96 = vmatpush.msra.mxu0 0.0
  %97 = vmatpush.msra.mxu0 0.0
  %98 = vmatpush.msra.mxu0 0.0
  %99 = vmatpush.msra.mxu0 0.0
  %100 = vmatpush.msra.mxu0 0.0
  %101 = vmatpush.msra.mxu0 0.0
  %102 = vmatpush.msra.mxu0 0.0
  %103 = vmatpush.msra.mxu0 0.0
  %104 = vmatpush.msra.mxu0 0.0
  %105 = vmatpush.msra.mxu0 0.0
  %106 = vmatpush.msra.mxu0 0.0
  %107 = vmatpush.msra.mxu0 %v29
  %108 = vmatpush.msra.mxu0 %v25
  %109 = vmatmul.f32.gmra.mxu0 %v33
  %v110 = vpop.f32.mrf.mxu0
  %v111 = vadd.f32 0.0, %v110
  %112 = vmatmul.f32.gmra.mxu0 %v36
  %v113 = vpop.f32.mrf.mxu0
  %v114 = vadd.f32 0.0, %v113
  %115 = vmatmul.f32.gmra.mxu0 %v39
  %v116 = vpop.f32.mrf.mxu0
  %v117 = vadd.f32 0.0, %v116
  %118 = vdwg.mxu0
  %119 = vmatpush.msra.mxu0 0.0
  %120 = vmatpush.msra.mxu0 0.0
  %121 = vmatpush.msra.mxu0 0.0
  %122 = vmatpush.msra.mxu0 0.0
  %123 = vmatpush.msra.mxu0 0.0
  %124 = vmatpush.msra.mxu0 0.0
  %125 = vmatpush.msra.mxu0 0.0
  %126 = vmatpush.msra.mxu0 0.0
  %127 = vmatpush.msra.mxu0 0.0
  %128 = vmatpush.msra.mxu0 0.0
  %129 = vmatpush.msra.mxu0 0.0
  %130 = vmatpush.msra.mxu0 0.0
  %131 = vmatpush.msra.mxu0 0.0
  %132 = vmatpush.msra.mxu0 0.0
  %133 = vmatpush.msra.mxu0 %v30
  %134 = vmatpush.msra.mxu0 %v26
  %135 = vmatmul.f32.gmra.mxu0 %v33
  %v136 = vpop.f32.mrf.mxu0
  %v137 = vadd.f32 0.0, %v136
  %138 = vmatmul.f32.gmra.mxu0 %v36
  %v139 = vpop.f32.mrf.mxu0
  %v140 = vadd.f32 0.0, %v139
  %141 = vmatmul.f32.gmra.mxu0 %v39
  %v142 = vpop.f32.mrf.mxu0
  %v143 = vadd.f32 0.0, %v142
  %144 = vdwg.mxu0
  %145 = vst [vmem:[%s4] sm:$0xff] %v59
  %146 = vst [vmem:[%s4 + $0x8] sm:$0xff] %v85
  %147 = vst [vmem:[%s4 + $0x10] sm:$0xff] %v111
  %148 = vst [vmem:[%s4 + $0x18] sm:$0xff] %v137
  %149 = vst [vmem:[%s5] sm:$0xff] %v62
  %150 = vst [vmem:[%s5 + $0x8] sm:$0xff] %v88
  %151 = vst [vmem:[%s5 + $0x10] sm:$0xff] %v114
  %152 = vst [vmem:[%s5 + $0x18] sm:$0xff] %v140
  %v153 = vld [vmem:[%s2] sm:$0xf]
  %v154 = vld [vmem:[%s3] sm:$0xf]
  %vm155 = vcmask 1043456
  %v156 = vsel %vm155, %v65, 0.0
  %v157 = vsel %vm155, %v91, 0.0
  %v158 = vadd.f32 %v156, %v157
  %v159 = vsel %vm155, %v117, 0.0
  %v160 = vadd.f32 %v158, %v159
  %v161 = vsel %vm155, %v143, 0.0
  %v162 = vadd.f32 %v160, %v161
  %163 = vadd.xlane.f32.xlu0 %v162
  %v164 = vpop.xlane.xlu0 %163
  %v165 = vmul.f32 %v65, %v65
  %v166 = vmul.f32 %v91, %v91
  %v167 = vmul.f32 %v117, %v117
  %v168 = vmul.f32 %v143, %v143
  %v169 = vsel %vm155, %v165, 0.0
  %v170 = vsel %vm155, %v166, 0.0
  %v171 = vadd.f32 %v169, %v170
  %v172 = vsel %vm155, %v167, 0.0
  %v173 = vadd.f32 %v171, %v172
  %v174 = vsel %vm155, %v168, 0.0
  %v175 = vadd.f32 %v173, %v174
  %176 = vadd.xlane.f32.xlu0 %v175
  %v177 = vpop.xlane.xlu0 %176
  %v178 = vmul.f32 %v164, 0.001953125
  %v179 = vmul.f32 %v177, 0.001953125
  %v180 = vmul.f32 %v178, %v178
  %v181 = vsub.f32 %v179, %v180
  %v182 = vmax.f32 %v181, 0.0
  %v183 = vsub.f32 %v65, %v178
  %v184 = vsub.f32 %v91, %v178
  %v185 = vsub.f32 %v117, %v178
  %v186 = vsub.f32 %v143, %v178
  %v187 = vadd.f32 %v182, 1e-05
  %v188 = vrsqrt.pop %v187
  %v189 = vmul.f32 %v188, %v187
  %v190 = vmul.f32 %v189, %v188
  %v191 = vmul.f32 0.5, %v190
  %v192 = vsub.f32 1.5, %v191
  %v193 = vmul.f32 %v188, %v192
  %vm194 = vweird.f32 %v187
  %vm195 = vweird.f32 %v188
  %vm196 = vmor %vm194, %vm195
  %v197 = vsel %vm196, %v188, %v193
  %v198 = vmul.f32 %v183, %v197
  %v199 = vmul.f32 %v184, %v197
  %v200 = vmul.f32 %v185, %v197
  %v201 = vmul.f32 %v186, %v197
  %203 = vset.pattern.permute.xlu0 0
  %204 = vperm.xlu0 %203, %v153
  %v205 = vpop.permute.xlu0 %204
  %v207 = vmul.f32 %v198, %v205
  %v208 = vmul.f32 %v199, %v205
  %v209 = vmul.f32 %v200, %v205
  %v210 = vmul.f32 %v201, %v205
  %212 = vset.pattern.permute.xlu0 0
  %213 = vperm.xlu0 %212, %v154
  %v214 = vpop.permute.xlu0 %213
  %v216 = vadd.f32 %v207, %v214
  %v217 = vadd.f32 %v208, %v214
  %v218 = vadd.f32 %v209, %v214
  %v219 = vadd.f32 %v210, %v214
  %v220 = vmax.f32 %v216, 0.0
  %v221 = vmax.f32 %v217, 0.0
  %v222 = vmax.f32 %v218, 0.0
  %v223 = vmax.f32 %v219, 0.0
  %v228 = vrot.slane %v221, 4
  %v229 = vrot.slane %v223, 4
  %v230 = vsel %vm155, %v220, %v228
  %v231 = vsel %vm155, %v222, %v229
  %234 = vst [vmem:[%s6] sm:$0xff] %v230
  %235 = vst [vmem:[%s6 + $0x8] sm:$0xff] %v231
  // Predicated region
  $region18: #{ffc_forward.3} parent=0 // pred_check
    _
  $region19: #{ffc_forward.3} parent=0 // pred_check_branch
    %237 = sbr.rel (0) target = $region21
  $region20: #{ffc_forward.3} parent=0 // pred_region
    _
  $region21: #{ffc_forward.3} parent=0 // pred_fallthru
    _
  // Predicated region
  $region22: #{ffc_forward.3} parent=0 // pred_check
    _
  $region23: #{ffc_forward.3} parent=0 // pred_check_branch
    %239 = sbr.rel (0) target = $region25
  $region24: #{ffc_forward.3} parent=0 // pred_region
    _
  $region25: #{ffc_forward.3} parent=0 // pred_fallthru
    _
  // Predicated region
  $region26: #{ffc_forward.3} parent=0 // pred_check
    _
  $region27: #{ffc_forward.3} parent=0 // pred_check_branch
    %241 = sbr.rel (0) target = $region29
  $region28: #{ffc_forward.3} parent=0 // pred_region
    _
  $region29: #{ffc_forward.3} parent=0 // pred_fallthru
    _
  // Predicated region
  $region30: #{ffc_forward.3} parent=0 // pred_check
    _
  $region31: #{ffc_forward.3} parent=0 // pred_check_branch
    %243 = sbr.rel (0) target = $region33
  $region32: #{ffc_forward.3} parent=0 // pred_region
    _
  $region33: #{ffc_forward.3} parent=0 // pred_fallthru
    _
  // Predicated region
  $region34: #{ffc_forward.3} parent=0 // pred_check
    _
  $region35: #{ffc_forward.3} parent=0 // pred_check_branch
    %245 = sbr.rel (0) target = $region37
  $region36: #{ffc_forward.3} parent=0 // pred_region
    _
  $region37: #{ffc_forward.3} parent=0 // pred_fallthru
    _
  // Predicated region
  $region38: #{ffc_forward.3} parent=0 // pred_check
    _
  $region39: #{ffc_forward.3} parent=0 // pred_check_branch
    %247 = sbr.rel (0) target = $region41
  $region40: #{ffc_forward.3} parent=0 // pred_region
    _
  $region41: #{ffc_forward.3} parent=0 // pred_fallthru
    _

// kernel: reverse.1
$region0: #{reverse.1}
  %s0 = inlined_call_operand.vmem [shape: f32[4,2,8,3], index: 0, kind: input, shape index: {}]
  %s1 = inlined_call_operand.vmem [shape: f32[4,2,8,3], index: 1, kind: output, shape index: {}]
  $region1: #{reverse.1} parent=0
    #allocation0 [shape = 'u8[65536]{0}', space=vmem, size = 0x10000, scoped, tag = 'operand span for operand 0']
    #allocation1 [shape = 'u8[32768]{0}', space=vmem, size = 0x8000, scoped, tag = 'packed  for operand 0']
    #allocation2 [shape = 'u8[32768]{0}', space=vmem, size = 0x8000, scoped, tag = 'operand span for operand 1']
    #allocation3 [shape = 'u8[16384]{0}', space=vmem, size = 0x4000, scoped, tag = 'packed  for operand 1']
    %s2 = scalar_lea.vmem [#allocation1], 4
    // Predicated region
    $region2: #{reverse.1} parent=1 // pred_check
      _
    $region3: #{reverse.1} parent=1 // pred_check_branch
      %4 = sbr.rel (0) target = $region5
    $region4: #{reverse.1} parent=1 // pred_region
      // Predicated region
      $region6: #{reverse.1} parent=4 // pred_check
        _
      $region7: #{reverse.1} parent=4 // pred_check_branch
        %6 = sbr.rel target = $region9
      $region8: #{reverse.1} parent=4 // pred_region
        // Predicated region
        $region21: #{reverse.1} parent=8 // pred_check
          _
        $region22: #{reverse.1} parent=8 // pred_check_branch
          %36 = sbr.rel (0) target = $region24
        $region23: #{reverse.1} parent=8 // pred_region
          loop: start=0, step=1, limit=1
          $region25: #{reverse.1} parent=23 // loop_pre_header
            _
          $region26: #{reverse.1} parent=23 // loop_header
            %s38 = sphi 0, %s42
            %p39 = scmp.ge.s32.totalorder %s38, 1
            %s43 = sphi %s0, %s0
            %s44 = sphi %s2, %s2
          $region27: #{reverse.1} parent=23 // loop_header_branch
            %41 = sbr.rel (%p39) target = $region31
          $region28: #{reverse.1} parent=23 // loop_body
            _
          $region29: #{reverse.1} parent=23 // loop_footer
            %s42 = sadd.s32 1, %s38
          $region30: #{reverse.1} parent=23 // loop_footer_branch
            %37 = sbr.rel target = $region26
          $region31: #{reverse.1} parent=23 // loop_exit
            _
          %s46 = ssub.s32 16, 1
          loop: start=0, step=1, limit=1
          $region32: #{reverse.1} parent=23 // loop_pre_header
            _
          $region33: #{reverse.1} parent=23 // loop_header
            %s48 = sphi 0, %s52
            %p49 = scmp.ge.s32.totalorder %s48, 1
            %s53 = sphi %s0, %s0
            %s54 = sphi %s2, %s2
          $region34: #{reverse.1} parent=23 // loop_header_branch
            %51 = sbr.rel (%p49) target = $region38
          $region35: #{reverse.1} parent=23 // loop_body
            %v55 = vld [vmem:[%s53] sm:%s46]
            %56 = vst [vmem:[%s54] sm:%s46] %v55
            %v57 = vld [vmem:[%s53 + $0x4] sm:%s46]
            %58 = vst [vmem:[%s54 + $0x8] sm:%s46] %v57
            %v59 = vld [vmem:[%s53 + $0x8] sm:%s46]
            %60 = vst [vmem:[%s54 + $0x10] sm:%s46] %v59
            %v61 = vld [vmem:[%s53 + $0xc] sm:%s46]
            %62 = vst [vmem:[%s54 + $0x18] sm:%s46] %v61
            %v63 = vld [vmem:[%s53 + $0x10] sm:%s46]
            %64 = vst [vmem:[%s54 + $0x20] sm:%s46] %v63
            %v65 = vld [vmem:[%s53 + $0x14] sm:%s46]
            %66 = vst [vmem:[%s54 + $0x28] sm:%s46] %v65
            %v67 = vld [vmem:[%s53 + $0x18] sm:%s46]
            %68 = vst [vmem:[%s54 + $0x30] sm:%s46] %v67
            %v69 = vld [vmem:[%s53 + $0x1c] sm:%s46]
            %70 = vst [vmem:[%s54 + $0x38] sm:%s46] %v69
          $region36: #{reverse.1} parent=23 // loop_footer
            %s52 = sadd.s32 1, %s48
          $region37: #{reverse.1} parent=23 // loop_footer_branch
            %47 = sbr.rel target = $region33
          $region38: #{reverse.1} parent=23 // loop_exit
            _
        $region24: #{reverse.1} parent=8 // pred_fallthru
          _
      $region9: #{reverse.1} parent=4 // pred_fallthru
        _
      // Predicated region
      $region10: #{reverse.1} parent=4 // pred_check
        _
      $region11: #{reverse.1} parent=4 // pred_check_branch
        %8 = sbr.rel (0) target = $region13
      $region12: #{reverse.1} parent=4 // pred_region
        %s10 = ssub.s32 16, 1
        loop: start=0, step=1, limit=1
        $region14: #{reverse.1} parent=12 // loop_pre_header
          _
        $region15: #{reverse.1} parent=12 // loop_header
          %s12 = sphi 0, %s16
          %p13 = scmp.ge.s32.totalorder %s12, 1
          %s17 = sphi %s0, %s0
          %s18 = sphi %s2, %s2
        $region16: #{reverse.1} parent=12 // loop_header_branch
          %15 = sbr.rel (%p13) target = $region20
        $region17: #{reverse.1} parent=12 // loop_body
          %v19 = vld [vmem:[%s17] sm:%s10]
          %20 = vst [vmem:[%s18] sm:%s10] %v19
          %v21 = vld [vmem:[%s17 + $0x4] sm:%s10]
          %22 = vst [vmem:[%s18 + $0x8] sm:%s10] %v21
          %v23 = vld [vmem:[%s17 + $0x8] sm:%s10]
          %24 = vst [vmem:[%s18 + $0x10] sm:%s10] %v23
          %v25 = vld [vmem:[%s17 + $0xc] sm:%s10]
          %26 = vst [vmem:[%s18 + $0x18] sm:%s10] %v25
          %v27 = vld [vmem:[%s17 + $0x10] sm:%s10]
          %28 = vst [vmem:[%s18 + $0x20] sm:%s10] %v27
          %v29 = vld [vmem:[%s17 + $0x14] sm:%s10]
          %30 = vst [vmem:[%s18 + $0x28] sm:%s10] %v29
          %v31 = vld [vmem:[%s17 + $0x18] sm:%s10]
          %32 = vst [vmem:[%s18 + $0x30] sm:%s10] %v31
          %v33 = vld [vmem:[%s17 + $0x1c] sm:%s10]
          %34 = vst [vmem:[%s18 + $0x38] sm:%s10] %v33
        $region18: #{reverse.1} parent=12 // loop_footer
          %s16 = sadd.s32 1, %s12
        $region19: #{reverse.1} parent=12 // loop_footer_branch
          %11 = sbr.rel target = $region15
        $region20: #{reverse.1} parent=12 // loop_exit
          _
      $region13: #{reverse.1} parent=4 // pred_fallthru
        _
    $region5: #{reverse.1} parent=1 // pred_fallthru
      _
    %71 = vnop
    %s73 = ssub.s32 16, 1
    %s74 = scalar_lea.vmem [#allocation1], 60
    %v75 = vld [vmem:[%s74] sm:%s73]
    %s76 = scalar_lea.vmem [#allocation0], 120
    %77 = vst [vmem:[%s76] sm:%s73] %v75
    %s78 = scalar_lea.vmem [#allocation1], 56
    %v79 = vld [vmem:[%s78] sm:%s73]
    %s80 = scalar_lea.vmem [#allocation0], 112
    %81 = vst [vmem:[%s80] sm:%s73] %v79
    %s82 = scalar_lea.vmem [#allocation1], 52
    %v83 = vld [vmem:[%s82] sm:%s73]
    %s84 = scalar_lea.vmem [#allocation0], 104
    %85 = vst [vmem:[%s84] sm:%s73] %v83
    %s86 = scalar_lea.vmem [#allocation1], 48
    %v87 = vld [vmem:[%s86] sm:%s73]
    %s88 = scalar_lea.vmem [#allocation0], 96
    %89 = vst [vmem:[%s88] sm:%s73] %v87
    %s90 = scalar_lea.vmem [#allocation1], 44
    %v91 = vld [vmem:[%s90] sm:%s73]
    %s92 = scalar_lea.vmem [#allocation0], 88
    %93 = vst [vmem:[%s92] sm:%s73] %v91
    %s94 = scalar_lea.vmem [#allocation1], 40
    %v95 = vld [vmem:[%s94] sm:%s73]
    %s96 = scalar_lea.vmem [#allocation0], 80
    %97 = vst [vmem:[%s96] sm:%s73] %v95
    %s98 = scalar_lea.vmem [#allocation1], 36
    %v99 = vld [vmem:[%s98] sm:%s73]
    %s100 = scalar_lea.vmem [#allocation0], 72
    %101 = vst [vmem:[%s100] sm:%s73] %v99
    %s102 = scalar_lea.vmem [#allocation1], 32
    %v103 = vld [vmem:[%s102] sm:%s73]
    %s104 = scalar_lea.vmem [#allocation0], 64
    %105 = vst [vmem:[%s104] sm:%s73] %v103
    %s106 = scalar_lea.vmem [#allocation1], 28
    %v107 = vld [vmem:[%s106] sm:%s73]
    %s108 = scalar_lea.vmem [#allocation0], 56
    %109 = vst [vmem:[%s108] sm:%s73] %v107
    %s110 = scalar_lea.vmem [#allocation1], 24
    %v111 = vld [vmem:[%s110] sm:%s73]
    %s112 = scalar_lea.vmem [#allocation0], 48
    %113 = vst [vmem:[%s112] sm:%s73] %v111
    %s114 = scalar_lea.vmem [#allocation1], 20
    %v115 = vld [vmem:[%s114] sm:%s73]
    %s116 = scalar_lea.vmem [#allocation0], 40
    %117 = vst [vmem:[%s116] sm:%s73] %v115
    %s118 = scalar_lea.vmem [#allocation1], 16
    %v119 = vld [vmem:[%s118] sm:%s73]
    %s120 = scalar_lea.vmem [#allocation0], 32
    %121 = vst [vmem:[%s120] sm:%s73] %v119
    %s122 = scalar_lea.vmem [#allocation1], 12
    %v123 = vld [vmem:[%s122] sm:%s73]
    %s124 = scalar_lea.vmem [#allocation0], 24
    %125 = vst [vmem:[%s124] sm:%s73] %v123
    %s126 = scalar_lea.vmem [#allocation1], 8
    %v127 = vld [vmem:[%s126] sm:%s73]
    %s128 = scalar_lea.vmem [#allocation0], 16
    %129 = vst [vmem:[%s128] sm:%s73] %v127
    %s130 = scalar_lea.vmem [#allocation1], 4
    %v131 = vld [vmem:[%s130] sm:%s73]
    %s132 = scalar_lea.vmem [#allocation0], 8
    %133 = vst [vmem:[%s132] sm:%s73] %v131
    %v134 = vld [vmem:[#allocation1] sm:%s73]
    %135 = vst [vmem:[#allocation0] sm:%s73] %v134
    %s136 = scalar_lea.vmem [#allocation0], 7
    %v137 = vld [vmem:[%s136] ss:$-1 sm:$0xff]
    %v138 = vrot.slane %v137, 5
    %139 = vst [vmem:[#allocation2] sm:$0xff] %v138
    %s140 = scalar_lea.vmem [#allocation0], 8
    %s141 = scalar_lea.vmem %s140, 7 [#allocation0]
    %v142 = vld [vmem:[%s141] ss:$-1 sm:$0xff]
    %v143 = vrot.slane %v142, 5
    %v144 = vlaneseq
    %v145 = vshrl.u32 %v144, 7
    %vm146 = vcmp.lt.s32.totalorder %v145, 3
    %147 = vst.msk [vmem:[#allocation2] sm:$0xff] %vm146, %v143
    %s148 = scalar_lea.vmem [#allocation2], 8
    %s149 = scalar_lea.vmem [#allocation0], 16
    %s150 = scalar_lea.vmem %s149, 7 [#allocation0]
    %v151 = vld [vmem:[%s150] ss:$-1 sm:$0xff]
    %v152 = vrot.slane %v151, 5
    %153 = vst [vmem:[%s148] sm:$0xff] %v152
    %s154 = scalar_lea.vmem %s149, 8 [#allocation0]
    %s155 = scalar_lea.vmem %s154, 7 [#allocation0]
    %v156 = vld [vmem:[%s155] ss:$-1 sm:$0xff]
    %v157 = vrot.slane %v156, 5
    %v158 = vlaneseq
    %v159 = vshrl.u32 %v158, 7
    %vm160 = vcmp.lt.s32.totalorder %v159, 3
    %161 = vst.msk [vmem:[%s148] sm:$0xff] %vm160, %v157
    %s162 = scalar_lea.vmem [#allocation2], 16
    %s163 = scalar_lea.vmem [#allocation0], 32
    %s164 = scalar_lea.vmem %s163, 7 [#allocation0]
    %v165 = vld [vmem:[%s164] ss:$-1 sm:$0xff]
    %v166 = vrot.slane %v165, 5
    %167 = vst [vmem:[%s162] sm:$0xff] %v166
    %s168 = scalar_lea.vmem %s163, 8 [#allocation0]
    %s169 = scalar_lea.vmem %s168, 7 [#allocation0]
    %v170 = vld [vmem:[%s169] ss:$-1 sm:$0xff]
    %v171 = vrot.slane %v170, 5
    %v172 = vlaneseq
    %v173 = vshrl.u32 %v172, 7
    %vm174 = vcmp.lt.s32.totalorder %v173, 3
    %175 = vst.msk [vmem:[%s162] sm:$0xff] %vm174, %v171
    %s176 = scalar_lea.vmem [#allocation2], 24
    %s177 = scalar_lea.vmem [#allocation0], 48
    %s178 = scalar_lea.vmem %s177, 7 [#allocation0]
    %v179 = vld [vmem:[%s178] ss:$-1 sm:$0xff]
    %v180 = vrot.slane %v179, 5
    %181 = vst [vmem:[%s176] sm:$0xff] %v180
    %s182 = scalar_lea.vmem %s177, 8 [#allocation0]
    %s183 = scalar_lea.vmem %s182, 7 [#allocation0]
    %v184 = vld [vmem:[%s183] ss:$-1 sm:$0xff]
    %v185 = vrot.slane %v184, 5
    %v186 = vlaneseq
    %v187 = vshrl.u32 %v186, 7
    %vm188 = vcmp.lt.s32.totalorder %v187, 3
    %189 = vst.msk [vmem:[%s176] sm:$0xff] %vm188, %v185
    %s190 = scalar_lea.vmem [#allocation2], 32
    %s191 = scalar_lea.vmem [#allocation0], 64
    %s192 = scalar_lea.vmem %s191, 7 [#allocation0]
    %v193 = vld [vmem:[%s192] ss:$-1 sm:$0xff]
    %v194 = vrot.slane %v193, 5
    %195 = vst [vmem:[%s190] sm:$0xff] %v194
    %s196 = scalar_lea.vmem %s191, 8 [#allocation0]
    %s197 = scalar_lea.vmem %s196, 7 [#allocation0]
    %v198 = vld [vmem:[%s197] ss:$-1 sm:$0xff]
    %v199 = vrot.slane %v198, 5
    %v200 = vlaneseq
    %v201 = vshrl.u32 %v200, 7
    %vm202 = vcmp.lt.s32.totalorder %v201, 3
    %203 = vst.msk [vmem:[%s190] sm:$0xff] %vm202, %v199
    %s204 = scalar_lea.vmem [#allocation2], 40
    %s205 = scalar_lea.vmem [#allocation0], 80
    %s206 = scalar_lea.vmem %s205, 7 [#allocation0]
    %v207 = vld [vmem:[%s206] ss:$-1 sm:$0xff]
    %v208 = vrot.slane %v207, 5
    %209 = vst [vmem:[%s204] sm:$0xff] %v208
    %s210 = scalar_lea.vmem %s205, 8 [#allocation0]
    %s211 = scalar_lea.vmem %s210, 7 [#allocation0]
    %v212 = vld [vmem:[%s211] ss:$-1 sm:$0xff]
    %v213 = vrot.slane %v212, 5
    %v214 = vlaneseq
    %v215 = vshrl.u32 %v214, 7
    %vm216 = vcmp.lt.s32.totalorder %v215, 3
    %217 = vst.msk [vmem:[%s204] sm:$0xff] %vm216, %v213
    %s218 = scalar_lea.vmem [#allocation2], 48
    %s219 = scalar_lea.vmem [#allocation0], 96
    %s220 = scalar_lea.vmem %s219, 7 [#allocation0]
    %v221 = vld [vmem:[%s220] ss:$-1 sm:$0xff]
    %v222 = vrot.slane %v221, 5
    %223 = vst [vmem:[%s218] sm:$0xff] %v222
    %s224 = scalar_lea.vmem %s219, 8 [#allocation0]
    %s225 = scalar_lea.vmem %s224, 7 [#allocation0]
    %v226 = vld [vmem:[%s225] ss:$-1 sm:$0xff]
    %v227 = vrot.slane %v226, 5
    %v228 = vlaneseq
    %v229 = vshrl.u32 %v228, 7
    %vm230 = vcmp.lt.s32.totalorder %v229, 3
    %231 = vst.msk [vmem:[%s218] sm:$0xff] %vm230, %v227
    %s232 = scalar_lea.vmem [#allocation2], 56
    %s233 = scalar_lea.vmem [#allocation0], 112
    %s234 = scalar_lea.vmem %s233, 7 [#allocation0]
    %v235 = vld [vmem:[%s234] ss:$-1 sm:$0xff]
    %v236 = vrot.slane %v235, 5
    %237 = vst [vmem:[%s232] sm:$0xff] %v236
    %s238 = scalar_lea.vmem %s233, 8 [#allocation0]
    %s239 = scalar_lea.vmem %s238, 7 [#allocation0]
    %v240 = vld [vmem:[%s239] ss:$-1 sm:$0xff]
    %v241 = vrot.slane %v240, 5
    %v242 = vlaneseq
    %v243 = vshrl.u32 %v242, 7
    %vm244 = vcmp.lt.s32.totalorder %v243, 3
    %245 = vst.msk [vmem:[%s232] sm:$0xff] %vm244, %v241
    %s247 = ssub.s32 16, 1
    %v248 = vld [vmem:[#allocation2] sm:%s247]
    %s250 = ssub.s32 16, 1
    %251 = vst [vmem:[#allocation3] sm:%s250] %v248
    %s252 = scalar_lea.vmem [#allocation2], 8
    %v253 = vld [vmem:[%s252] sm:%s247]
    %s255 = ssub.s32 16, 1
    %s256 = scalar_lea.vmem [#allocation3], 4
    %257 = vst [vmem:[%s256] sm:%s255] %v253
    %s258 = scalar_lea.vmem [#allocation2], 16
    %v259 = vld [vmem:[%s258] sm:%s247]
    %s261 = ssub.s32 16, 1
    %s262 = scalar_lea.vmem [#allocation3], 8
    %263 = vst [vmem:[%s262] sm:%s261] %v259
    %s264 = scalar_lea.vmem [#allocation2], 24
    %v265 = vld [vmem:[%s264] sm:%s247]
    %s267 = ssub.s32 16, 1
    %s268 = scalar_lea.vmem [#allocation3], 12
    %269 = vst [vmem:[%s268] sm:%s267] %v265
    %s270 = scalar_lea.vmem [#allocation2], 32
    %v271 = vld [vmem:[%s270] sm:%s247]
    %s273 = ssub.s32 16, 1
    %s274 = scalar_lea.vmem [#allocation3], 16
    %275 = vst [vmem:[%s274] sm:%s273] %v271
    %s276 = scalar_lea.vmem [#allocation2], 40
    %v277 = vld [vmem:[%s276] sm:%s247]
    %s279 = ssub.s32 16, 1
    %s280 = scalar_lea.vmem [#allocation3], 20
    %281 = vst [vmem:[%s280] sm:%s279] %v277
    %s282 = scalar_lea.vmem [#allocation2], 48
    %v283 = vld [vmem:[%s282] sm:%s247]
    %s285 = ssub.s32 16, 1
    %s286 = scalar_lea.vmem [#allocation3], 24
    %287 = vst [vmem:[%s286] sm:%s285] %v283
    %s288 = scalar_lea.vmem [#allocation2], 56
    %v289 = vld [vmem:[%s288] sm:%s247]
    %s291 = ssub.s32 16, 1
    %s292 = scalar_lea.vmem [#allocation3], 28
    %293 = vst [vmem:[%s292] sm:%s291] %v289
    // Predicated region
    $region39: #{reverse.1} parent=1 // pred_check
      _
    $region40: #{reverse.1} parent=1 // pred_check_branch
      %295 = sbr.rel (0) target = $region42
    $region41: #{reverse.1} parent=1 // pred_region
      // Predicated region
      $region43: #{reverse.1} parent=41 // pred_check
        _
      $region44: #{reverse.1} parent=41 // pred_check_branch
        %297 = sbr.rel target = $region46
      $region45: #{reverse.1} parent=41 // pred_region
        // Predicated region
        $region58: #{reverse.1} parent=45 // pred_check
          _
        $region59: #{reverse.1} parent=45 // pred_check_branch
          %327 = sbr.rel (0) target = $region61
        $region60: #{reverse.1} parent=45 // pred_region
          loop: start=0, step=1, limit=1
          $region62: #{reverse.1} parent=60 // loop_pre_header
            _
          $region63: #{reverse.1} parent=60 // loop_header
            %s329 = sphi 0, %s333
            %p330 = scmp.ge.s32.totalorder %s329, 1
            %s334 = sphi [#allocation3], [#allocation3]
            %s335 = sphi %s1, %s1
          $region64: #{reverse.1} parent=60 // loop_header_branch
            %332 = sbr.rel (%p330) target = $region68
          $region65: #{reverse.1} parent=60 // loop_body
            _
          $region66: #{reverse.1} parent=60 // loop_footer
            %s333 = sadd.s32 1, %s329
          $region67: #{reverse.1} parent=60 // loop_footer_branch
            %328 = sbr.rel target = $region63
          $region68: #{reverse.1} parent=60 // loop_exit
            _
          %s337 = ssub.s32 16, 1
          loop: start=0, step=1, limit=1
          $region69: #{reverse.1} parent=60 // loop_pre_header
            _
          $region70: #{reverse.1} parent=60 // loop_header
            %s339 = sphi 0, %s343
            %p340 = scmp.ge.s32.totalorder %s339, 1
            %s344 = sphi [#allocation3], [#allocation3]
            %s345 = sphi %s1, %s1
          $region71: #{reverse.1} parent=60 // loop_header_branch
            %342 = sbr.rel (%p340) target = $region75
          $region72: #{reverse.1} parent=60 // loop_body
            %v346 = vld [vmem:[%s344] sm:%s337]
            %347 = vst [vmem:[%s345] sm:%s337] %v346
            %v348 = vld [vmem:[%s344 + $0x4] sm:%s337]
            %349 = vst [vmem:[%s345 + $0x4] sm:%s337] %v348
            %v350 = vld [vmem:[%s344 + $0x8] sm:%s337]
            %351 = vst [vmem:[%s345 + $0x8] sm:%s337] %v350
            %v352 = vld [vmem:[%s344 + $0xc] sm:%s337]
            %353 = vst [vmem:[%s345 + $0xc] sm:%s337] %v352
            %v354 = vld [vmem:[%s344 + $0x10] sm:%s337]
            %355 = vst [vmem:[%s345 + $0x10] sm:%s337] %v354
            %v356 = vld [vmem:[%s344 + $0x14] sm:%s337]
            %357 = vst [vmem:[%s345 + $0x14] sm:%s337] %v356
            %v358 = vld [vmem:[%s344 + $0x18] sm:%s337]
            %359 = vst [vmem:[%s345 + $0x18] sm:%s337] %v358
            %v360 = vld [vmem:[%s344 + $0x1c] sm:%s337]
            %361 = vst [vmem:[%s345 + $0x1c] sm:%s337] %v360
          $region73: #{reverse.1} parent=60 // loop_footer
            %s343 = sadd.s32 1, %s339
          $region74: #{reverse.1} parent=60 // loop_footer_branch
            %338 = sbr.rel target = $region70
          $region75: #{reverse.1} parent=60 // loop_exit
            _
        $region61: #{reverse.1} parent=45 // pred_fallthru
          _
      $region46: #{reverse.1} parent=41 // pred_fallthru
        _
      // Predicated region
      $region47: #{reverse.1} parent=41 // pred_check
        _
      $region48: #{reverse.1} parent=41 // pred_check_branch
        %299 = sbr.rel (0) target = $region50
      $region49: #{reverse.1} parent=41 // pred_region
        %s301 = ssub.s32 16, 1
        loop: start=0, step=1, limit=1
        $region51: #{reverse.1} parent=49 // loop_pre_header
          _
        $region52: #{reverse.1} parent=49 // loop_header
          %s303 = sphi 0, %s307
          %p304 = scmp.ge.s32.totalorder %s303, 1
          %s308 = sphi [#allocation3], [#allocation3]
          %s309 = sphi %s1, %s1
        $region53: #{reverse.1} parent=49 // loop_header_branch
          %306 = sbr.rel (%p304) target = $region57
        $region54: #{reverse.1} parent=49 // loop_body
          %v310 = vld [vmem:[%s308] sm:%s301]
          %311 = vst [vmem:[%s309] sm:%s301] %v310
          %v312 = vld [vmem:[%s308 + $0x4] sm:%s301]
          %313 = vst [vmem:[%s309 + $0x4] sm:%s301] %v312
          %v314 = vld [vmem:[%s308 + $0x8] sm:%s301]
          %315 = vst [vmem:[%s309 + $0x8] sm:%s301] %v314
          %v316 = vld [vmem:[%s308 + $0xc] sm:%s301]
          %317 = vst [vmem:[%s309 + $0xc] sm:%s301] %v316
          %v318 = vld [vmem:[%s308 + $0x10] sm:%s301]
          %319 = vst [vmem:[%s309 + $0x10] sm:%s301] %v318
          %v320 = vld [vmem:[%s308 + $0x14] sm:%s301]
          %321 = vst [vmem:[%s309 + $0x14] sm:%s301] %v320
          %v322 = vld [vmem:[%s308 + $0x18] sm:%s301]
          %323 = vst [vmem:[%s309 + $0x18] sm:%s301] %v322
          %v324 = vld [vmem:[%s308 + $0x1c] sm:%s301]
          %325 = vst [vmem:[%s309 + $0x1c] sm:%s301] %v324
        $region55: #{reverse.1} parent=49 // loop_footer
          %s307 = sadd.s32 1, %s303
        $region56: #{reverse.1} parent=49 // loop_footer_branch
          %302 = sbr.rel target = $region52
        $region57: #{reverse.1} parent=49 // loop_exit
          _
      $region50: #{reverse.1} parent=41 // pred_fallthru
        _
    $region42: #{reverse.1} parent=1 // pred_fallthru
      _
    %362 = vnop

// kernel: ffc_forward.4
$region0: #{ffc_forward.4}
  #allocation0 [shape = 'u32[]', space=smem, size = 0x4, offset = 0x4, fixed_abs, tag = 'smem constant byte address 0x4 - core index']
  #allocation1 [shape = 'u32[72,128]{1,0:T(1,128)}', space=vmem, size = 0x9000, scoped, tag = 'internal scratch']
  %s0 = inlined_call_operand.vmem [shape: f32[4,288], index: 0, kind: input, shape index: {}]
  %s1 = inlined_call_operand.vmem [shape: f32[4,288], index: 1, kind: input, shape index: {}]
  %s2 = inlined_call_operand.vmem [shape: f32[4,80], index: 2, kind: input, shape index: {}]
  %s3 = inlined_call_operand.vmem [shape: f32[4,80], index: 3, kind: input, shape index: {}]
  %s4 = inlined_call_operand.vmem [shape: f32[8,4], index: 4, kind: input, shape index: {}]
  %s5 = inlined_call_operand.vmem [shape: f32[8,4], index: 5, kind: input, shape index: {}]
  %s6 = inlined_call_operand.vmem [shape: f32[8,1], index: 6, kind: input, shape index: {}]
  %s7 = inlined_call_operand.vmem [shape: f32[8,1], index: 7, kind: input, shape index: {}]
  %s8 = inlined_call_operand.vmem [shape: f32[8,4], index: 8, kind: input, shape index: {}]
  %s9 = inlined_call_operand.vmem [shape: f32[8,4], index: 9, kind: input, shape index: {}]
  %s10 = inlined_call_operand.vmem [shape: f32[8,1], index: 10, kind: input, shape index: {}]
  %s11 = inlined_call_operand.vmem [shape: f32[8,1], index: 11, kind: input, shape index: {}]
  %s12 = inlined_call_operand.vmem [shape: f32[8,288], index: 12, kind: output, shape index: {0}]
  %s13 = inlined_call_operand.vmem [shape: f32[8,80], index: 13, kind: output, shape index: {1}]
  %14 = xla_tuple %s12, %s13
  %s15 = sld [smem:[#allocation0]]
  $region66: #{ffc_forward.4} parent=0
    _
  %s17 = ssub.s32 1, %s15
  %s18 = scalar_select 0, %s17, %s15
  // Predicated region
  $region2: #{ffc_forward.4} parent=0 // pred_check
    _
  $region3: #{ffc_forward.4} parent=0 // pred_check_branch
    %20 = sbr.rel (0) target = $region5
  $region4: #{ffc_forward.4} parent=0 // pred_region
    _
  $region5: #{ffc_forward.4} parent=0 // pred_fallthru
    _
  // Predicated region
  $region6: #{ffc_forward.4} parent=0 // pred_check
    _
  $region7: #{ffc_forward.4} parent=0 // pred_check_branch
    %22 = sbr.rel (0) target = $region9
  $region8: #{ffc_forward.4} parent=0 // pred_region
    _
  $region9: #{ffc_forward.4} parent=0 // pred_fallthru
    _
  // Predicated region
  $region10: #{ffc_forward.4} parent=0 // pred_check
    _
  $region11: #{ffc_forward.4} parent=0 // pred_check_branch
    %24 = sbr.rel (0) target = $region13
  $region12: #{ffc_forward.4} parent=0 // pred_region
    _
  $region13: #{ffc_forward.4} parent=0 // pred_fallthru
    _
  // Predicated region
  $region14: #{ffc_forward.4} parent=0 // pred_check
    _
  $region15: #{ffc_forward.4} parent=0 // pred_check_branch
    %26 = sbr.rel (0) target = $region17
  $region16: #{ffc_forward.4} parent=0 // pred_region
    _
  $region17: #{ffc_forward.4} parent=0 // pred_fallthru
    _
  // Predicated region
  $region18: #{ffc_forward.4} parent=0 // pred_check
    _
  $region19: #{ffc_forward.4} parent=0 // pred_check_branch
    %28 = sbr.rel (0) target = $region21
  $region20: #{ffc_forward.4} parent=0 // pred_region
    _
  $region21: #{ffc_forward.4} parent=0 // pred_fallthru
    _
  // Predicated region
  $region22: #{ffc_forward.4} parent=0 // pred_check
    _
  $region23: #{ffc_forward.4} parent=0 // pred_check_branch
    %30 = sbr.rel (0) target = $region25
  $region24: #{ffc_forward.4} parent=0 // pred_region
    _
  $region25: #{ffc_forward.4} parent=0 // pred_fallthru
    _
  // Predicated region
  $region26: #{ffc_forward.4} parent=0 // pred_check
    _
  $region27: #{ffc_forward.4} parent=0 // pred_check_branch
    %32 = sbr.rel (0) target = $region29
  $region28: #{ffc_forward.4} parent=0 // pred_region
    _
  $region29: #{ffc_forward.4} parent=0 // pred_fallthru
    _
  // Predicated region
  $region30: #{ffc_forward.4} parent=0 // pred_check
    _
  $region31: #{ffc_forward.4} parent=0 // pred_check_branch
    %34 = sbr.rel (0) target = $region33
  $region32: #{ffc_forward.4} parent=0 // pred_region
    _
  $region33: #{ffc_forward.4} parent=0 // pred_fallthru
    _
  // Predicated region
  $region34: #{ffc_forward.4} parent=0 // pred_check
    _
  $region35: #{ffc_forward.4} parent=0 // pred_check_branch
    %36 = sbr.rel (0) target = $region37
  $region36: #{ffc_forward.4} parent=0 // pred_region
    _
  $region37: #{ffc_forward.4} parent=0 // pred_fallthru
    _
  // Predicated region
  $region38: #{ffc_forward.4} parent=0 // pred_check
    _
  $region39: #{ffc_forward.4} parent=0 // pred_check_branch
    %38 = sbr.rel (0) target = $region41
  $region40: #{ffc_forward.4} parent=0 // pred_region
    _
  $region41: #{ffc_forward.4} parent=0 // pred_fallthru
    _
  // Predicated region
  $region42: #{ffc_forward.4} parent=0 // pred_check
    _
  $region43: #{ffc_forward.4} parent=0 // pred_check_branch
    %40 = sbr.rel (0) target = $region45
  $region44: #{ffc_forward.4} parent=0 // pred_region
    _
  $region45: #{ffc_forward.4} parent=0 // pred_fallthru
    _
  // Predicated region
  $region46: #{ffc_forward.4} parent=0 // pred_check
    _
  $region47: #{ffc_forward.4} parent=0 // pred_check_branch
    %42 = sbr.rel (0) target = $region49
  $region48: #{ffc_forward.4} parent=0 // pred_region
    _
  $region49: #{ffc_forward.4} parent=0 // pred_fallthru
    _
  %v43 = vld [vmem:[%s4] sm:$0xff]
  %v44 = vld [vmem:[%s0] sm:$0xff]
  %v45 = vld [vmem:[%s0 + $0x8] sm:$0xf]
  %v46 = vld [vmem:[%s5] sm:$0xff]
  %v47 = vld [vmem:[%s1] sm:$0xff]
  %v48 = vld [vmem:[%s1 + $0x8] sm:$0xf]
  %51 = vst [vmem:[#allocation1] ss:$2 sm:$0xff] %v47
  %s52 = scalar_lea.vmem [#allocation1], 16
  %53 = vst [vmem:[%s52] ss:$2 sm:$0xff] %v48
  %v54 = vld.sshfl [vmem:[#allocation1] sm:$0xff pattern:$0x75316420]
  %v55 = vld.sshfl [vmem:[#allocation1 + $0x8] sm:$0xff pattern:$0x75316420]
  %v56 = vld.sshfl [vmem:[#allocation1 + $0x10] sm:$0xff pattern:$0x75316420]
  %vm57 = vcmask 31744
  %v59 = vsel %vm57, %v46, 0
  %vm61 = vcmask 1043456
  %v62 = vsel %vm61, %v54, 0
  %v64 = vsel %vm61, %v55, 0
  %v66 = vsel %vm61, %v56, 0
  %68 = vmatpush.msra.mxu0 0.0
  %69 = vmatpush.msra.mxu0 0.0
  %70 = vmatpush.msra.mxu0 0.0
  %71 = vmatpush.msra.mxu0 0.0
  %72 = vmatpush.msra.mxu0 0.0
  %73 = vmatpush.msra.mxu0 0.0
  %74 = vmatpush.msra.mxu0 0.0
  %75 = vmatpush.msra.mxu0 0.0
  %76 = vmatpush.msra.mxu0 0.0
  %77 = vmatpush.msra.mxu0 0.0
  %78 = vmatpush.msra.mxu0 0.0
  %79 = vmatpush.msra.mxu0 0.0
  %80 = vmatpush.msra.mxu0 0.0
  %81 = vmatpush.msra.mxu0 0.0
  %82 = vmatpush.msra.mxu0 0.0
  %83 = vmatpush.msra.mxu0 %v62
  %84 = vmatmul.f32.gmra.mxu0 %v59
  %v85 = vpop.f32.mrf.mxu0
  %v86 = vadd.f32 0.0, %v85
  %87 = vdwg.mxu0
  %88 = vmatpush.msra.mxu0 0.0
  %89 = vmatpush.msra.mxu0 0.0
  %90 = vmatpush.msra.mxu0 0.0
  %91 = vmatpush.msra.mxu0 0.0
  %92 = vmatpush.msra.mxu0 0.0
  %93 = vmatpush.msra.mxu0 0.0
  %94 = vmatpush.msra.mxu0 0.0
  %95 = vmatpush.msra.mxu0 0.0
  %96 = vmatpush.msra.mxu0 0.0
  %97 = vmatpush.msra.mxu0 0.0
  %98 = vmatpush.msra.mxu0 0.0
  %99 = vmatpush.msra.mxu0 0.0
  %100 = vmatpush.msra.mxu0 0.0
  %101 = vmatpush.msra.mxu0 0.0
  %102 = vmatpush.msra.mxu0 0.0
  %103 = vmatpush.msra.mxu0 %v64
  %104 = vmatmul.f32.gmra.mxu0 %v59
  %v105 = vpop.f32.mrf.mxu0
  %v106 = vadd.f32 0.0, %v105
  %107 = vdwg.mxu0
  %108 = vmatpush.msra.mxu0 0.0
  %109 = vmatpush.msra.mxu0 0.0
  %110 = vmatpush.msra.mxu0 0.0
  %111 = vmatpush.msra.mxu0 0.0
  %112 = vmatpush.msra.mxu0 0.0
  %113 = vmatpush.msra.mxu0 0.0
  %114 = vmatpush.msra.mxu0 0.0
  %115 = vmatpush.msra.mxu0 0.0
  %116 = vmatpush.msra.mxu0 0.0
  %117 = vmatpush.msra.mxu0 0.0
  %118 = vmatpush.msra.mxu0 0.0
  %119 = vmatpush.msra.mxu0 0.0
  %120 = vmatpush.msra.mxu0 0.0
  %121 = vmatpush.msra.mxu0 0.0
  %122 = vmatpush.msra.mxu0 0.0
  %123 = vmatpush.msra.mxu0 %v66
  %124 = vmatmul.f32.gmra.mxu0 %v59
  %v125 = vpop.f32.mrf.mxu0
  %v126 = vadd.f32 0.0, %v125
  %127 = vdwg.mxu0
  %130 = vst [vmem:[#allocation1] ss:$2 sm:$0xff] %v44
  %s131 = scalar_lea.vmem [#allocation1], 16
  %132 = vst [vmem:[%s131] ss:$2 sm:$0xff] %v45
  %v133 = vld.sshfl [vmem:[#allocation1] sm:$0xff pattern:$0x75316420]
  %v134 = vld.sshfl [vmem:[#allocation1 + $0x8] sm:$0xff pattern:$0x75316420]
  %v135 = vld.sshfl [vmem:[#allocation1 + $0x10] sm:$0xff pattern:$0x75316420]
  %v137 = vsel %vm57, %v43, 0
  %v139 = vsel %vm61, %v133, 0
  %v141 = vsel %vm61, %v134, 0
  %v143 = vsel %vm61, %v135, 0
  %145 = vmatpush.msra.mxu0 0.0
  %146 = vmatpush.msra.mxu0 0.0
  %147 = vmatpush.msra.mxu0 0.0
  %148 = vmatpush.msra.mxu0 0.0
  %149 = vmatpush.msra.mxu0 0.0
  %150 = vmatpush.msra.mxu0 0.0
  %151 = vmatpush.msra.mxu0 0.0
  %152 = vmatpush.msra.mxu0 0.0
  %153 = vmatpush.msra.mxu0 0.0
  %154 = vmatpush.msra.mxu0 0.0
  %155 = vmatpush.msra.mxu0 0.0
  %156 = vmatpush.msra.mxu0 0.0
  %157 = vmatpush.msra.mxu0 0.0
  %158 = vmatpush.msra.mxu0 0.0
  %159 = vmatpush.msra.mxu0 0.0
  %160 = vmatpush.msra.mxu0 %v139
  %161 = vmatmul.f32.gmra.mxu0 %v137
  %v162 = vpop.f32.mrf.mxu0
  %v163 = vadd.f32 %v86, %v162
  %164 = vdwg.mxu0
  %165 = vmatpush.msra.mxu0 0.0
  %166 = vmatpush.msra.mxu0 0.0
  %167 = vmatpush.msra.mxu0 0.0
  %168 = vmatpush.msra.mxu0 0.0
  %169 = vmatpush.msra.mxu0 0.0
  %170 = vmatpush.msra.mxu0 0.0
  %171 = vmatpush.msra.mxu0 0.0
  %172 = vmatpush.msra.mxu0 0.0
  %173 = vmatpush.msra.mxu0 0.0
  %174 = vmatpush.msra.mxu0 0.0
  %175 = vmatpush.msra.mxu0 0.0
  %176 = vmatpush.msra.mxu0 0.0
  %177 = vmatpush.msra.mxu0 0.0
  %178 = vmatpush.msra.mxu0 0.0
  %179 = vmatpush.msra.mxu0 0.0
  %180 = vmatpush.msra.mxu0 %v141
  %181 = vmatmul.f32.gmra.mxu0 %v137
  %v182 = vpop.f32.mrf.mxu0
  %v183 = vadd.f32 %v106, %v182
  %184 = vdwg.mxu0
  %185 = vmatpush.msra.mxu0 0.0
  %186 = vmatpush.msra.mxu0 0.0
  %187 = vmatpush.msra.mxu0 0.0
  %188 = vmatpush.msra.mxu0 0.0
  %189 = vmatpush.msra.mxu0 0.0
  %190 = vmatpush.msra.mxu0 0.0
  %191 = vmatpush.msra.mxu0 0.0
  %192 = vmatpush.msra.mxu0 0.0
  %193 = vmatpush.msra.mxu0 0.0
  %194 = vmatpush.msra.mxu0 0.0
  %195 = vmatpush.msra.mxu0 0.0
  %196 = vmatpush.msra.mxu0 0.0
  %197 = vmatpush.msra.mxu0 0.0
  %198 = vmatpush.msra.mxu0 0.0
  %199 = vmatpush.msra.mxu0 0.0
  %200 = vmatpush.msra.mxu0 %v143
  %201 = vmatmul.f32.gmra.mxu0 %v137
  %v202 = vpop.f32.mrf.mxu0
  %v203 = vadd.f32 %v126, %v202
  %204 = vdwg.mxu0
  %v205 = vld [vmem:[%s6] sm:$0xff]
  %v206 = vld [vmem:[%s7] sm:$0xff]
  %v207 = vadd.f32 %v163, %v183
  %vm208 = vcmask 261120
  %v209 = vsel %vm208, %v203, 0.0
  %v210 = vadd.f32 %v207, %v209
  %211 = vadd.xlane.f32.xlu0 %v210
  %v212 = vpop.xlane.xlu0 %211
  %v213 = vmul.f32 %v163, %v163
  %v214 = vmul.f32 %v183, %v183
  %v215 = vmul.f32 %v203, %v203
  %v216 = vadd.f32 %v213, %v214
  %v217 = vsel %vm208, %v215, 0.0
  %v218 = vadd.f32 %v216, %v217
  %219 = vadd.xlane.f32.xlu0 %v218
  %v220 = vpop.xlane.xlu0 %219
  %v221 = vmul.f32 %v212, 0.0034722222
  %v222 = vmul.f32 %v220, 0.0034722222
  %v223 = vmul.f32 %v221, %v221
  %v224 = vsub.f32 %v222, %v223
  %v225 = vmax.f32 %v224, 0.0
  %v226 = vsub.f32 %v163, %v221
  %v227 = vsub.f32 %v183, %v221
  %v228 = vsub.f32 %v203, %v221
  %v229 = vadd.f32 %v225, 1e-05
  %v230 = vrsqrt.pop %v229
  %v231 = vmul.f32 %v230, %v229
  %v232 = vmul.f32 %v231, %v230
  %v233 = vmul.f32 0.5, %v232
  %v234 = vsub.f32 1.5, %v233
  %v235 = vmul.f32 %v230, %v234
  %vm236 = vweird.f32 %v229
  %vm237 = vweird.f32 %v230
  %vm238 = vmor %vm236, %vm237
  %v239 = vsel %vm238, %v230, %v235
  %v240 = vmul.f32 %v226, %v239
  %v241 = vmul.f32 %v227, %v239
  %v242 = vmul.f32 %v228, %v239
  %244 = vset.pattern.permute.xlu0 0
  %245 = vperm.xlu0 %244, %v205
  %v246 = vpop.permute.xlu0 %245
  %v248 = vmul.f32 %v240, %v246
  %v249 = vmul.f32 %v241, %v246
  %v250 = vmul.f32 %v242, %v246
  %252 = vset.pattern.permute.xlu0 0
  %253 = vperm.xlu0 %252, %v206
  %v254 = vpop.permute.xlu0 %253
  %v256 = vadd.f32 %v248, %v254
  %v257 = vadd.f32 %v249, %v254
  %v258 = vadd.f32 %v250, %v254
  %v259 = vmax.f32 %v256, 0.0
  %v260 = vmax.f32 %v257, 0.0
  %v261 = vmax.f32 %v258, 0.0
  %262 = vst [vmem:[%s12] sm:$0xff] %v259
  %263 = vst [vmem:[%s12 + $0x8] sm:$0xff] %v260
  %264 = vst.msk [vmem:[%s12 + $0x10] sm:$0xff] %vm208, %v261
  %v265 = vld [vmem:[%s8] sm:$0xff]
  %v266 = vld [vmem:[%s2] sm:$0xf]
  %v267 = vld [vmem:[%s9] sm:$0xff]
  %v268 = vld [vmem:[%s3] sm:$0xf]
  %v270 = vsel %vm57, %v267, 0
  %v273 = vsel %vm61, %v268, 0
  %275 = vmatpush.msra.mxu0 0.0
  %276 = vmatpush.msra.mxu0 0.0
  %277 = vmatpush.msra.mxu0 0.0
  %278 = vmatpush.msra.mxu0 0.0
  %279 = vmatpush.msra.mxu0 0.0
  %280 = vmatpush.msra.mxu0 0.0
  %281 = vmatpush.msra.mxu0 0.0
  %282 = vmatpush.msra.mxu0 0.0
  %283 = vmatpush.msra.mxu0 0.0
  %284 = vmatpush.msra.mxu0 0.0
  %285 = vmatpush.msra.mxu0 0.0
  %286 = vmatpush.msra.mxu0 0.0
  %287 = vmatpush.msra.mxu0 0.0
  %288 = vmatpush.msra.mxu0 0.0
  %289 = vmatpush.msra.mxu0 0.0
  %290 = vmatpush.msra.mxu0 %v273
  %291 = vmatmul.f32.gmra.mxu0 %v270
  %v292 = vpop.f32.mrf.mxu0
  %v293 = vadd.f32 0.0, %v292
  %294 = vdwg.mxu0
  %v296 = vsel %vm57, %v265, 0
  %v299 = vsel %vm61, %v266, 0
  %301 = vmatpush.msra.mxu0 0.0
  %302 = vmatpush.msra.mxu0 0.0
  %303 = vmatpush.msra.mxu0 0.0
  %304 = vmatpush.msra.mxu0 0.0
  %305 = vmatpush.msra.mxu0 0.0
  %306 = vmatpush.msra.mxu0 0.0
  %307 = vmatpush.msra.mxu0 0.0
  %308 = vmatpush.msra.mxu0 0.0
  %309 = vmatpush.msra.mxu0 0.0
  %310 = vmatpush.msra.mxu0 0.0
  %311 = vmatpush.msra.mxu0 0.0
  %312 = vmatpush.msra.mxu0 0.0
  %313 = vmatpush.msra.mxu0 0.0
  %314 = vmatpush.msra.mxu0 0.0
  %315 = vmatpush.msra.mxu0 0.0
  %316 = vmatpush.msra.mxu0 %v299
  %317 = vmatmul.f32.gmra.mxu0 %v296
  %v318 = vpop.f32.mrf.mxu0
  %v319 = vadd.f32 %v293, %v318
  %320 = vdwg.mxu0
  %v321 = vld [vmem:[%s10] sm:$0xff]
  %v322 = vld [vmem:[%s11] sm:$0xff]
  %vm323 = vcmask 654336
  %v324 = vsel %vm323, %v319, 0.0
  %325 = vadd.xlane.f32.xlu0 %v324
  %v326 = vpop.xlane.xlu0 %325
  %v327 = vmul.f32 %v319, %v319
  %v328 = vsel %vm323, %v327, 0.0
  %329 = vadd.xlane.f32.xlu0 %v328
  %v330 = vpop.xlane.xlu0 %329
  %v331 = vmul.f32 %v326, 0.0125
  %v332 = vmul.f32 %v330, 0.0125
  %v333 = vmul.f32 %v331, %v331
  %v334 = vsub.f32 %v332, %v333
  %v335 = vmax.f32 %v334, 0.0
  %v336 = vsub.f32 %v319, %v331
  %v337 = vadd.f32 %v335, 1e-05
  %v338 = vrsqrt.pop %v337
  %v339 = vmul.f32 %v338, %v337
  %v340 = vmul.f32 %v339, %v338
  %v341 = vmul.f32 0.5, %v340
  %v342 = vsub.f32 1.5, %v341
  %v343 = vmul.f32 %v338, %v342
  %vm344 = vweird.f32 %v337
  %vm345 = vweird.f32 %v338
  %vm346 = vmor %vm344, %vm345
  %v347 = vsel %vm346, %v338, %v343
  %v348 = vmul.f32 %v336, %v347
  %350 = vset.pattern.permute.xlu0 0
  %351 = vperm.xlu0 %350, %v321
  %v352 = vpop.permute.xlu0 %351
  %v354 = vmul.f32 %v348, %v352
  %356 = vset.pattern.permute.xlu0 0
  %357 = vperm.xlu0 %356, %v322
  %v358 = vpop.permute.xlu0 %357
  %v360 = vadd.f32 %v354, %v358
  %v361 = vmax.f32 %v360, 0.0
  %362 = vst.msk [vmem:[%s13] sm:$0xff] %vm323, %v361
  // Predicated region
  $region50: #{ffc_forward.4} parent=0 // pred_check
    _
  $region51: #{ffc_forward.4} parent=0 // pred_check_branch
    %364 = sbr.rel (0) target = $region53
  $region52: #{ffc_forward.4} parent=0 // pred_region
    _
  $region53: #{ffc_forward.4} parent=0 // pred_fallthru
    _
  // Predicated region
  $region54: #{ffc_forward.4} parent=0 // pred_check
    _
  $region55: #{ffc_forward.4} parent=0 // pred_check_branch
    %366 = sbr.rel (0) target = $region57
  $region56: #{ffc_forward.4} parent=0 // pred_region
    _
  $region57: #{ffc_forward.4} parent=0 // pred_fallthru
    _
  // Predicated region
  $region58: #{ffc_forward.4} parent=0 // pred_check
    _
  $region59: #{ffc_forward.4} parent=0 // pred_check_branch
    %368 = sbr.rel (0) target = $region61
  $region60: #{ffc_forward.4} parent=0 // pred_region
    _
  $region61: #{ffc_forward.4} parent=0 // pred_fallthru
    _
  // Predicated region
  $region62: #{ffc_forward.4} parent=0 // pred_check
    _
  $region63: #{ffc_forward.4} parent=0 // pred_check_branch
    %370 = sbr.rel (0) target = $region65
  $region64: #{ffc_forward.4} parent=0 // pred_region
    _
  $region65: #{ffc_forward.4} parent=0 // pred_fallthru
    _

// kernel: reverse.0
$region0: #{reverse.0}
  %s0 = inlined_call_operand.vmem [shape: f32[4,2,16,7], index: 0, kind: input, shape index: {}]
  %s1 = inlined_call_operand.vmem [shape: f32[4,2,16,7], index: 1, kind: output, shape index: {}]
  $region1: #{reverse.0} parent=0
    #allocation0 [shape = 'u8[65536]{0}', space=vmem, size = 0x10000, scoped, tag = 'operand span for operand 0']
    #allocation1 [shape = 'u8[32768]{0}', space=vmem, size = 0x8000, scoped, tag = 'operand span for operand 1']
    %s2 = scalar_lea.vmem [#allocation0], 8
    // Predicated region
    $region2: #{reverse.0} parent=1 // pred_check
      _
    $region3: #{reverse.0} parent=1 // pred_check_branch
      %4 = sbr.rel (0) target = $region5
    $region4: #{reverse.0} parent=1 // pred_region
      // Predicated region
      $region6: #{reverse.0} parent=4 // pred_check
        _
      $region7: #{reverse.0} parent=4 // pred_check_branch
        %6 = sbr.rel (0) target = $region9
      $region8: #{reverse.0} parent=4 // pred_region
        // Predicated region
        $region21: #{reverse.0} parent=8 // pred_check
          _
        $region22: #{reverse.0} parent=8 // pred_check_branch
          %36 = sbr.rel (0) target = $region24
        $region23: #{reverse.0} parent=8 // pred_region
          loop: start=0, step=1, limit=1
          $region25: #{reverse.0} parent=23 // loop_pre_header
            _
          $region26: #{reverse.0} parent=23 // loop_header
            %s38 = sphi 0, %s42
            %p39 = scmp.ge.s32.totalorder %s38, 1
            %s43 = sphi %s0, %s0
            %s44 = sphi %s2, %s2
          $region27: #{reverse.0} parent=23 // loop_header_branch
            %41 = sbr.rel (%p39) target = $region31
          $region28: #{reverse.0} parent=23 // loop_body
            %v45 = vld [vmem:[%s43] sm:$0xff]
            %46 = vst [vmem:[%s44] sm:$0xff] %v45
            %v47 = vld [vmem:[%s43 + $0x8] sm:$0xff]
            %48 = vst [vmem:[%s44 + $0x10] sm:$0xff] %v47
            %v49 = vld [vmem:[%s43 + $0x10] sm:$0xff]
            %50 = vst [vmem:[%s44 + $0x20] sm:$0xff] %v49
            %v51 = vld [vmem:[%s43 + $0x18] sm:$0xff]
            %52 = vst [vmem:[%s44 + $0x30] sm:$0xff] %v51
            %v53 = vld [vmem:[%s43 + $0x20] sm:$0xff]
            %54 = vst [vmem:[%s44 + $0x40] sm:$0xff] %v53
            %v55 = vld [vmem:[%s43 + $0x28] sm:$0xff]
            %56 = vst [vmem:[%s44 + $0x50] sm:$0xff] %v55
            %v57 = vld [vmem:[%s43 + $0x30] sm:$0xff]
            %58 = vst [vmem:[%s44 + $0x60] sm:$0xff] %v57
            %v59 = vld [vmem:[%s43 + $0x38] sm:$0xff]
            %60 = vst [vmem:[%s44 + $0x70] sm:$0xff] %v59
          $region29: #{reverse.0} parent=23 // loop_footer
            %s42 = sadd.s32 1, %s38
          $region30: #{reverse.0} parent=23 // loop_footer_branch
            %37 = sbr.rel target = $region26
          $region31: #{reverse.0} parent=23 // loop_exit
            _
        $region24: #{reverse.0} parent=8 // pred_fallthru
          _
        // Predicated region
        $region32: #{reverse.0} parent=8 // pred_check
          _
        $region33: #{reverse.0} parent=8 // pred_check_branch
          %62 = sbr.rel target = $region35
        $region34: #{reverse.0} parent=8 // pred_region
          _
        $region35: #{reverse.0} parent=8 // pred_fallthru
          _
      $region9: #{reverse.0} parent=4 // pred_fallthru
        _
      // Predicated region
      $region10: #{reverse.0} parent=4 // pred_check
        _
      $region11: #{reverse.0} parent=4 // pred_check_branch
        %8 = sbr.rel target = $region13
      $region12: #{reverse.0} parent=4 // pred_region
        %s10 = ssub.s32 256, 1
        loop: start=0, step=1, limit=1
        $region14: #{reverse.0} parent=12 // loop_pre_header
          _
        $region15: #{reverse.0} parent=12 // loop_header
          %s12 = sphi 0, %s16
          %p13 = scmp.ge.s32.totalorder %s12, 1
          %s17 = sphi %s0, %s0
          %s18 = sphi %s2, %s2
        $region16: #{reverse.0} parent=12 // loop_header_branch
          %15 = sbr.rel (%p13) target = $region20
        $region17: #{reverse.0} parent=12 // loop_body
          %v19 = vld [vmem:[%s17] sm:%s10]
          %20 = vst [vmem:[%s18] sm:%s10] %v19
          %v21 = vld [vmem:[%s17 + $0x8] sm:%s10]
          %22 = vst [vmem:[%s18 + $0x10] sm:%s10] %v21
          %v23 = vld [vmem:[%s17 + $0x10] sm:%s10]
          %24 = vst [vmem:[%s18 + $0x20] sm:%s10] %v23
          %v25 = vld [vmem:[%s17 + $0x18] sm:%s10]
          %26 = vst [vmem:[%s18 + $0x30] sm:%s10] %v25
          %v27 = vld [vmem:[%s17 + $0x20] sm:%s10]
          %28 = vst [vmem:[%s18 + $0x40] sm:%s10] %v27
          %v29 = vld [vmem:[%s17 + $0x28] sm:%s10]
          %30 = vst [vmem:[%s18 + $0x50] sm:%s10] %v29
          %v31 = vld [vmem:[%s17 + $0x30] sm:%s10]
          %32 = vst [vmem:[%s18 + $0x60] sm:%s10] %v31
          %v33 = vld [vmem:[%s17 + $0x38] sm:%s10]
          %34 = vst [vmem:[%s18 + $0x70] sm:%s10] %v33
        $region18: #{reverse.0} parent=12 // loop_footer
          %s16 = sadd.s32 1, %s12
        $region19: #{reverse.0} parent=12 // loop_footer_branch
          %11 = sbr.rel target = $region15
        $region20: #{reverse.0} parent=12 // loop_exit
          _
      $region13: #{reverse.0} parent=4 // pred_fallthru
        _
    $region5: #{reverse.0} parent=1 // pred_fallthru
      _
    %63 = vnop
    %s64 = scalar_lea.vmem [#allocation0], 7
    %v65 = vld [vmem:[%s64] ss:$-1 sm:$0xff]
    %v66 = vrot.slane %v65, 1
    %67 = vst [vmem:[#allocation1] sm:$0xff] %v66
    %s68 = scalar_lea.vmem [#allocation0], 8
    %s69 = scalar_lea.vmem %s68, 7 [#allocation0]
    %v70 = vld [vmem:[%s69] ss:$-1 sm:$0xff]
    %v71 = vrot.slane %v70, 1
    %v72 = vlaneseq
    %v73 = vshrl.u32 %v72, 7
    %vm74 = vcmp.lt.s32.totalorder %v73, 7
    %75 = vst.msk [vmem:[#allocation1] sm:$0xff] %vm74, %v71
    %s76 = scalar_lea.vmem [#allocation1], 8
    %s77 = scalar_lea.vmem [#allocation0], 16
    %s78 = scalar_lea.vmem %s77, 7 [#allocation0]
    %v79 = vld [vmem:[%s78] ss:$-1 sm:$0xff]
    %v80 = vrot.slane %v79, 1
    %81 = vst [vmem:[%s76] sm:$0xff] %v80
    %s82 = scalar_lea.vmem %s77, 8 [#allocation0]
    %s83 = scalar_lea.vmem %s82, 7 [#allocation0]
    %v84 = vld [vmem:[%s83] ss:$-1 sm:$0xff]
    %v85 = vrot.slane %v84, 1
    %v86 = vlaneseq
    %v87 = vshrl.u32 %v86, 7
    %vm88 = vcmp.lt.s32.totalorder %v87, 7
    %89 = vst.msk [vmem:[%s76] sm:$0xff] %vm88, %v85
    %s90 = scalar_lea.vmem [#allocation1], 16
    %s91 = scalar_lea.vmem [#allocation0], 32
    %s92 = scalar_lea.vmem %s91, 7 [#allocation0]
    %v93 = vld [vmem:[%s92] ss:$-1 sm:$0xff]
    %v94 = vrot.slane %v93, 1
    %95 = vst [vmem:[%s90] sm:$0xff] %v94
    %s96 = scalar_lea.vmem %s91, 8 [#allocation0]
    %s97 = scalar_lea.vmem %s96, 7 [#allocation0]
    %v98 = vld [vmem:[%s97] ss:$-1 sm:$0xff]
    %v99 = vrot.slane %v98, 1
    %v100 = vlaneseq
    %v101 = vshrl.u32 %v100, 7
    %vm102 = vcmp.lt.s32.totalorder %v101, 7
    %103 = vst.msk [vmem:[%s90] sm:$0xff] %vm102, %v99
    %s104 = scalar_lea.vmem [#allocation1], 24
    %s105 = scalar_lea.vmem [#allocation0], 48
    %s106 = scalar_lea.vmem %s105, 7 [#allocation0]
    %v107 = vld [vmem:[%s106] ss:$-1 sm:$0xff]
    %v108 = vrot.slane %v107, 1
    %109 = vst [vmem:[%s104] sm:$0xff] %v108
    %s110 = scalar_lea.vmem %s105, 8 [#allocation0]
    %s111 = scalar_lea.vmem %s110, 7 [#allocation0]
    %v112 = vld [vmem:[%s111] ss:$-1 sm:$0xff]
    %v113 = vrot.slane %v112, 1
    %v114 = vlaneseq
    %v115 = vshrl.u32 %v114, 7
    %vm116 = vcmp.lt.s32.totalorder %v115, 7
    %117 = vst.msk [vmem:[%s104] sm:$0xff] %vm116, %v113
    %s118 = scalar_lea.vmem [#allocation1], 32
    %s119 = scalar_lea.vmem [#allocation0], 64
    %s120 = scalar_lea.vmem %s119, 7 [#allocation0]
    %v121 = vld [vmem:[%s120] ss:$-1 sm:$0xff]
    %v122 = vrot.slane %v121, 1
    %123 = vst [vmem:[%s118] sm:$0xff] %v122
    %s124 = scalar_lea.vmem %s119, 8 [#allocation0]
    %s125 = scalar_lea.vmem %s124, 7 [#allocation0]
    %v126 = vld [vmem:[%s125] ss:$-1 sm:$0xff]
    %v127 = vrot.slane %v126, 1
    %v128 = vlaneseq
    %v129 = vshrl.u32 %v128, 7
    %vm130 = vcmp.lt.s32.totalorder %v129, 7
    %131 = vst.msk [vmem:[%s118] sm:$0xff] %vm130, %v127
    %s132 = scalar_lea.vmem [#allocation1], 40
    %s133 = scalar_lea.vmem [#allocation0], 80
    %s134 = scalar_lea.vmem %s133, 7 [#allocation0]
    %v135 = vld [vmem:[%s134] ss:$-1 sm:$0xff]
    %v136 = vrot.slane %v135, 1
    %137 = vst [vmem:[%s132] sm:$0xff] %v136
    %s138 = scalar_lea.vmem %s133, 8 [#allocation0]
    %s139 = scalar_lea.vmem %s138, 7 [#allocation0]
    %v140 = vld [vmem:[%s139] ss:$-1 sm:$0xff]
    %v141 = vrot.slane %v140, 1
    %v142 = vlaneseq
    %v143 = vshrl.u32 %v142, 7
    %vm144 = vcmp.lt.s32.totalorder %v143, 7
    %145 = vst.msk [vmem:[%s132] sm:$0xff] %vm144, %v141
    %s146 = scalar_lea.vmem [#allocation1], 48
    %s147 = scalar_lea.vmem [#allocation0], 96
    %s148 = scalar_lea.vmem %s147, 7 [#allocation0]
    %v149 = vld [vmem:[%s148] ss:$-1 sm:$0xff]
    %v150 = vrot.slane %v149, 1
    %151 = vst [vmem:[%s146] sm:$0xff] %v150
    %s152 = scalar_lea.vmem %s147, 8 [#allocation0]
    %s153 = scalar_lea.vmem %s152, 7 [#allocation0]
    %v154 = vld [vmem:[%s153] ss:$-1 sm:$0xff]
    %v155 = vrot.slane %v154, 1
    %v156 = vlaneseq
    %v157 = vshrl.u32 %v156, 7
    %vm158 = vcmp.lt.s32.totalorder %v157, 7
    %159 = vst.msk [vmem:[%s146] sm:$0xff] %vm158, %v155
    %s160 = scalar_lea.vmem [#allocation1], 56
    %s161 = scalar_lea.vmem [#allocation0], 112
    %s162 = scalar_lea.vmem %s161, 7 [#allocation0]
    %v163 = vld [vmem:[%s162] ss:$-1 sm:$0xff]
    %v164 = vrot.slane %v163, 1
    %165 = vst [vmem:[%s160] sm:$0xff] %v164
    %s166 = scalar_lea.vmem %s161, 8 [#allocation0]
    %s167 = scalar_lea.vmem %s166, 7 [#allocation0]
    %v168 = vld [vmem:[%s167] ss:$-1 sm:$0xff]
    %v169 = vrot.slane %v168, 1
    %v170 = vlaneseq
    %v171 = vshrl.u32 %v170, 7
    %vm172 = vcmp.lt.s32.totalorder %v171, 7
    %173 = vst.msk [vmem:[%s160] sm:$0xff] %vm172, %v169
    // Predicated region
    $region36: #{reverse.0} parent=1 // pred_check
      _
    $region37: #{reverse.0} parent=1 // pred_check_branch
      %175 = sbr.rel (0) target = $region39
    $region38: #{reverse.0} parent=1 // pred_region
      // Predicated region
      $region40: #{reverse.0} parent=38 // pred_check
        _
      $region41: #{reverse.0} parent=38 // pred_check_branch
        %177 = sbr.rel (0) target = $region43
      $region42: #{reverse.0} parent=38 // pred_region
        // Predicated region
        $region55: #{reverse.0} parent=42 // pred_check
          _
        $region56: #{reverse.0} parent=42 // pred_check_branch
          %207 = sbr.rel (0) target = $region58
        $region57: #{reverse.0} parent=42 // pred_region
          loop: start=0, step=1, limit=1
          $region59: #{reverse.0} parent=57 // loop_pre_header
            _
          $region60: #{reverse.0} parent=57 // loop_header
            %s209 = sphi 0, %s213
            %p210 = scmp.ge.s32.totalorder %s209, 1
            %s214 = sphi [#allocation1], [#allocation1]
            %s215 = sphi %s1, %s1
          $region61: #{reverse.0} parent=57 // loop_header_branch
            %212 = sbr.rel (%p210) target = $region65
          $region62: #{reverse.0} parent=57 // loop_body
            %v216 = vld [vmem:[%s214] sm:$0xff]
            %217 = vst [vmem:[%s215] sm:$0xff] %v216
            %v218 = vld [vmem:[%s214 + $0x8] sm:$0xff]
            %219 = vst [vmem:[%s215 + $0x8] sm:$0xff] %v218
            %v220 = vld [vmem:[%s214 + $0x10] sm:$0xff]
            %221 = vst [vmem:[%s215 + $0x10] sm:$0xff] %v220
            %v222 = vld [vmem:[%s214 + $0x18] sm:$0xff]
            %223 = vst [vmem:[%s215 + $0x18] sm:$0xff] %v222
            %v224 = vld [vmem:[%s214 + $0x20] sm:$0xff]
            %225 = vst [vmem:[%s215 + $0x20] sm:$0xff] %v224
            %v226 = vld [vmem:[%s214 + $0x28] sm:$0xff]
            %227 = vst [vmem:[%s215 + $0x28] sm:$0xff] %v226
            %v228 = vld [vmem:[%s214 + $0x30] sm:$0xff]
            %229 = vst [vmem:[%s215 + $0x30] sm:$0xff] %v228
            %v230 = vld [vmem:[%s214 + $0x38] sm:$0xff]
            %231 = vst [vmem:[%s215 + $0x38] sm:$0xff] %v230
          $region63: #{reverse.0} parent=57 // loop_footer
            %s213 = sadd.s32 1, %s209
          $region64: #{reverse.0} parent=57 // loop_footer_branch
            %208 = sbr.rel target = $region60
          $region65: #{reverse.0} parent=57 // loop_exit
            _
        $region58: #{reverse.0} parent=42 // pred_fallthru
          _
        // Predicated region
        $region66: #{reverse.0} parent=42 // pred_check
          _
        $region67: #{reverse.0} parent=42 // pred_check_branch
          %233 = sbr.rel target = $region69
        $region68: #{reverse.0} parent=42 // pred_region
          _
        $region69: #{reverse.0} parent=42 // pred_fallthru
          _
      $region43: #{reverse.0} parent=38 // pred_fallthru
        _
      // Predicated region
      $region44: #{reverse.0} parent=38 // pred_check
        _
      $region45: #{reverse.0} parent=38 // pred_check_branch
        %179 = sbr.rel target = $region47
      $region46: #{reverse.0} parent=38 // pred_region
        %s181 = ssub.s32 256, 1
        loop: start=0, step=1, limit=1
        $region48: #{reverse.0} parent=46 // loop_pre_header
          _
        $region49: #{reverse.0} parent=46 // loop_header
          %s183 = sphi 0, %s187
          %p184 = scmp.ge.s32.totalorder %s183, 1
          %s188 = sphi [#allocation1], [#allocation1]
          %s189 = sphi %s1, %s1
        $region50: #{reverse.0} parent=46 // loop_header_branch
          %186 = sbr.rel (%p184) target = $region54
        $region51: #{reverse.0} parent=46 // loop_body
          %v190 = vld [vmem:[%s188] sm:%s181]
          %191 = vst [vmem:[%s189] sm:%s181] %v190
          %v192 = vld [vmem:[%s188 + $0x8] sm:%s181]
          %193 = vst [vmem:[%s189 + $0x8] sm:%s181] %v192
          %v194 = vld [vmem:[%s188 + $0x10] sm:%s181]
          %195 = vst [vmem:[%s189 + $0x10] sm:%s181] %v194
          %v196 = vld [vmem:[%s188 + $0x18] sm:%s181]
          %197 = vst [vmem:[%s189 + $0x18] sm:%s181] %v196
          %v198 = vld [vmem:[%s188 + $0x20] sm:%s181]
          %199 = vst [vmem:[%s189 + $0x20] sm:%s181] %v198
          %v200 = vld [vmem:[%s188 + $0x28] sm:%s181]
          %201 = vst [vmem:[%s189 + $0x28] sm:%s181] %v200
          %v202 = vld [vmem:[%s188 + $0x30] sm:%s181]
          %203 = vst [vmem:[%s189 + $0x30] sm:%s181] %v202
          %v204 = vld [vmem:[%s188 + $0x38] sm:%s181]
          %205 = vst [vmem:[%s189 + $0x38] sm:%s181] %v204
        $region52: #{reverse.0} parent=46 // loop_footer
          %s187 = sadd.s32 1, %s183
        $region53: #{reverse.0} parent=46 // loop_footer_branch
          %182 = sbr.rel target = $region49
        $region54: #{reverse.0} parent=46 // loop_exit
          _
      $region47: #{reverse.0} parent=38 // pred_fallthru
        _
    $region39: #{reverse.0} parent=1 // pred_fallthru
      _
    %234 = vnop

// kernel: tile.7
$region0: #{tile.7}
  %s0 = inlined_call_operand.vmem [shape: f32[8,2,2,8,2,8], index: 0, kind: input, shape index: {}]
  %s1 = inlined_call_operand.vmem [shape: f32[8,2,16,16], index: 1, kind: output, shape index: {}]
  $region1: #{tile.7} parent=0
    #allocation0 [shape = 'u8[1048576]{0}', space=vmem, size = 0x100000, scoped, tag = 'scoped mem for input reshape']
    %s3 = ssub.s32 4, 1
    %s4 = scalar_lea.vmem %s0, 510
    %v5 = vld [vmem:[%s4] sm:%s3]
    %s6 = scalar_lea.vmem [#allocation0], 2040
    %7 = vst [vmem:[%s6] sm:%s3] %v5
    %s8 = scalar_lea.vmem %s0, 508
    %v9 = vld [vmem:[%s8] sm:%s3]
    %s10 = scalar_lea.vmem [#allocation0], 2032
    %11 = vst [vmem:[%s10] sm:%s3] %v9
    %s12 = scalar_lea.vmem %s0, 506
    %v13 = vld [vmem:[%s12] sm:%s3]
    %s14 = scalar_lea.vmem [#allocation0], 2024
    %15 = vst [vmem:[%s14] sm:%s3] %v13
    %s16 = scalar_lea.vmem %s0, 504
    %v17 = vld [vmem:[%s16] sm:%s3]
    %s18 = scalar_lea.vmem [#allocation0], 2016
    %19 = vst [vmem:[%s18] sm:%s3] %v17
    %s20 = scalar_lea.vmem %s0, 502
    %v21 = vld [vmem:[%s20] sm:%s3]
    %s22 = scalar_lea.vmem [#allocation0], 2008
    %23 = vst [vmem:[%s22] sm:%s3] %v21
    %s24 = scalar_lea.vmem %s0, 500
    %v25 = vld [vmem:[%s24] sm:%s3]
    %s26 = scalar_lea.vmem [#allocation0], 2000
    %27 = vst [vmem:[%s26] sm:%s3] %v25
    %s28 = scalar_lea.vmem %s0, 498
    %v29 = vld [vmem:[%s28] sm:%s3]
    %s30 = scalar_lea.vmem [#allocation0], 1992
    %31 = vst [vmem:[%s30] sm:%s3] %v29
    %s32 = scalar_lea.vmem %s0, 496
    %v33 = vld [vmem:[%s32] sm:%s3]
    %s34 = scalar_lea.vmem [#allocation0], 1984
    %35 = vst [vmem:[%s34] sm:%s3] %v33
    %s36 = scalar_lea.vmem %s0, 494
    %v37 = vld [vmem:[%s36] sm:%s3]
    %s38 = scalar_lea.vmem [#allocation0], 1976
    %39 = vst [vmem:[%s38] sm:%s3] %v37
    %s40 = scalar_lea.vmem %s0, 492
    %v41 = vld [vmem:[%s40] sm:%s3]
    %s42 = scalar_lea.vmem [#allocation0], 1968
    %43 = vst [vmem:[%s42] sm:%s3] %v41
    %s44 = scalar_lea.vmem %s0, 490
    %v45 = vld [vmem:[%s44] sm:%s3]
    %s46 = scalar_lea.vmem [#allocation0], 1960
    %47 = vst [vmem:[%s46] sm:%s3] %v45
    %s48 = scalar_lea.vmem %s0, 488
    %v49 = vld [vmem:[%s48] sm:%s3]
    %s50 = scalar_lea.vmem [#allocation0], 1952
    %51 = vst [vmem:[%s50] sm:%s3] %v49
    %s52 = scalar_lea.vmem %s0, 486
    %v53 = vld [vmem:[%s52] sm:%s3]
    %s54 = scalar_lea.vmem [#allocation0], 1944
    %55 = vst [vmem:[%s54] sm:%s3] %v53
    %s56 = scalar_lea.vmem %s0, 484
    %v57 = vld [vmem:[%s56] sm:%s3]
    %s58 = scalar_lea.vmem [#allocation0], 1936
    %59 = vst [vmem:[%s58] sm:%s3] %v57
    %s60 = scalar_lea.vmem %s0, 482
    %v61 = vld [vmem:[%s60] sm:%s3]
    %s62 = scalar_lea.vmem [#allocation0], 1928
    %63 = vst [vmem:[%s62] sm:%s3] %v61
    %s64 = scalar_lea.vmem %s0, 480
    %v65 = vld [vmem:[%s64] sm:%s3]
    %s66 = scalar_lea.vmem [#allocation0], 1920
    %67 = vst [vmem:[%s66] sm:%s3] %v65
    %s68 = scalar_lea.vmem %s0, 478
    %v69 = vld [vmem:[%s68] sm:%s3]
    %s70 = scalar_lea.vmem [#allocation0], 1912
    %71 = vst [vmem:[%s70] sm:%s3] %v69
    %s72 = scalar_lea.vmem %s0, 476
    %v73 = vld [vmem:[%s72] sm:%s3]
    %s74 = scalar_lea.vmem [#allocation0], 1904
    %75 = vst [vmem:[%s74] sm:%s3] %v73
    %s76 = scalar_lea.vmem %s0, 474
    %v77 = vld [vmem:[%s76] sm:%s3]
    %s78 = scalar_lea.vmem [#allocation0], 1896
    %79 = vst [vmem:[%s78] sm:%s3] %v77
    %s80 = scalar_lea.vmem %s0, 472
    %v81 = vld [vmem:[%s80] sm:%s3]
    %s82 = scalar_lea.vmem [#allocation0], 1888
    %83 = vst [vmem:[%s82] sm:%s3] %v81
    %s84 = scalar_lea.vmem %s0, 470
    %v85 = vld [vmem:[%s84] sm:%s3]
    %s86 = scalar_lea.vmem [#allocation0], 1880
    %87 = vst [vmem:[%s86] sm:%s3] %v85
    %s88 = scalar_lea.vmem %s0, 468
    %v89 = vld [vmem:[%s88] sm:%s3]
    %s90 = scalar_lea.vmem [#allocation0], 1872
    %91 = vst [vmem:[%s90] sm:%s3] %v89
    %s92 = scalar_lea.vmem %s0, 466
    %v93 = vld [vmem:[%s92] sm:%s3]
    %s94 = scalar_lea.vmem [#allocation0], 1864
    %95 = vst [vmem:[%s94] sm:%s3] %v93
    %s96 = scalar_lea.vmem %s0, 464
    %v97 = vld [vmem:[%s96] sm:%s3]
    %s98 = scalar_lea.vmem [#allocation0], 1856
    %99 = vst [vmem:[%s98] sm:%s3] %v97
    %s100 = scalar_lea.vmem %s0, 462
    %v101 = vld [vmem:[%s100] sm:%s3]
    %s102 = scalar_lea.vmem [#allocation0], 1848
    %103 = vst [vmem:[%s102] sm:%s3] %v101
    %s104 = scalar_lea.vmem %s0, 460
    %v105 = vld [vmem:[%s104] sm:%s3]
    %s106 = scalar_lea.vmem [#allocation0], 1840
    %107 = vst [vmem:[%s106] sm:%s3] %v105
    %s108 = scalar_lea.vmem %s0, 458
    %v109 = vld [vmem:[%s108] sm:%s3]
    %s110 = scalar_lea.vmem [#allocation0], 1832
    %111 = vst [vmem:[%s110] sm:%s3] %v109
    %s112 = scalar_lea.vmem %s0, 456
    %v113 = vld [vmem:[%s112] sm:%s3]
    %s114 = scalar_lea.vmem [#allocation0], 1824
    %115 = vst [vmem:[%s114] sm:%s3] %v113
    %s116 = scalar_lea.vmem %s0, 454
    %v117 = vld [vmem:[%s116] sm:%s3]
    %s118 = scalar_lea.vmem [#allocation0], 1816
    %119 = vst [vmem:[%s118] sm:%s3] %v117
    %s120 = scalar_lea.vmem %s0, 452
    %v121 = vld [vmem:[%s120] sm:%s3]
    %s122 = scalar_lea.vmem [#allocation0], 1808
    %123 = vst [vmem:[%s122] sm:%s3] %v121
    %s124 = scalar_lea.vmem %s0, 450
    %v125 = vld [vmem:[%s124] sm:%s3]
    %s126 = scalar_lea.vmem [#allocation0], 1800
    %127 = vst [vmem:[%s126] sm:%s3] %v125
    %s128 = scalar_lea.vmem %s0, 448
    %v129 = vld [vmem:[%s128] sm:%s3]
    %s130 = scalar_lea.vmem [#allocation0], 1792
    %131 = vst [vmem:[%s130] sm:%s3] %v129
    %s132 = scalar_lea.vmem %s0, 446
    %v133 = vld [vmem:[%s132] sm:%s3]
    %s134 = scalar_lea.vmem [#allocation0], 1784
    %135 = vst [vmem:[%s134] sm:%s3] %v133
    %s136 = scalar_lea.vmem %s0, 444
    %v137 = vld [vmem:[%s136] sm:%s3]
    %s138 = scalar_lea.vmem [#allocation0], 1776
    %139 = vst [vmem:[%s138] sm:%s3] %v137
    %s140 = scalar_lea.vmem %s0, 442
    %v141 = vld [vmem:[%s140] sm:%s3]
    %s142 = scalar_lea.vmem [#allocation0], 1768
    %143 = vst [vmem:[%s142] sm:%s3] %v141
    %s144 = scalar_lea.vmem %s0, 440
    %v145 = vld [vmem:[%s144] sm:%s3]
    %s146 = scalar_lea.vmem [#allocation0], 1760
    %147 = vst [vmem:[%s146] sm:%s3] %v145
    %s148 = scalar_lea.vmem %s0, 438
    %v149 = vld [vmem:[%s148] sm:%s3]
    %s150 = scalar_lea.vmem [#allocation0], 1752
    %151 = vst [vmem:[%s150] sm:%s3] %v149
    %s152 = scalar_lea.vmem %s0, 436
    %v153 = vld [vmem:[%s152] sm:%s3]
    %s154 = scalar_lea.vmem [#allocation0], 1744
    %155 = vst [vmem:[%s154] sm:%s3] %v153
    %s156 = scalar_lea.vmem %s0, 434
    %v157 = vld [vmem:[%s156] sm:%s3]
    %s158 = scalar_lea.vmem [#allocation0], 1736
    %159 = vst [vmem:[%s158] sm:%s3] %v157
    %s160 = scalar_lea.vmem %s0, 432
    %v161 = vld [vmem:[%s160] sm:%s3]
    %s162 = scalar_lea.vmem [#allocation0], 1728
    %163 = vst [vmem:[%s162] sm:%s3] %v161
    %s164 = scalar_lea.vmem %s0, 430
    %v165 = vld [vmem:[%s164] sm:%s3]
    %s166 = scalar_lea.vmem [#allocation0], 1720
    %167 = vst [vmem:[%s166] sm:%s3] %v165
    %s168 = scalar_lea.vmem %s0, 428
    %v169 = vld [vmem:[%s168] sm:%s3]
    %s170 = scalar_lea.vmem [#allocation0], 1712
    %171 = vst [vmem:[%s170] sm:%s3] %v169
    %s172 = scalar_lea.vmem %s0, 426
    %v173 = vld [vmem:[%s172] sm:%s3]
    %s174 = scalar_lea.vmem [#allocation0], 1704
    %175 = vst [vmem:[%s174] sm:%s3] %v173
    %s176 = scalar_lea.vmem %s0, 424
    %v177 = vld [vmem:[%s176] sm:%s3]
    %s178 = scalar_lea.vmem [#allocation0], 1696
    %179 = vst [vmem:[%s178] sm:%s3] %v177
    %s180 = scalar_lea.vmem %s0, 422
    %v181 = vld [vmem:[%s180] sm:%s3]
    %s182 = scalar_lea.vmem [#allocation0], 1688
    %183 = vst [vmem:[%s182] sm:%s3] %v181
    %s184 = scalar_lea.vmem %s0, 420
    %v185 = vld [vmem:[%s184] sm:%s3]
    %s186 = scalar_lea.vmem [#allocation0], 1680
    %187 = vst [vmem:[%s186] sm:%s3] %v185
    %s188 = scalar_lea.vmem %s0, 418
    %v189 = vld [vmem:[%s188] sm:%s3]
    %s190 = scalar_lea.vmem [#allocation0], 1672
    %191 = vst [vmem:[%s190] sm:%s3] %v189
    %s192 = scalar_lea.vmem %s0, 416
    %v193 = vld [vmem:[%s192] sm:%s3]
    %s194 = scalar_lea.vmem [#allocation0], 1664
    %195 = vst [vmem:[%s194] sm:%s3] %v193
    %s196 = scalar_lea.vmem %s0, 414
    %v197 = vld [vmem:[%s196] sm:%s3]
    %s198 = scalar_lea.vmem [#allocation0], 1656
    %199 = vst [vmem:[%s198] sm:%s3] %v197
    %s200 = scalar_lea.vmem %s0, 412
    %v201 = vld [vmem:[%s200] sm:%s3]
    %s202 = scalar_lea.vmem [#allocation0], 1648
    %203 = vst [vmem:[%s202] sm:%s3] %v201
    %s204 = scalar_lea.vmem %s0, 410
    %v205 = vld [vmem:[%s204] sm:%s3]
    %s206 = scalar_lea.vmem [#allocation0], 1640
    %207 = vst [vmem:[%s206] sm:%s3] %v205
    %s208 = scalar_lea.vmem %s0, 408
    %v209 = vld [vmem:[%s208] sm:%s3]
    %s210 = scalar_lea.vmem [#allocation0], 1632
    %211 = vst [vmem:[%s210] sm:%s3] %v209
    %s212 = scalar_lea.vmem %s0, 406
    %v213 = vld [vmem:[%s212] sm:%s3]
    %s214 = scalar_lea.vmem [#allocation0], 1624
    %215 = vst [vmem:[%s214] sm:%s3] %v213
    %s216 = scalar_lea.vmem %s0, 404
    %v217 = vld [vmem:[%s216] sm:%s3]
    %s218 = scalar_lea.vmem [#allocation0], 1616
    %219 = vst [vmem:[%s218] sm:%s3] %v217
    %s220 = scalar_lea.vmem %s0, 402
    %v221 = vld [vmem:[%s220] sm:%s3]
    %s222 = scalar_lea.vmem [#allocation0], 1608
    %223 = vst [vmem:[%s222] sm:%s3] %v221
    %s224 = scalar_lea.vmem %s0, 400
    %v225 = vld [vmem:[%s224] sm:%s3]
    %s226 = scalar_lea.vmem [#allocation0], 1600
    %227 = vst [vmem:[%s226] sm:%s3] %v225
    %s228 = scalar_lea.vmem %s0, 398
    %v229 = vld [vmem:[%s228] sm:%s3]
    %s230 = scalar_lea.vmem [#allocation0], 1592
    %231 = vst [vmem:[%s230] sm:%s3] %v229
    %s232 = scalar_lea.vmem %s0, 396
    %v233 = vld [vmem:[%s232] sm:%s3]
    %s234 = scalar_lea.vmem [#allocation0], 1584
    %235 = vst [vmem:[%s234] sm:%s3] %v233
    %s236 = scalar_lea.vmem %s0, 394
    %v237 = vld [vmem:[%s236] sm:%s3]
    %s238 = scalar_lea.vmem [#allocation0], 1576
    %239 = vst [vmem:[%s238] sm:%s3] %v237
    %s240 = scalar_lea.vmem %s0, 392
    %v241 = vld [vmem:[%s240] sm:%s3]
    %s242 = scalar_lea.vmem [#allocation0], 1568
    %243 = vst [vmem:[%s242] sm:%s3] %v241
    %s244 = scalar_lea.vmem %s0, 390
    %v245 = vld [vmem:[%s244] sm:%s3]
    %s246 = scalar_lea.vmem [#allocation0], 1560
    %247 = vst [vmem:[%s246] sm:%s3] %v245
    %s248 = scalar_lea.vmem %s0, 388
    %v249 = vld [vmem:[%s248] sm:%s3]
    %s250 = scalar_lea.vmem [#allocation0], 1552
    %251 = vst [vmem:[%s250] sm:%s3] %v249
    %s252 = scalar_lea.vmem %s0, 386
    %v253 = vld [vmem:[%s252] sm:%s3]
    %s254 = scalar_lea.vmem [#allocation0], 1544
    %255 = vst [vmem:[%s254] sm:%s3] %v253
    %s256 = scalar_lea.vmem %s0, 384
    %v257 = vld [vmem:[%s256] sm:%s3]
    %s258 = scalar_lea.vmem [#allocation0], 1536
    %259 = vst [vmem:[%s258] sm:%s3] %v257
    %s260 = scalar_lea.vmem %s0, 382
    %v261 = vld [vmem:[%s260] sm:%s3]
    %s262 = scalar_lea.vmem [#allocation0], 1528
    %263 = vst [vmem:[%s262] sm:%s3] %v261
    %s264 = scalar_lea.vmem %s0, 380
    %v265 = vld [vmem:[%s264] sm:%s3]
    %s266 = scalar_lea.vmem [#allocation0], 1520
    %267 = vst [vmem:[%s266] sm:%s3] %v265
    %s268 = scalar_lea.vmem %s0, 378
    %v269 = vld [vmem:[%s268] sm:%s3]
    %s270 = scalar_lea.vmem [#allocation0], 1512
    %271 = vst [vmem:[%s270] sm:%s3] %v269
    %s272 = scalar_lea.vmem %s0, 376
    %v273 = vld [vmem:[%s272] sm:%s3]
    %s274 = scalar_lea.vmem [#allocation0], 1504
    %275 = vst [vmem:[%s274] sm:%s3] %v273
    %s276 = scalar_lea.vmem %s0, 374
    %v277 = vld [vmem:[%s276] sm:%s3]
    %s278 = scalar_lea.vmem [#allocation0], 1496
    %279 = vst [vmem:[%s278] sm:%s3] %v277
    %s280 = scalar_lea.vmem %s0, 372
    %v281 = vld [vmem:[%s280] sm:%s3]
    %s282 = scalar_lea.vmem [#allocation0], 1488
    %283 = vst [vmem:[%s282] sm:%s3] %v281
    %s284 = scalar_lea.vmem %s0, 370
    %v285 = vld [vmem:[%s284] sm:%s3]
    %s286 = scalar_lea.vmem [#allocation0], 1480
    %287 = vst [vmem:[%s286] sm:%s3] %v285
    %s288 = scalar_lea.vmem %s0, 368
    %v289 = vld [vmem:[%s288] sm:%s3]
    %s290 = scalar_lea.vmem [#allocation0], 1472
    %291 = vst [vmem:[%s290] sm:%s3] %v289
    %s292 = scalar_lea.vmem %s0, 366
    %v293 = vld [vmem:[%s292] sm:%s3]
    %s294 = scalar_lea.vmem [#allocation0], 1464
    %295 = vst [vmem:[%s294] sm:%s3] %v293
    %s296 = scalar_lea.vmem %s0, 364
    %v297 = vld [vmem:[%s296] sm:%s3]
    %s298 = scalar_lea.vmem [#allocation0], 1456
    %299 = vst [vmem:[%s298] sm:%s3] %v297
    %s300 = scalar_lea.vmem %s0, 362
    %v301 = vld [vmem:[%s300] sm:%s3]
    %s302 = scalar_lea.vmem [#allocation0], 1448
    %303 = vst [vmem:[%s302] sm:%s3] %v301
    %s304 = scalar_lea.vmem %s0, 360
    %v305 = vld [vmem:[%s304] sm:%s3]
    %s306 = scalar_lea.vmem [#allocation0], 1440
    %307 = vst [vmem:[%s306] sm:%s3] %v305
    %s308 = scalar_lea.vmem %s0, 358
    %v309 = vld [vmem:[%s308] sm:%s3]
    %s310 = scalar_lea.vmem [#allocation0], 1432
    %311 = vst [vmem:[%s310] sm:%s3] %v309
    %s312 = scalar_lea.vmem %s0, 356
    %v313 = vld [vmem:[%s312] sm:%s3]
    %s314 = scalar_lea.vmem [#allocation0], 1424
    %315 = vst [vmem:[%s314] sm:%s3] %v313
    %s316 = scalar_lea.vmem %s0, 354
    %v317 = vld [vmem:[%s316] sm:%s3]
    %s318 = scalar_lea.vmem [#allocation0], 1416
    %319 = vst [vmem:[%s318] sm:%s3] %v317
    %s320 = scalar_lea.vmem %s0, 352
    %v321 = vld [vmem:[%s320] sm:%s3]
    %s322 = scalar_lea.vmem [#allocation0], 1408
    %323 = vst [vmem:[%s322] sm:%s3] %v321
    %s324 = scalar_lea.vmem %s0, 350
    %v325 = vld [vmem:[%s324] sm:%s3]
    %s326 = scalar_lea.vmem [#allocation0], 1400
    %327 = vst [vmem:[%s326] sm:%s3] %v325
    %s328 = scalar_lea.vmem %s0, 348
    %v329 = vld [vmem:[%s328] sm:%s3]
    %s330 = scalar_lea.vmem [#allocation0], 1392
    %331 = vst [vmem:[%s330] sm:%s3] %v329
    %s332 = scalar_lea.vmem %s0, 346
    %v333 = vld [vmem:[%s332] sm:%s3]
    %s334 = scalar_lea.vmem [#allocation0], 1384
    %335 = vst [vmem:[%s334] sm:%s3] %v333
    %s336 = scalar_lea.vmem %s0, 344
    %v337 = vld [vmem:[%s336] sm:%s3]
    %s338 = scalar_lea.vmem [#allocation0], 1376
    %339 = vst [vmem:[%s338] sm:%s3] %v337
    %s340 = scalar_lea.vmem %s0, 342
    %v341 = vld [vmem:[%s340] sm:%s3]
    %s342 = scalar_lea.vmem [#allocation0], 1368
    %343 = vst [vmem:[%s342] sm:%s3] %v341
    %s344 = scalar_lea.vmem %s0, 340
    %v345 = vld [vmem:[%s344] sm:%s3]
    %s346 = scalar_lea.vmem [#allocation0], 1360
    %347 = vst [vmem:[%s346] sm:%s3] %v345
    %s348 = scalar_lea.vmem %s0, 338
    %v349 = vld [vmem:[%s348] sm:%s3]
    %s350 = scalar_lea.vmem [#allocation0], 1352
    %351 = vst [vmem:[%s350] sm:%s3] %v349
    %s352 = scalar_lea.vmem %s0, 336
    %v353 = vld [vmem:[%s352] sm:%s3]
    %s354 = scalar_lea.vmem [#allocation0], 1344
    %355 = vst [vmem:[%s354] sm:%s3] %v353
    %s356 = scalar_lea.vmem %s0, 334
    %v357 = vld [vmem:[%s356] sm:%s3]
    %s358 = scalar_lea.vmem [#allocation0], 1336
    %359 = vst [vmem:[%s358] sm:%s3] %v357
    %s360 = scalar_lea.vmem %s0, 332
    %v361 = vld [vmem:[%s360] sm:%s3]
    %s362 = scalar_lea.vmem [#allocation0], 1328
    %363 = vst [vmem:[%s362] sm:%s3] %v361
    %s364 = scalar_lea.vmem %s0, 330
    %v365 = vld [vmem:[%s364] sm:%s3]
    %s366 = scalar_lea.vmem [#allocation0], 1320
    %367 = vst [vmem:[%s366] sm:%s3] %v365
    %s368 = scalar_lea.vmem %s0, 328
    %v369 = vld [vmem:[%s368] sm:%s3]
    %s370 = scalar_lea.vmem [#allocation0], 1312
    %371 = vst [vmem:[%s370] sm:%s3] %v369
    %s372 = scalar_lea.vmem %s0, 326
    %v373 = vld [vmem:[%s372] sm:%s3]
    %s374 = scalar_lea.vmem [#allocation0], 1304
    %375 = vst [vmem:[%s374] sm:%s3] %v373
    %s376 = scalar_lea.vmem %s0, 324
    %v377 = vld [vmem:[%s376] sm:%s3]
    %s378 = scalar_lea.vmem [#allocation0], 1296
    %379 = vst [vmem:[%s378] sm:%s3] %v377
    %s380 = scalar_lea.vmem %s0, 322
    %v381 = vld [vmem:[%s380] sm:%s3]
    %s382 = scalar_lea.vmem [#allocation0], 1288
    %383 = vst [vmem:[%s382] sm:%s3] %v381
    %s384 = scalar_lea.vmem %s0, 320
    %v385 = vld [vmem:[%s384] sm:%s3]
    %s386 = scalar_lea.vmem [#allocation0], 1280
    %387 = vst [vmem:[%s386] sm:%s3] %v385
    %s388 = scalar_lea.vmem %s0, 318
    %v389 = vld [vmem:[%s388] sm:%s3]
    %s390 = scalar_lea.vmem [#allocation0], 1272
    %391 = vst [vmem:[%s390] sm:%s3] %v389
    %s392 = scalar_lea.vmem %s0, 316
    %v393 = vld [vmem:[%s392] sm:%s3]
    %s394 = scalar_lea.vmem [#allocation0], 1264
    %395 = vst [vmem:[%s394] sm:%s3] %v393
    %s396 = scalar_lea.vmem %s0, 314
    %v397 = vld [vmem:[%s396] sm:%s3]
    %s398 = scalar_lea.vmem [#allocation0], 1256
    %399 = vst [vmem:[%s398] sm:%s3] %v397
    %s400 = scalar_lea.vmem %s0, 312
    %v401 = vld [vmem:[%s400] sm:%s3]
    %s402 = scalar_lea.vmem [#allocation0], 1248
    %403 = vst [vmem:[%s402] sm:%s3] %v401
    %s404 = scalar_lea.vmem %s0, 310
    %v405 = vld [vmem:[%s404] sm:%s3]
    %s406 = scalar_lea.vmem [#allocation0], 1240
    %407 = vst [vmem:[%s406] sm:%s3] %v405
    %s408 = scalar_lea.vmem %s0, 308
    %v409 = vld [vmem:[%s408] sm:%s3]
    %s410 = scalar_lea.vmem [#allocation0], 1232
    %411 = vst [vmem:[%s410] sm:%s3] %v409
    %s412 = scalar_lea.vmem %s0, 306
    %v413 = vld [vmem:[%s412] sm:%s3]
    %s414 = scalar_lea.vmem [#allocation0], 1224
    %415 = vst [vmem:[%s414] sm:%s3] %v413
    %s416 = scalar_lea.vmem %s0, 304
    %v417 = vld [vmem:[%s416] sm:%s3]
    %s418 = scalar_lea.vmem [#allocation0], 1216
    %419 = vst [vmem:[%s418] sm:%s3] %v417
    %s420 = scalar_lea.vmem %s0, 302
    %v421 = vld [vmem:[%s420] sm:%s3]
    %s422 = scalar_lea.vmem [#allocation0], 1208
    %423 = vst [vmem:[%s422] sm:%s3] %v421
    %s424 = scalar_lea.vmem %s0, 300
    %v425 = vld [vmem:[%s424] sm:%s3]
    %s426 = scalar_lea.vmem [#allocation0], 1200
    %427 = vst [vmem:[%s426] sm:%s3] %v425
    %s428 = scalar_lea.vmem %s0, 298
    %v429 = vld [vmem:[%s428] sm:%s3]
    %s430 = scalar_lea.vmem [#allocation0], 1192
    %431 = vst [vmem:[%s430] sm:%s3] %v429
    %s432 = scalar_lea.vmem %s0, 296
    %v433 = vld [vmem:[%s432] sm:%s3]
    %s434 = scalar_lea.vmem [#allocation0], 1184
    %435 = vst [vmem:[%s434] sm:%s3] %v433
    %s436 = scalar_lea.vmem %s0, 294
    %v437 = vld [vmem:[%s436] sm:%s3]
    %s438 = scalar_lea.vmem [#allocation0], 1176
    %439 = vst [vmem:[%s438] sm:%s3] %v437
    %s440 = scalar_lea.vmem %s0, 292
    %v441 = vld [vmem:[%s440] sm:%s3]
    %s442 = scalar_lea.vmem [#allocation0], 1168
    %443 = vst [vmem:[%s442] sm:%s3] %v441
    %s444 = scalar_lea.vmem %s0, 290
    %v445 = vld [vmem:[%s444] sm:%s3]
    %s446 = scalar_lea.vmem [#allocation0], 1160
    %447 = vst [vmem:[%s446] sm:%s3] %v445
    %s448 = scalar_lea.vmem %s0, 288
    %v449 = vld [vmem:[%s448] sm:%s3]
    %s450 = scalar_lea.vmem [#allocation0], 1152
    %451 = vst [vmem:[%s450] sm:%s3] %v449
    %s452 = scalar_lea.vmem %s0, 286
    %v453 = vld [vmem:[%s452] sm:%s3]
    %s454 = scalar_lea.vmem [#allocation0], 1144
    %455 = vst [vmem:[%s454] sm:%s3] %v453
    %s456 = scalar_lea.vmem %s0, 284
    %v457 = vld [vmem:[%s456] sm:%s3]
    %s458 = scalar_lea.vmem [#allocation0], 1136
    %459 = vst [vmem:[%s458] sm:%s3] %v457
    %s460 = scalar_lea.vmem %s0, 282
    %v461 = vld [vmem:[%s460] sm:%s3]
    %s462 = scalar_lea.vmem [#allocation0], 1128
    %463 = vst [vmem:[%s462] sm:%s3] %v461
    %s464 = scalar_lea.vmem %s0, 280
    %v465 = vld [vmem:[%s464] sm:%s3]
    %s466 = scalar_lea.vmem [#allocation0], 1120
    %467 = vst [vmem:[%s466] sm:%s3] %v465
    %s468 = scalar_lea.vmem %s0, 278
    %v469 = vld [vmem:[%s468] sm:%s3]
    %s470 = scalar_lea.vmem [#allocation0], 1112
    %471 = vst [vmem:[%s470] sm:%s3] %v469
    %s472 = scalar_lea.vmem %s0, 276
    %v473 = vld [vmem:[%s472] sm:%s3]
    %s474 = scalar_lea.vmem [#allocation0], 1104
    %475 = vst [vmem:[%s474] sm:%s3] %v473
    %s476 = scalar_lea.vmem %s0, 274
    %v477 = vld [vmem:[%s476] sm:%s3]
    %s478 = scalar_lea.vmem [#allocation0], 1096
    %479 = vst [vmem:[%s478] sm:%s3] %v477
    %s480 = scalar_lea.vmem %s0, 272
    %v481 = vld [vmem:[%s480] sm:%s3]
    %s482 = scalar_lea.vmem [#allocation0], 1088
    %483 = vst [vmem:[%s482] sm:%s3] %v481
    %s484 = scalar_lea.vmem %s0, 270
    %v485 = vld [vmem:[%s484] sm:%s3]
    %s486 = scalar_lea.vmem [#allocation0], 1080
    %487 = vst [vmem:[%s486] sm:%s3] %v485
    %s488 = scalar_lea.vmem %s0, 268
    %v489 = vld [vmem:[%s488] sm:%s3]
    %s490 = scalar_lea.vmem [#allocation0], 1072
    %491 = vst [vmem:[%s490] sm:%s3] %v489
    %s492 = scalar_lea.vmem %s0, 266
    %v493 = vld [vmem:[%s492] sm:%s3]
    %s494 = scalar_lea.vmem [#allocation0], 1064
    %495 = vst [vmem:[%s494] sm:%s3] %v493
    %s496 = scalar_lea.vmem %s0, 264
    %v497 = vld [vmem:[%s496] sm:%s3]
    %s498 = scalar_lea.vmem [#allocation0], 1056
    %499 = vst [vmem:[%s498] sm:%s3] %v497
    %s500 = scalar_lea.vmem %s0, 262
    %v501 = vld [vmem:[%s500] sm:%s3]
    %s502 = scalar_lea.vmem [#allocation0], 1048
    %503 = vst [vmem:[%s502] sm:%s3] %v501
    %s504 = scalar_lea.vmem %s0, 260
    %v505 = vld [vmem:[%s504] sm:%s3]
    %s506 = scalar_lea.vmem [#allocation0], 1040
    %507 = vst [vmem:[%s506] sm:%s3] %v505
    %s508 = scalar_lea.vmem %s0, 258
    %v509 = vld [vmem:[%s508] sm:%s3]
    %s510 = scalar_lea.vmem [#allocation0], 1032
    %511 = vst [vmem:[%s510] sm:%s3] %v509
    %s512 = scalar_lea.vmem %s0, 256
    %v513 = vld [vmem:[%s512] sm:%s3]
    %s514 = scalar_lea.vmem [#allocation0], 1024
    %515 = vst [vmem:[%s514] sm:%s3] %v513
    %s516 = scalar_lea.vmem %s0, 254
    %v517 = vld [vmem:[%s516] sm:%s3]
    %s518 = scalar_lea.vmem [#allocation0], 1016
    %519 = vst [vmem:[%s518] sm:%s3] %v517
    %s520 = scalar_lea.vmem %s0, 252
    %v521 = vld [vmem:[%s520] sm:%s3]
    %s522 = scalar_lea.vmem [#allocation0], 1008
    %523 = vst [vmem:[%s522] sm:%s3] %v521
    %s524 = scalar_lea.vmem %s0, 250
    %v525 = vld [vmem:[%s524] sm:%s3]
    %s526 = scalar_lea.vmem [#allocation0], 1000
    %527 = vst [vmem:[%s526] sm:%s3] %v525
    %s528 = scalar_lea.vmem %s0, 248
    %v529 = vld [vmem:[%s528] sm:%s3]
    %s530 = scalar_lea.vmem [#allocation0], 992
    %531 = vst [vmem:[%s530] sm:%s3] %v529
    %s532 = scalar_lea.vmem %s0, 246
    %v533 = vld [vmem:[%s532] sm:%s3]
    %s534 = scalar_lea.vmem [#allocation0], 984
    %535 = vst [vmem:[%s534] sm:%s3] %v533
    %s536 = scalar_lea.vmem %s0, 244
    %v537 = vld [vmem:[%s536] sm:%s3]
    %s538 = scalar_lea.vmem [#allocation0], 976
    %539 = vst [vmem:[%s538] sm:%s3] %v537
    %s540 = scalar_lea.vmem %s0, 242
    %v541 = vld [vmem:[%s540] sm:%s3]
    %s542 = scalar_lea.vmem [#allocation0], 968
    %543 = vst [vmem:[%s542] sm:%s3] %v541
    %s544 = scalar_lea.vmem %s0, 240
    %v545 = vld [vmem:[%s544] sm:%s3]
    %s546 = scalar_lea.vmem [#allocation0], 960
    %547 = vst [vmem:[%s546] sm:%s3] %v545
    %s548 = scalar_lea.vmem %s0, 238
    %v549 = vld [vmem:[%s548] sm:%s3]
    %s550 = scalar_lea.vmem [#allocation0], 952
    %551 = vst [vmem:[%s550] sm:%s3] %v549
    %s552 = scalar_lea.vmem %s0, 236
    %v553 = vld [vmem:[%s552] sm:%s3]
    %s554 = scalar_lea.vmem [#allocation0], 944
    %555 = vst [vmem:[%s554] sm:%s3] %v553
    %s556 = scalar_lea.vmem %s0, 234
    %v557 = vld [vmem:[%s556] sm:%s3]
    %s558 = scalar_lea.vmem [#allocation0], 936
    %559 = vst [vmem:[%s558] sm:%s3] %v557
    %s560 = scalar_lea.vmem %s0, 232
    %v561 = vld [vmem:[%s560] sm:%s3]
    %s562 = scalar_lea.vmem [#allocation0], 928
    %563 = vst [vmem:[%s562] sm:%s3] %v561
    %s564 = scalar_lea.vmem %s0, 230
    %v565 = vld [vmem:[%s564] sm:%s3]
    %s566 = scalar_lea.vmem [#allocation0], 920
    %567 = vst [vmem:[%s566] sm:%s3] %v565
    %s568 = scalar_lea.vmem %s0, 228
    %v569 = vld [vmem:[%s568] sm:%s3]
    %s570 = scalar_lea.vmem [#allocation0], 912
    %571 = vst [vmem:[%s570] sm:%s3] %v569
    %s572 = scalar_lea.vmem %s0, 226
    %v573 = vld [vmem:[%s572] sm:%s3]
    %s574 = scalar_lea.vmem [#allocation0], 904
    %575 = vst [vmem:[%s574] sm:%s3] %v573
    %s576 = scalar_lea.vmem %s0, 224
    %v577 = vld [vmem:[%s576] sm:%s3]
    %s578 = scalar_lea.vmem [#allocation0], 896
    %579 = vst [vmem:[%s578] sm:%s3] %v577
    %s580 = scalar_lea.vmem %s0, 222
    %v581 = vld [vmem:[%s580] sm:%s3]
    %s582 = scalar_lea.vmem [#allocation0], 888
    %583 = vst [vmem:[%s582] sm:%s3] %v581
    %s584 = scalar_lea.vmem %s0, 220
    %v585 = vld [vmem:[%s584] sm:%s3]
    %s586 = scalar_lea.vmem [#allocation0], 880
    %587 = vst [vmem:[%s586] sm:%s3] %v585
    %s588 = scalar_lea.vmem %s0, 218
    %v589 = vld [vmem:[%s588] sm:%s3]
    %s590 = scalar_lea.vmem [#allocation0], 872
    %591 = vst [vmem:[%s590] sm:%s3] %v589
    %s592 = scalar_lea.vmem %s0, 216
    %v593 = vld [vmem:[%s592] sm:%s3]
    %s594 = scalar_lea.vmem [#allocation0], 864
    %595 = vst [vmem:[%s594] sm:%s3] %v593
    %s596 = scalar_lea.vmem %s0, 214
    %v597 = vld [vmem:[%s596] sm:%s3]
    %s598 = scalar_lea.vmem [#allocation0], 856
    %599 = vst [vmem:[%s598] sm:%s3] %v597
    %s600 = scalar_lea.vmem %s0, 212
    %v601 = vld [vmem:[%s600] sm:%s3]
    %s602 = scalar_lea.vmem [#allocation0], 848
    %603 = vst [vmem:[%s602] sm:%s3] %v601
    %s604 = scalar_lea.vmem %s0, 210
    %v605 = vld [vmem:[%s604] sm:%s3]
    %s606 = scalar_lea.vmem [#allocation0], 840
    %607 = vst [vmem:[%s606] sm:%s3] %v605
    %s608 = scalar_lea.vmem %s0, 208
    %v609 = vld [vmem:[%s608] sm:%s3]
    %s610 = scalar_lea.vmem [#allocation0], 832
    %611 = vst [vmem:[%s610] sm:%s3] %v609
    %s612 = scalar_lea.vmem %s0, 206
    %v613 = vld [vmem:[%s612] sm:%s3]
    %s614 = scalar_lea.vmem [#allocation0], 824
    %615 = vst [vmem:[%s614] sm:%s3] %v613
    %s616 = scalar_lea.vmem %s0, 204
    %v617 = vld [vmem:[%s616] sm:%s3]
    %s618 = scalar_lea.vmem [#allocation0], 816
    %619 = vst [vmem:[%s618] sm:%s3] %v617
    %s620 = scalar_lea.vmem %s0, 202
    %v621 = vld [vmem:[%s620] sm:%s3]
    %s622 = scalar_lea.vmem [#allocation0], 808
    %623 = vst [vmem:[%s622] sm:%s3] %v621
    %s624 = scalar_lea.vmem %s0, 200
    %v625 = vld [vmem:[%s624] sm:%s3]
    %s626 = scalar_lea.vmem [#allocation0], 800
    %627 = vst [vmem:[%s626] sm:%s3] %v625
    %s628 = scalar_lea.vmem %s0, 198
    %v629 = vld [vmem:[%s628] sm:%s3]
    %s630 = scalar_lea.vmem [#allocation0], 792
    %631 = vst [vmem:[%s630] sm:%s3] %v629
    %s632 = scalar_lea.vmem %s0, 196
    %v633 = vld [vmem:[%s632] sm:%s3]
    %s634 = scalar_lea.vmem [#allocation0], 784
    %635 = vst [vmem:[%s634] sm:%s3] %v633
    %s636 = scalar_lea.vmem %s0, 194
    %v637 = vld [vmem:[%s636] sm:%s3]
    %s638 = scalar_lea.vmem [#allocation0], 776
    %639 = vst [vmem:[%s638] sm:%s3] %v637
    %s640 = scalar_lea.vmem %s0, 192
    %v641 = vld [vmem:[%s640] sm:%s3]
    %s642 = scalar_lea.vmem [#allocation0], 768
    %643 = vst [vmem:[%s642] sm:%s3] %v641
    %s644 = scalar_lea.vmem %s0, 190
    %v645 = vld [vmem:[%s644] sm:%s3]
    %s646 = scalar_lea.vmem [#allocation0], 760
    %647 = vst [vmem:[%s646] sm:%s3] %v645
    %s648 = scalar_lea.vmem %s0, 188
    %v649 = vld [vmem:[%s648] sm:%s3]
    %s650 = scalar_lea.vmem [#allocation0], 752
    %651 = vst [vmem:[%s650] sm:%s3] %v649
    %s652 = scalar_lea.vmem %s0, 186
    %v653 = vld [vmem:[%s652] sm:%s3]
    %s654 = scalar_lea.vmem [#allocation0], 744
    %655 = vst [vmem:[%s654] sm:%s3] %v653
    %s656 = scalar_lea.vmem %s0, 184
    %v657 = vld [vmem:[%s656] sm:%s3]
    %s658 = scalar_lea.vmem [#allocation0], 736
    %659 = vst [vmem:[%s658] sm:%s3] %v657
    %s660 = scalar_lea.vmem %s0, 182
    %v661 = vld [vmem:[%s660] sm:%s3]
    %s662 = scalar_lea.vmem [#allocation0], 728
    %663 = vst [vmem:[%s662] sm:%s3] %v661
    %s664 = scalar_lea.vmem %s0, 180
    %v665 = vld [vmem:[%s664] sm:%s3]
    %s666 = scalar_lea.vmem [#allocation0], 720
    %667 = vst [vmem:[%s666] sm:%s3] %v665
    %s668 = scalar_lea.vmem %s0, 178
    %v669 = vld [vmem:[%s668] sm:%s3]
    %s670 = scalar_lea.vmem [#allocation0], 712
    %671 = vst [vmem:[%s670] sm:%s3] %v669
    %s672 = scalar_lea.vmem %s0, 176
    %v673 = vld [vmem:[%s672] sm:%s3]
    %s674 = scalar_lea.vmem [#allocation0], 704
    %675 = vst [vmem:[%s674] sm:%s3] %v673
    %s676 = scalar_lea.vmem %s0, 174
    %v677 = vld [vmem:[%s676] sm:%s3]
    %s678 = scalar_lea.vmem [#allocation0], 696
    %679 = vst [vmem:[%s678] sm:%s3] %v677
    %s680 = scalar_lea.vmem %s0, 172
    %v681 = vld [vmem:[%s680] sm:%s3]
    %s682 = scalar_lea.vmem [#allocation0], 688
    %683 = vst [vmem:[%s682] sm:%s3] %v681
    %s684 = scalar_lea.vmem %s0, 170
    %v685 = vld [vmem:[%s684] sm:%s3]
    %s686 = scalar_lea.vmem [#allocation0], 680
    %687 = vst [vmem:[%s686] sm:%s3] %v685
    %s688 = scalar_lea.vmem %s0, 168
    %v689 = vld [vmem:[%s688] sm:%s3]
    %s690 = scalar_lea.vmem [#allocation0], 672
    %691 = vst [vmem:[%s690] sm:%s3] %v689
    %s692 = scalar_lea.vmem %s0, 166
    %v693 = vld [vmem:[%s692] sm:%s3]
    %s694 = scalar_lea.vmem [#allocation0], 664
    %695 = vst [vmem:[%s694] sm:%s3] %v693
    %s696 = scalar_lea.vmem %s0, 164
    %v697 = vld [vmem:[%s696] sm:%s3]
    %s698 = scalar_lea.vmem [#allocation0], 656
    %699 = vst [vmem:[%s698] sm:%s3] %v697
    %s700 = scalar_lea.vmem %s0, 162
    %v701 = vld [vmem:[%s700] sm:%s3]
    %s702 = scalar_lea.vmem [#allocation0], 648
    %703 = vst [vmem:[%s702] sm:%s3] %v701
    %s704 = scalar_lea.vmem %s0, 160
    %v705 = vld [vmem:[%s704] sm:%s3]
    %s706 = scalar_lea.vmem [#allocation0], 640
    %707 = vst [vmem:[%s706] sm:%s3] %v705
    %s708 = scalar_lea.vmem %s0, 158
    %v709 = vld [vmem:[%s708] sm:%s3]
    %s710 = scalar_lea.vmem [#allocation0], 632
    %711 = vst [vmem:[%s710] sm:%s3] %v709
    %s712 = scalar_lea.vmem %s0, 156
    %v713 = vld [vmem:[%s712] sm:%s3]
    %s714 = scalar_lea.vmem [#allocation0], 624
    %715 = vst [vmem:[%s714] sm:%s3] %v713
    %s716 = scalar_lea.vmem %s0, 154
    %v717 = vld [vmem:[%s716] sm:%s3]
    %s718 = scalar_lea.vmem [#allocation0], 616
    %719 = vst [vmem:[%s718] sm:%s3] %v717
    %s720 = scalar_lea.vmem %s0, 152
    %v721 = vld [vmem:[%s720] sm:%s3]
    %s722 = scalar_lea.vmem [#allocation0], 608
    %723 = vst [vmem:[%s722] sm:%s3] %v721
    %s724 = scalar_lea.vmem %s0, 150
    %v725 = vld [vmem:[%s724] sm:%s3]
    %s726 = scalar_lea.vmem [#allocation0], 600
    %727 = vst [vmem:[%s726] sm:%s3] %v725
    %s728 = scalar_lea.vmem %s0, 148
    %v729 = vld [vmem:[%s728] sm:%s3]
    %s730 = scalar_lea.vmem [#allocation0], 592
    %731 = vst [vmem:[%s730] sm:%s3] %v729
    %s732 = scalar_lea.vmem %s0, 146
    %v733 = vld [vmem:[%s732] sm:%s3]
    %s734 = scalar_lea.vmem [#allocation0], 584
    %735 = vst [vmem:[%s734] sm:%s3] %v733
    %s736 = scalar_lea.vmem %s0, 144
    %v737 = vld [vmem:[%s736] sm:%s3]
    %s738 = scalar_lea.vmem [#allocation0], 576
    %739 = vst [vmem:[%s738] sm:%s3] %v737
    %s740 = scalar_lea.vmem %s0, 142
    %v741 = vld [vmem:[%s740] sm:%s3]
    %s742 = scalar_lea.vmem [#allocation0], 568
    %743 = vst [vmem:[%s742] sm:%s3] %v741
    %s744 = scalar_lea.vmem %s0, 140
    %v745 = vld [vmem:[%s744] sm:%s3]
    %s746 = scalar_lea.vmem [#allocation0], 560
    %747 = vst [vmem:[%s746] sm:%s3] %v745
    %s748 = scalar_lea.vmem %s0, 138
    %v749 = vld [vmem:[%s748] sm:%s3]
    %s750 = scalar_lea.vmem [#allocation0], 552
    %751 = vst [vmem:[%s750] sm:%s3] %v749
    %s752 = scalar_lea.vmem %s0, 136
    %v753 = vld [vmem:[%s752] sm:%s3]
    %s754 = scalar_lea.vmem [#allocation0], 544
    %755 = vst [vmem:[%s754] sm:%s3] %v753
    %s756 = scalar_lea.vmem %s0, 134
    %v757 = vld [vmem:[%s756] sm:%s3]
    %s758 = scalar_lea.vmem [#allocation0], 536
    %759 = vst [vmem:[%s758] sm:%s3] %v757
    %s760 = scalar_lea.vmem %s0, 132
    %v761 = vld [vmem:[%s760] sm:%s3]
    %s762 = scalar_lea.vmem [#allocation0], 528
    %763 = vst [vmem:[%s762] sm:%s3] %v761
    %s764 = scalar_lea.vmem %s0, 130
    %v765 = vld [vmem:[%s764] sm:%s3]
    %s766 = scalar_lea.vmem [#allocation0], 520
    %767 = vst [vmem:[%s766] sm:%s3] %v765
    %s768 = scalar_lea.vmem %s0, 128
    %v769 = vld [vmem:[%s768] sm:%s3]
    %s770 = scalar_lea.vmem [#allocation0], 512
    %771 = vst [vmem:[%s770] sm:%s3] %v769
    %s772 = scalar_lea.vmem %s0, 126
    %v773 = vld [vmem:[%s772] sm:%s3]
    %s774 = scalar_lea.vmem [#allocation0], 504
    %775 = vst [vmem:[%s774] sm:%s3] %v773
    %s776 = scalar_lea.vmem %s0, 124
    %v777 = vld [vmem:[%s776] sm:%s3]
    %s778 = scalar_lea.vmem [#allocation0], 496
    %779 = vst [vmem:[%s778] sm:%s3] %v777
    %s780 = scalar_lea.vmem %s0, 122
    %v781 = vld [vmem:[%s780] sm:%s3]
    %s782 = scalar_lea.vmem [#allocation0], 488
    %783 = vst [vmem:[%s782] sm:%s3] %v781
    %s784 = scalar_lea.vmem %s0, 120
    %v785 = vld [vmem:[%s784] sm:%s3]
    %s786 = scalar_lea.vmem [#allocation0], 480
    %787 = vst [vmem:[%s786] sm:%s3] %v785
    %s788 = scalar_lea.vmem %s0, 118
    %v789 = vld [vmem:[%s788] sm:%s3]
    %s790 = scalar_lea.vmem [#allocation0], 472
    %791 = vst [vmem:[%s790] sm:%s3] %v789
    %s792 = scalar_lea.vmem %s0, 116
    %v793 = vld [vmem:[%s792] sm:%s3]
    %s794 = scalar_lea.vmem [#allocation0], 464
    %795 = vst [vmem:[%s794] sm:%s3] %v793
    %s796 = scalar_lea.vmem %s0, 114
    %v797 = vld [vmem:[%s796] sm:%s3]
    %s798 = scalar_lea.vmem [#allocation0], 456
    %799 = vst [vmem:[%s798] sm:%s3] %v797
    %s800 = scalar_lea.vmem %s0, 112
    %v801 = vld [vmem:[%s800] sm:%s3]
    %s802 = scalar_lea.vmem [#allocation0], 448
    %803 = vst [vmem:[%s802] sm:%s3] %v801
    %s804 = scalar_lea.vmem %s0, 110
    %v805 = vld [vmem:[%s804] sm:%s3]
    %s806 = scalar_lea.vmem [#allocation0], 440
    %807 = vst [vmem:[%s806] sm:%s3] %v805
    %s808 = scalar_lea.vmem %s0, 108
    %v809 = vld [vmem:[%s808] sm:%s3]
    %s810 = scalar_lea.vmem [#allocation0], 432
    %811 = vst [vmem:[%s810] sm:%s3] %v809
    %s812 = scalar_lea.vmem %s0, 106
    %v813 = vld [vmem:[%s812] sm:%s3]
    %s814 = scalar_lea.vmem [#allocation0], 424
    %815 = vst [vmem:[%s814] sm:%s3] %v813
    %s816 = scalar_lea.vmem %s0, 104
    %v817 = vld [vmem:[%s816] sm:%s3]
    %s818 = scalar_lea.vmem [#allocation0], 416
    %819 = vst [vmem:[%s818] sm:%s3] %v817
    %s820 = scalar_lea.vmem %s0, 102
    %v821 = vld [vmem:[%s820] sm:%s3]
    %s822 = scalar_lea.vmem [#allocation0], 408
    %823 = vst [vmem:[%s822] sm:%s3] %v821
    %s824 = scalar_lea.vmem %s0, 100
    %v825 = vld [vmem:[%s824] sm:%s3]
    %s826 = scalar_lea.vmem [#allocation0], 400
    %827 = vst [vmem:[%s826] sm:%s3] %v825
    %s828 = scalar_lea.vmem %s0, 98
    %v829 = vld [vmem:[%s828] sm:%s3]
    %s830 = scalar_lea.vmem [#allocation0], 392
    %831 = vst [vmem:[%s830] sm:%s3] %v829
    %s832 = scalar_lea.vmem %s0, 96
    %v833 = vld [vmem:[%s832] sm:%s3]
    %s834 = scalar_lea.vmem [#allocation0], 384
    %835 = vst [vmem:[%s834] sm:%s3] %v833
    %s836 = scalar_lea.vmem %s0, 94
    %v837 = vld [vmem:[%s836] sm:%s3]
    %s838 = scalar_lea.vmem [#allocation0], 376
    %839 = vst [vmem:[%s838] sm:%s3] %v837
    %s840 = scalar_lea.vmem %s0, 92
    %v841 = vld [vmem:[%s840] sm:%s3]
    %s842 = scalar_lea.vmem [#allocation0], 368
    %843 = vst [vmem:[%s842] sm:%s3] %v841
    %s844 = scalar_lea.vmem %s0, 90
    %v845 = vld [vmem:[%s844] sm:%s3]
    %s846 = scalar_lea.vmem [#allocation0], 360
    %847 = vst [vmem:[%s846] sm:%s3] %v845
    %s848 = scalar_lea.vmem %s0, 88
    %v849 = vld [vmem:[%s848] sm:%s3]
    %s850 = scalar_lea.vmem [#allocation0], 352
    %851 = vst [vmem:[%s850] sm:%s3] %v849
    %s852 = scalar_lea.vmem %s0, 86
    %v853 = vld [vmem:[%s852] sm:%s3]
    %s854 = scalar_lea.vmem [#allocation0], 344
    %855 = vst [vmem:[%s854] sm:%s3] %v853
    %s856 = scalar_lea.vmem %s0, 84
    %v857 = vld [vmem:[%s856] sm:%s3]
    %s858 = scalar_lea.vmem [#allocation0], 336
    %859 = vst [vmem:[%s858] sm:%s3] %v857
    %s860 = scalar_lea.vmem %s0, 82
    %v861 = vld [vmem:[%s860] sm:%s3]
    %s862 = scalar_lea.vmem [#allocation0], 328
    %863 = vst [vmem:[%s862] sm:%s3] %v861
    %s864 = scalar_lea.vmem %s0, 80
    %v865 = vld [vmem:[%s864] sm:%s3]
    %s866 = scalar_lea.vmem [#allocation0], 320
    %867 = vst [vmem:[%s866] sm:%s3] %v865
    %s868 = scalar_lea.vmem %s0, 78
    %v869 = vld [vmem:[%s868] sm:%s3]
    %s870 = scalar_lea.vmem [#allocation0], 312
    %871 = vst [vmem:[%s870] sm:%s3] %v869
    %s872 = scalar_lea.vmem %s0, 76
    %v873 = vld [vmem:[%s872] sm:%s3]
    %s874 = scalar_lea.vmem [#allocation0], 304
    %875 = vst [vmem:[%s874] sm:%s3] %v873
    %s876 = scalar_lea.vmem %s0, 74
    %v877 = vld [vmem:[%s876] sm:%s3]
    %s878 = scalar_lea.vmem [#allocation0], 296
    %879 = vst [vmem:[%s878] sm:%s3] %v877
    %s880 = scalar_lea.vmem %s0, 72
    %v881 = vld [vmem:[%s880] sm:%s3]
    %s882 = scalar_lea.vmem [#allocation0], 288
    %883 = vst [vmem:[%s882] sm:%s3] %v881
    %s884 = scalar_lea.vmem %s0, 70
    %v885 = vld [vmem:[%s884] sm:%s3]
    %s886 = scalar_lea.vmem [#allocation0], 280
    %887 = vst [vmem:[%s886] sm:%s3] %v885
    %s888 = scalar_lea.vmem %s0, 68
    %v889 = vld [vmem:[%s888] sm:%s3]
    %s890 = scalar_lea.vmem [#allocation0], 272
    %891 = vst [vmem:[%s890] sm:%s3] %v889
    %s892 = scalar_lea.vmem %s0, 66
    %v893 = vld [vmem:[%s892] sm:%s3]
    %s894 = scalar_lea.vmem [#allocation0], 264
    %895 = vst [vmem:[%s894] sm:%s3] %v893
    %s896 = scalar_lea.vmem %s0, 64
    %v897 = vld [vmem:[%s896] sm:%s3]
    %s898 = scalar_lea.vmem [#allocation0], 256
    %899 = vst [vmem:[%s898] sm:%s3] %v897
    %s900 = scalar_lea.vmem %s0, 62
    %v901 = vld [vmem:[%s900] sm:%s3]
    %s902 = scalar_lea.vmem [#allocation0], 248
    %903 = vst [vmem:[%s902] sm:%s3] %v901
    %s904 = scalar_lea.vmem %s0, 60
    %v905 = vld [vmem:[%s904] sm:%s3]
    %s906 = scalar_lea.vmem [#allocation0], 240
    %907 = vst [vmem:[%s906] sm:%s3] %v905
    %s908 = scalar_lea.vmem %s0, 58
    %v909 = vld [vmem:[%s908] sm:%s3]
    %s910 = scalar_lea.vmem [#allocation0], 232
    %911 = vst [vmem:[%s910] sm:%s3] %v909
    %s912 = scalar_lea.vmem %s0, 56
    %v913 = vld [vmem:[%s912] sm:%s3]
    %s914 = scalar_lea.vmem [#allocation0], 224
    %915 = vst [vmem:[%s914] sm:%s3] %v913
    %s916 = scalar_lea.vmem %s0, 54
    %v917 = vld [vmem:[%s916] sm:%s3]
    %s918 = scalar_lea.vmem [#allocation0], 216
    %919 = vst [vmem:[%s918] sm:%s3] %v917
    %s920 = scalar_lea.vmem %s0, 52
    %v921 = vld [vmem:[%s920] sm:%s3]
    %s922 = scalar_lea.vmem [#allocation0], 208
    %923 = vst [vmem:[%s922] sm:%s3] %v921
    %s924 = scalar_lea.vmem %s0, 50
    %v925 = vld [vmem:[%s924] sm:%s3]
    %s926 = scalar_lea.vmem [#allocation0], 200
    %927 = vst [vmem:[%s926] sm:%s3] %v925
    %s928 = scalar_lea.vmem %s0, 48
    %v929 = vld [vmem:[%s928] sm:%s3]
    %s930 = scalar_lea.vmem [#allocation0], 192
    %931 = vst [vmem:[%s930] sm:%s3] %v929
    %s932 = scalar_lea.vmem %s0, 46
    %v933 = vld [vmem:[%s932] sm:%s3]
    %s934 = scalar_lea.vmem [#allocation0], 184
    %935 = vst [vmem:[%s934] sm:%s3] %v933
    %s936 = scalar_lea.vmem %s0, 44
    %v937 = vld [vmem:[%s936] sm:%s3]
    %s938 = scalar_lea.vmem [#allocation0], 176
    %939 = vst [vmem:[%s938] sm:%s3] %v937
    %s940 = scalar_lea.vmem %s0, 42
    %v941 = vld [vmem:[%s940] sm:%s3]
    %s942 = scalar_lea.vmem [#allocation0], 168
    %943 = vst [vmem:[%s942] sm:%s3] %v941
    %s944 = scalar_lea.vmem %s0, 40
    %v945 = vld [vmem:[%s944] sm:%s3]
    %s946 = scalar_lea.vmem [#allocation0], 160
    %947 = vst [vmem:[%s946] sm:%s3] %v945
    %s948 = scalar_lea.vmem %s0, 38
    %v949 = vld [vmem:[%s948] sm:%s3]
    %s950 = scalar_lea.vmem [#allocation0], 152
    %951 = vst [vmem:[%s950] sm:%s3] %v949
    %s952 = scalar_lea.vmem %s0, 36
    %v953 = vld [vmem:[%s952] sm:%s3]
    %s954 = scalar_lea.vmem [#allocation0], 144
    %955 = vst [vmem:[%s954] sm:%s3] %v953
    %s956 = scalar_lea.vmem %s0, 34
    %v957 = vld [vmem:[%s956] sm:%s3]
    %s958 = scalar_lea.vmem [#allocation0], 136
    %959 = vst [vmem:[%s958] sm:%s3] %v957
    %s960 = scalar_lea.vmem %s0, 32
    %v961 = vld [vmem:[%s960] sm:%s3]
    %s962 = scalar_lea.vmem [#allocation0], 128
    %963 = vst [vmem:[%s962] sm:%s3] %v961
    %s964 = scalar_lea.vmem %s0, 30
    %v965 = vld [vmem:[%s964] sm:%s3]
    %s966 = scalar_lea.vmem [#allocation0], 120
    %967 = vst [vmem:[%s966] sm:%s3] %v965
    %s968 = scalar_lea.vmem %s0, 28
    %v969 = vld [vmem:[%s968] sm:%s3]
    %s970 = scalar_lea.vmem [#allocation0], 112
    %971 = vst [vmem:[%s970] sm:%s3] %v969
    %s972 = scalar_lea.vmem %s0, 26
    %v973 = vld [vmem:[%s972] sm:%s3]
    %s974 = scalar_lea.vmem [#allocation0], 104
    %975 = vst [vmem:[%s974] sm:%s3] %v973
    %s976 = scalar_lea.vmem %s0, 24
    %v977 = vld [vmem:[%s976] sm:%s3]
    %s978 = scalar_lea.vmem [#allocation0], 96
    %979 = vst [vmem:[%s978] sm:%s3] %v977
    %s980 = scalar_lea.vmem %s0, 22
    %v981 = vld [vmem:[%s980] sm:%s3]
    %s982 = scalar_lea.vmem [#allocation0], 88
    %983 = vst [vmem:[%s982] sm:%s3] %v981
    %s984 = scalar_lea.vmem %s0, 20
    %v985 = vld [vmem:[%s984] sm:%s3]
    %s986 = scalar_lea.vmem [#allocation0], 80
    %987 = vst [vmem:[%s986] sm:%s3] %v985
    %s988 = scalar_lea.vmem %s0, 18
    %v989 = vld [vmem:[%s988] sm:%s3]
    %s990 = scalar_lea.vmem [#allocation0], 72
    %991 = vst [vmem:[%s990] sm:%s3] %v989
    %s992 = scalar_lea.vmem %s0, 16
    %v993 = vld [vmem:[%s992] sm:%s3]
    %s994 = scalar_lea.vmem [#allocation0], 64
    %995 = vst [vmem:[%s994] sm:%s3] %v993
    %s996 = scalar_lea.vmem %s0, 14
    %v997 = vld [vmem:[%s996] sm:%s3]
    %s998 = scalar_lea.vmem [#allocation0], 56
    %999 = vst [vmem:[%s998] sm:%s3] %v997
    %s1000 = scalar_lea.vmem %s0, 12
    %v1001 = vld [vmem:[%s1000] sm:%s3]
    %s1002 = scalar_lea.vmem [#allocation0], 48
    %1003 = vst [vmem:[%s1002] sm:%s3] %v1001
    %s1004 = scalar_lea.vmem %s0, 10
    %v1005 = vld [vmem:[%s1004] sm:%s3]
    %s1006 = scalar_lea.vmem [#allocation0], 40
    %1007 = vst [vmem:[%s1006] sm:%s3] %v1005
    %s1008 = scalar_lea.vmem %s0, 8
    %v1009 = vld [vmem:[%s1008] sm:%s3]
    %s1010 = scalar_lea.vmem [#allocation0], 32
    %1011 = vst [vmem:[%s1010] sm:%s3] %v1009
    %s1012 = scalar_lea.vmem %s0, 6
    %v1013 = vld [vmem:[%s1012] sm:%s3]
    %s1014 = scalar_lea.vmem [#allocation0], 24
    %1015 = vst [vmem:[%s1014] sm:%s3] %v1013
    %s1016 = scalar_lea.vmem %s0, 4
    %v1017 = vld [vmem:[%s1016] sm:%s3]
    %s1018 = scalar_lea.vmem [#allocation0], 16
    %1019 = vst [vmem:[%s1018] sm:%s3] %v1017
    %s1020 = scalar_lea.vmem %s0, 2
    %v1021 = vld [vmem:[%s1020] sm:%s3]
    %s1022 = scalar_lea.vmem [#allocation0], 8
    %1023 = vst [vmem:[%s1022] sm:%s3] %v1021
    %v1024 = vld [vmem:[%s0] sm:%s3]
    %1025 = vst [vmem:[#allocation0] sm:%s3] %v1024
    %v1026 = vld [vmem:[#allocation0] ss:$8 sm:$0xf]
    %v1027 = vld [vmem:[#allocation0] ss:$8 sm:$0xf0]
    %vm1028 = vcmask 1047556
    %v1029 = vsel %vm1028, %v1027, %v1026
    %vm1030 = vcmask 64512
    %1031 = vst.msk [vmem:[%s1] sm:$0xff] %vm1030, %v1029
    %s1032 = scalar_lea.vmem [#allocation0], 64
    %v1033 = vld [vmem:[%s1032] ss:$8 sm:$0xf]
    %s1034 = scalar_lea.vmem [#allocation0], 64
    %v1035 = vld [vmem:[%s1034] ss:$8 sm:$0xf0]
    %vm1036 = vcmask 1047556
    %v1037 = vsel %vm1036, %v1035, %v1033
    %vm1038 = vcmask 64512
    %s1039 = scalar_lea.vmem %s1, 8
    %1040 = vst.msk [vmem:[%s1039] sm:$0xff] %vm1038, %v1037
    %s1041 = scalar_lea.vmem [#allocation0], 128
    %v1042 = vld [vmem:[%s1041] ss:$8 sm:$0xf]
    %s1043 = scalar_lea.vmem [#allocation0], 128
    %v1044 = vld [vmem:[%s1043] ss:$8 sm:$0xf0]
    %vm1045 = vcmask 1047556
    %v1046 = vsel %vm1045, %v1044, %v1042
    %vm1047 = vcmask 64512
    %s1048 = scalar_lea.vmem %s1, 16
    %1049 = vst.msk [vmem:[%s1048] sm:$0xff] %vm1047, %v1046
    %s1050 = scalar_lea.vmem [#allocation0], 192
    %v1051 = vld [vmem:[%s1050] ss:$8 sm:$0xf]
    %s1052 = scalar_lea.vmem [#allocation0], 192
    %v1053 = vld [vmem:[%s1052] ss:$8 sm:$0xf0]
    %vm1054 = vcmask 1047556
    %v1055 = vsel %vm1054, %v1053, %v1051
    %vm1056 = vcmask 64512
    %s1057 = scalar_lea.vmem %s1, 24
    %1058 = vst.msk [vmem:[%s1057] sm:$0xff] %vm1056, %v1055
    %s1059 = scalar_lea.vmem [#allocation0], 256
    %v1060 = vld [vmem:[%s1059] ss:$8 sm:$0xf]
    %s1061 = scalar_lea.vmem [#allocation0], 256
    %v1062 = vld [vmem:[%s1061] ss:$8 sm:$0xf0]
    %vm1063 = vcmask 1047556
    %v1064 = vsel %vm1063, %v1062, %v1060
    %vm1065 = vcmask 64512
    %s1066 = scalar_lea.vmem %s1, 32
    %1067 = vst.msk [vmem:[%s1066] sm:$0xff] %vm1065, %v1064
    %s1068 = scalar_lea.vmem [#allocation0], 320
    %v1069 = vld [vmem:[%s1068] ss:$8 sm:$0xf]
    %s1070 = scalar_lea.vmem [#allocation0], 320
    %v1071 = vld [vmem:[%s1070] ss:$8 sm:$0xf0]
    %vm1072 = vcmask 1047556
    %v1073 = vsel %vm1072, %v1071, %v1069
    %vm1074 = vcmask 64512
    %s1075 = scalar_lea.vmem %s1, 40
    %1076 = vst.msk [vmem:[%s1075] sm:$0xff] %vm1074, %v1073
    %s1077 = scalar_lea.vmem [#allocation0], 384
    %v1078 = vld [vmem:[%s1077] ss:$8 sm:$0xf]
    %s1079 = scalar_lea.vmem [#allocation0], 384
    %v1080 = vld [vmem:[%s1079] ss:$8 sm:$0xf0]
    %vm1081 = vcmask 1047556
    %v1082 = vsel %vm1081, %v1080, %v1078
    %vm1083 = vcmask 64512
    %s1084 = scalar_lea.vmem %s1, 48
    %1085 = vst.msk [vmem:[%s1084] sm:$0xff] %vm1083, %v1082
    %s1086 = scalar_lea.vmem [#allocation0], 448
    %v1087 = vld [vmem:[%s1086] ss:$8 sm:$0xf]
    %s1088 = scalar_lea.vmem [#allocation0], 448
    %v1089 = vld [vmem:[%s1088] ss:$8 sm:$0xf0]
    %vm1090 = vcmask 1047556
    %v1091 = vsel %vm1090, %v1089, %v1087
    %vm1092 = vcmask 64512
    %s1093 = scalar_lea.vmem %s1, 56
    %1094 = vst.msk [vmem:[%s1093] sm:$0xff] %vm1092, %v1091
    %s1095 = scalar_lea.vmem [#allocation0], 512
    %v1096 = vld [vmem:[%s1095] ss:$8 sm:$0xf]
    %s1097 = scalar_lea.vmem [#allocation0], 512
    %v1098 = vld [vmem:[%s1097] ss:$8 sm:$0xf0]
    %vm1099 = vcmask 1047556
    %v1100 = vsel %vm1099, %v1098, %v1096
    %vm1101 = vcmask 64512
    %s1102 = scalar_lea.vmem %s1, 64
    %1103 = vst.msk [vmem:[%s1102] sm:$0xff] %vm1101, %v1100
    %s1104 = scalar_lea.vmem [#allocation0], 576
    %v1105 = vld [vmem:[%s1104] ss:$8 sm:$0xf]
    %s1106 = scalar_lea.vmem [#allocation0], 576
    %v1107 = vld [vmem:[%s1106] ss:$8 sm:$0xf0]
    %vm1108 = vcmask 1047556
    %v1109 = vsel %vm1108, %v1107, %v1105
    %vm1110 = vcmask 64512
    %s1111 = scalar_lea.vmem %s1, 72
    %1112 = vst.msk [vmem:[%s1111] sm:$0xff] %vm1110, %v1109
    %s1113 = scalar_lea.vmem [#allocation0], 640
    %v1114 = vld [vmem:[%s1113] ss:$8 sm:$0xf]
    %s1115 = scalar_lea.vmem [#allocation0], 640
    %v1116 = vld [vmem:[%s1115] ss:$8 sm:$0xf0]
    %vm1117 = vcmask 1047556
    %v1118 = vsel %vm1117, %v1116, %v1114
    %vm1119 = vcmask 64512
    %s1120 = scalar_lea.vmem %s1, 80
    %1121 = vst.msk [vmem:[%s1120] sm:$0xff] %vm1119, %v1118
    %s1122 = scalar_lea.vmem [#allocation0], 704
    %v1123 = vld [vmem:[%s1122] ss:$8 sm:$0xf]
    %s1124 = scalar_lea.vmem [#allocation0], 704
    %v1125 = vld [vmem:[%s1124] ss:$8 sm:$0xf0]
    %vm1126 = vcmask 1047556
    %v1127 = vsel %vm1126, %v1125, %v1123
    %vm1128 = vcmask 64512
    %s1129 = scalar_lea.vmem %s1, 88
    %1130 = vst.msk [vmem:[%s1129] sm:$0xff] %vm1128, %v1127
    %s1131 = scalar_lea.vmem [#allocation0], 768
    %v1132 = vld [vmem:[%s1131] ss:$8 sm:$0xf]
    %s1133 = scalar_lea.vmem [#allocation0], 768
    %v1134 = vld [vmem:[%s1133] ss:$8 sm:$0xf0]
    %vm1135 = vcmask 1047556
    %v1136 = vsel %vm1135, %v1134, %v1132
    %vm1137 = vcmask 64512
    %s1138 = scalar_lea.vmem %s1, 96
    %1139 = vst.msk [vmem:[%s1138] sm:$0xff] %vm1137, %v1136
    %s1140 = scalar_lea.vmem [#allocation0], 832
    %v1141 = vld [vmem:[%s1140] ss:$8 sm:$0xf]
    %s1142 = scalar_lea.vmem [#allocation0], 832
    %v1143 = vld [vmem:[%s1142] ss:$8 sm:$0xf0]
    %vm1144 = vcmask 1047556
    %v1145 = vsel %vm1144, %v1143, %v1141
    %vm1146 = vcmask 64512
    %s1147 = scalar_lea.vmem %s1, 104
    %1148 = vst.msk [vmem:[%s1147] sm:$0xff] %vm1146, %v1145
    %s1149 = scalar_lea.vmem [#allocation0], 896
    %v1150 = vld [vmem:[%s1149] ss:$8 sm:$0xf]
    %s1151 = scalar_lea.vmem [#allocation0], 896
    %v1152 = vld [vmem:[%s1151] ss:$8 sm:$0xf0]
    %vm1153 = vcmask 1047556
    %v1154 = vsel %vm1153, %v1152, %v1150
    %vm1155 = vcmask 64512
    %s1156 = scalar_lea.vmem %s1, 112
    %1157 = vst.msk [vmem:[%s1156] sm:$0xff] %vm1155, %v1154
    %s1158 = scalar_lea.vmem [#allocation0], 960
    %v1159 = vld [vmem:[%s1158] ss:$8 sm:$0xf]
    %s1160 = scalar_lea.vmem [#allocation0], 960
    %v1161 = vld [vmem:[%s1160] ss:$8 sm:$0xf0]
    %vm1162 = vcmask 1047556
    %v1163 = vsel %vm1162, %v1161, %v1159
    %vm1164 = vcmask 64512
    %s1165 = scalar_lea.vmem %s1, 120
    %1166 = vst.msk [vmem:[%s1165] sm:$0xff] %vm1164, %v1163
    %s1167 = scalar_lea.vmem [#allocation0], 1024
    %v1168 = vld [vmem:[%s1167] ss:$8 sm:$0xf]
    %s1169 = scalar_lea.vmem [#allocation0], 1024
    %v1170 = vld [vmem:[%s1169] ss:$8 sm:$0xf0]
    %vm1171 = vcmask 1047556
    %v1172 = vsel %vm1171, %v1170, %v1168
    %vm1173 = vcmask 64512
    %s1174 = scalar_lea.vmem %s1, 128
    %1175 = vst.msk [vmem:[%s1174] sm:$0xff] %vm1173, %v1172
    %s1176 = scalar_lea.vmem [#allocation0], 1088
    %v1177 = vld [vmem:[%s1176] ss:$8 sm:$0xf]
    %s1178 = scalar_lea.vmem [#allocation0], 1088
    %v1179 = vld [vmem:[%s1178] ss:$8 sm:$0xf0]
    %vm1180 = vcmask 1047556
    %v1181 = vsel %vm1180, %v1179, %v1177
    %vm1182 = vcmask 64512
    %s1183 = scalar_lea.vmem %s1, 136
    %1184 = vst.msk [vmem:[%s1183] sm:$0xff] %vm1182, %v1181
    %s1185 = scalar_lea.vmem [#allocation0], 1152
    %v1186 = vld [vmem:[%s1185] ss:$8 sm:$0xf]
    %s1187 = scalar_lea.vmem [#allocation0], 1152
    %v1188 = vld [vmem:[%s1187] ss:$8 sm:$0xf0]
    %vm1189 = vcmask 1047556
    %v1190 = vsel %vm1189, %v1188, %v1186
    %vm1191 = vcmask 64512
    %s1192 = scalar_lea.vmem %s1, 144
    %1193 = vst.msk [vmem:[%s1192] sm:$0xff] %vm1191, %v1190
    %s1194 = scalar_lea.vmem [#allocation0], 1216
    %v1195 = vld [vmem:[%s1194] ss:$8 sm:$0xf]
    %s1196 = scalar_lea.vmem [#allocation0], 1216
    %v1197 = vld [vmem:[%s1196] ss:$8 sm:$0xf0]
    %vm1198 = vcmask 1047556
    %v1199 = vsel %vm1198, %v1197, %v1195
    %vm1200 = vcmask 64512
    %s1201 = scalar_lea.vmem %s1, 152
    %1202 = vst.msk [vmem:[%s1201] sm:$0xff] %vm1200, %v1199
    %s1203 = scalar_lea.vmem [#allocation0], 1280
    %v1204 = vld [vmem:[%s1203] ss:$8 sm:$0xf]
    %s1205 = scalar_lea.vmem [#allocation0], 1280
    %v1206 = vld [vmem:[%s1205] ss:$8 sm:$0xf0]
    %vm1207 = vcmask 1047556
    %v1208 = vsel %vm1207, %v1206, %v1204
    %vm1209 = vcmask 64512
    %s1210 = scalar_lea.vmem %s1, 160
    %1211 = vst.msk [vmem:[%s1210] sm:$0xff] %vm1209, %v1208
    %s1212 = scalar_lea.vmem [#allocation0], 1344
    %v1213 = vld [vmem:[%s1212] ss:$8 sm:$0xf]
    %s1214 = scalar_lea.vmem [#allocation0], 1344
    %v1215 = vld [vmem:[%s1214] ss:$8 sm:$0xf0]
    %vm1216 = vcmask 1047556
    %v1217 = vsel %vm1216, %v1215, %v1213
    %vm1218 = vcmask 64512
    %s1219 = scalar_lea.vmem %s1, 168
    %1220 = vst.msk [vmem:[%s1219] sm:$0xff] %vm1218, %v1217
    %s1221 = scalar_lea.vmem [#allocation0], 1408
    %v1222 = vld [vmem:[%s1221] ss:$8 sm:$0xf]
    %s1223 = scalar_lea.vmem [#allocation0], 1408
    %v1224 = vld [vmem:[%s1223] ss:$8 sm:$0xf0]
    %vm1225 = vcmask 1047556
    %v1226 = vsel %vm1225, %v1224, %v1222
    %vm1227 = vcmask 64512
    %s1228 = scalar_lea.vmem %s1, 176
    %1229 = vst.msk [vmem:[%s1228] sm:$0xff] %vm1227, %v1226
    %s1230 = scalar_lea.vmem [#allocation0], 1472
    %v1231 = vld [vmem:[%s1230] ss:$8 sm:$0xf]
    %s1232 = scalar_lea.vmem [#allocation0], 1472
    %v1233 = vld [vmem:[%s1232] ss:$8 sm:$0xf0]
    %vm1234 = vcmask 1047556
    %v1235 = vsel %vm1234, %v1233, %v1231
    %vm1236 = vcmask 64512
    %s1237 = scalar_lea.vmem %s1, 184
    %1238 = vst.msk [vmem:[%s1237] sm:$0xff] %vm1236, %v1235
    %s1239 = scalar_lea.vmem [#allocation0], 1536
    %v1240 = vld [vmem:[%s1239] ss:$8 sm:$0xf]
    %s1241 = scalar_lea.vmem [#allocation0], 1536
    %v1242 = vld [vmem:[%s1241] ss:$8 sm:$0xf0]
    %vm1243 = vcmask 1047556
    %v1244 = vsel %vm1243, %v1242, %v1240
    %vm1245 = vcmask 64512
    %s1246 = scalar_lea.vmem %s1, 192
    %1247 = vst.msk [vmem:[%s1246] sm:$0xff] %vm1245, %v1244
    %s1248 = scalar_lea.vmem [#allocation0], 1600
    %v1249 = vld [vmem:[%s1248] ss:$8 sm:$0xf]
    %s1250 = scalar_lea.vmem [#allocation0], 1600
    %v1251 = vld [vmem:[%s1250] ss:$8 sm:$0xf0]
    %vm1252 = vcmask 1047556
    %v1253 = vsel %vm1252, %v1251, %v1249
    %vm1254 = vcmask 64512
    %s1255 = scalar_lea.vmem %s1, 200
    %1256 = vst.msk [vmem:[%s1255] sm:$0xff] %vm1254, %v1253
    %s1257 = scalar_lea.vmem [#allocation0], 1664
    %v1258 = vld [vmem:[%s1257] ss:$8 sm:$0xf]
    %s1259 = scalar_lea.vmem [#allocation0], 1664
    %v1260 = vld [vmem:[%s1259] ss:$8 sm:$0xf0]
    %vm1261 = vcmask 1047556
    %v1262 = vsel %vm1261, %v1260, %v1258
    %vm1263 = vcmask 64512
    %s1264 = scalar_lea.vmem %s1, 208
    %1265 = vst.msk [vmem:[%s1264] sm:$0xff] %vm1263, %v1262
    %s1266 = scalar_lea.vmem [#allocation0], 1728
    %v1267 = vld [vmem:[%s1266] ss:$8 sm:$0xf]
    %s1268 = scalar_lea.vmem [#allocation0], 1728
    %v1269 = vld [vmem:[%s1268] ss:$8 sm:$0xf0]
    %vm1270 = vcmask 1047556
    %v1271 = vsel %vm1270, %v1269, %v1267
    %vm1272 = vcmask 64512
    %s1273 = scalar_lea.vmem %s1, 216
    %1274 = vst.msk [vmem:[%s1273] sm:$0xff] %vm1272, %v1271
    %s1275 = scalar_lea.vmem [#allocation0], 1792
    %v1276 = vld [vmem:[%s1275] ss:$8 sm:$0xf]
    %s1277 = scalar_lea.vmem [#allocation0], 1792
    %v1278 = vld [vmem:[%s1277] ss:$8 sm:$0xf0]
    %vm1279 = vcmask 1047556
    %v1280 = vsel %vm1279, %v1278, %v1276
    %vm1281 = vcmask 64512
    %s1282 = scalar_lea.vmem %s1, 224
    %1283 = vst.msk [vmem:[%s1282] sm:$0xff] %vm1281, %v1280
    %s1284 = scalar_lea.vmem [#allocation0], 1856
    %v1285 = vld [vmem:[%s1284] ss:$8 sm:$0xf]
    %s1286 = scalar_lea.vmem [#allocation0], 1856
    %v1287 = vld [vmem:[%s1286] ss:$8 sm:$0xf0]
    %vm1288 = vcmask 1047556
    %v1289 = vsel %vm1288, %v1287, %v1285
    %vm1290 = vcmask 64512
    %s1291 = scalar_lea.vmem %s1, 232
    %1292 = vst.msk [vmem:[%s1291] sm:$0xff] %vm1290, %v1289
    %s1293 = scalar_lea.vmem [#allocation0], 1920
    %v1294 = vld [vmem:[%s1293] ss:$8 sm:$0xf]
    %s1295 = scalar_lea.vmem [#allocation0], 1920
    %v1296 = vld [vmem:[%s1295] ss:$8 sm:$0xf0]
    %vm1297 = vcmask 1047556
    %v1298 = vsel %vm1297, %v1296, %v1294
    %vm1299 = vcmask 64512
    %s1300 = scalar_lea.vmem %s1, 240
    %1301 = vst.msk [vmem:[%s1300] sm:$0xff] %vm1299, %v1298
    %s1302 = scalar_lea.vmem [#allocation0], 1984
    %v1303 = vld [vmem:[%s1302] ss:$8 sm:$0xf]
    %s1304 = scalar_lea.vmem [#allocation0], 1984
    %v1305 = vld [vmem:[%s1304] ss:$8 sm:$0xf0]
    %vm1306 = vcmask 1047556
    %v1307 = vsel %vm1306, %v1305, %v1303
    %vm1308 = vcmask 64512
    %s1309 = scalar_lea.vmem %s1, 248
    %1310 = vst.msk [vmem:[%s1309] sm:$0xff] %vm1308, %v1307
    %s1311 = scalar_lea.vmem [#allocation0], 1
    %v1312 = vld [vmem:[%s1311] ss:$8 sm:$0xf]
    %s1313 = scalar_lea.vmem [#allocation0], 1
    %v1314 = vld [vmem:[%s1313] ss:$8 sm:$0xf0]
    %vm1315 = vcmask 1047556
    %v1316 = vsel %vm1315, %v1314, %v1312
    %1317 = vrot.lane.b32.xlu0 %v1316, 8
    %v1318 = vpop.permute.xlu0 %1317
    %vm1319 = vcmask 130112
    %1320 = vst.msk [vmem:[%s1] sm:$0xff] %vm1319, %v1318
    %s1321 = scalar_lea.vmem [#allocation0], 257
    %v1322 = vld [vmem:[%s1321] ss:$8 sm:$0xf]
    %s1323 = scalar_lea.vmem [#allocation0], 257
    %v1324 = vld [vmem:[%s1323] ss:$8 sm:$0xf0]
    %vm1325 = vcmask 1047556
    %v1326 = vsel %vm1325, %v1324, %v1322
    %1327 = vrot.lane.b32.xlu0 %v1326, 8
    %v1328 = vpop.permute.xlu0 %1327
    %vm1329 = vcmask 130112
    %s1330 = scalar_lea.vmem %s1, 32
    %1331 = vst.msk [vmem:[%s1330] sm:$0xff] %vm1329, %v1328
    %s1332 = scalar_lea.vmem [#allocation0], 513
    %v1333 = vld [vmem:[%s1332] ss:$8 sm:$0xf]
    %s1334 = scalar_lea.vmem [#allocation0], 513
    %v1335 = vld [vmem:[%s1334] ss:$8 sm:$0xf0]
    %vm1336 = vcmask 1047556
    %v1337 = vsel %vm1336, %v1335, %v1333
    %1338 = vrot.lane.b32.xlu0 %v1337, 8
    %v1339 = vpop.permute.xlu0 %1338
    %vm1340 = vcmask 130112
    %s1341 = scalar_lea.vmem %s1, 64
    %1342 = vst.msk [vmem:[%s1341] sm:$0xff] %vm1340, %v1339
    %s1343 = scalar_lea.vmem [#allocation0], 769
    %v1344 = vld [vmem:[%s1343] ss:$8 sm:$0xf]
    %s1345 = scalar_lea.vmem [#allocation0], 769
    %v1346 = vld [vmem:[%s1345] ss:$8 sm:$0xf0]
    %vm1347 = vcmask 1047556
    %v1348 = vsel %vm1347, %v1346, %v1344
    %1349 = vrot.lane.b32.xlu0 %v1348, 8
    %v1350 = vpop.permute.xlu0 %1349
    %vm1351 = vcmask 130112
    %s1352 = scalar_lea.vmem %s1, 96
    %1353 = vst.msk [vmem:[%s1352] sm:$0xff] %vm1351, %v1350
    %s1354 = scalar_lea.vmem [#allocation0], 1025
    %v1355 = vld [vmem:[%s1354] ss:$8 sm:$0xf]
    %s1356 = scalar_lea.vmem [#allocation0], 1025
    %v1357 = vld [vmem:[%s1356] ss:$8 sm:$0xf0]
    %vm1358 = vcmask 1047556
    %v1359 = vsel %vm1358, %v1357, %v1355
    %1360 = vrot.lane.b32.xlu0 %v1359, 8
    %v1361 = vpop.permute.xlu0 %1360
    %vm1362 = vcmask 130112
    %s1363 = scalar_lea.vmem %s1, 128
    %1364 = vst.msk [vmem:[%s1363] sm:$0xff] %vm1362, %v1361
    %s1365 = scalar_lea.vmem [#allocation0], 1281
    %v1366 = vld [vmem:[%s1365] ss:$8 sm:$0xf]
    %s1367 = scalar_lea.vmem [#allocation0], 1281
    %v1368 = vld [vmem:[%s1367] ss:$8 sm:$0xf0]
    %vm1369 = vcmask 1047556
    %v1370 = vsel %vm1369, %v1368, %v1366
    %1371 = vrot.lane.b32.xlu0 %v1370, 8
    %v1372 = vpop.permute.xlu0 %1371
    %vm1373 = vcmask 130112
    %s1374 = scalar_lea.vmem %s1, 160
    %1375 = vst.msk [vmem:[%s1374] sm:$0xff] %vm1373, %v1372
    %s1376 = scalar_lea.vmem [#allocation0], 1537
    %v1377 = vld [vmem:[%s1376] ss:$8 sm:$0xf]
    %s1378 = scalar_lea.vmem [#allocation0], 1537
    %v1379 = vld [vmem:[%s1378] ss:$8 sm:$0xf0]
    %vm1380 = vcmask 1047556
    %v1381 = vsel %vm1380, %v1379, %v1377
    %1382 = vrot.lane.b32.xlu0 %v1381, 8
    %v1383 = vpop.permute.xlu0 %1382
    %vm1384 = vcmask 130112
    %s1385 = scalar_lea.vmem %s1, 192
    %1386 = vst.msk [vmem:[%s1385] sm:$0xff] %vm1384, %v1383
    %s1387 = scalar_lea.vmem [#allocation0], 1793
    %v1388 = vld [vmem:[%s1387] ss:$8 sm:$0xf]
    %s1389 = scalar_lea.vmem [#allocation0], 1793
    %v1390 = vld [vmem:[%s1389] ss:$8 sm:$0xf0]
    %vm1391 = vcmask 1047556
    %v1392 = vsel %vm1391, %v1390, %v1388
    %1393 = vrot.lane.b32.xlu0 %v1392, 8
    %v1394 = vpop.permute.xlu0 %1393
    %vm1395 = vcmask 130112
    %s1396 = scalar_lea.vmem %s1, 224
    %1397 = vst.msk [vmem:[%s1396] sm:$0xff] %vm1395, %v1394
    %s1398 = scalar_lea.vmem [#allocation0], 65
    %v1399 = vld [vmem:[%s1398] ss:$8 sm:$0xf]
    %s1400 = scalar_lea.vmem [#allocation0], 65
    %v1401 = vld [vmem:[%s1400] ss:$8 sm:$0xf0]
    %vm1402 = vcmask 1047556
    %v1403 = vsel %vm1402, %v1401, %v1399
    %1404 = vrot.lane.b32.xlu0 %v1403, 8
    %v1405 = vpop.permute.xlu0 %1404
    %vm1406 = vcmask 130112
    %s1407 = scalar_lea.vmem %s1, 8
    %1408 = vst.msk [vmem:[%s1407] sm:$0xff] %vm1406, %v1405
    %s1409 = scalar_lea.vmem [#allocation0], 321
    %v1410 = vld [vmem:[%s1409] ss:$8 sm:$0xf]
    %s1411 = scalar_lea.vmem [#allocation0], 321
    %v1412 = vld [vmem:[%s1411] ss:$8 sm:$0xf0]
    %vm1413 = vcmask 1047556
    %v1414 = vsel %vm1413, %v1412, %v1410
    %1415 = vrot.lane.b32.xlu0 %v1414, 8
    %v1416 = vpop.permute.xlu0 %1415
    %vm1417 = vcmask 130112
    %s1418 = scalar_lea.vmem %s1, 40
    %1419 = vst.msk [vmem:[%s1418] sm:$0xff] %vm1417, %v1416
    %s1420 = scalar_lea.vmem [#allocation0], 577
    %v1421 = vld [vmem:[%s1420] ss:$8 sm:$0xf]
    %s1422 = scalar_lea.vmem [#allocation0], 577
    %v1423 = vld [vmem:[%s1422] ss:$8 sm:$0xf0]
    %vm1424 = vcmask 1047556
    %v1425 = vsel %vm1424, %v1423, %v1421
    %1426 = vrot.lane.b32.xlu0 %v1425, 8
    %v1427 = vpop.permute.xlu0 %1426
    %vm1428 = vcmask 130112
    %s1429 = scalar_lea.vmem %s1, 72
    %1430 = vst.msk [vmem:[%s1429] sm:$0xff] %vm1428, %v1427
    %s1431 = scalar_lea.vmem [#allocation0], 833
    %v1432 = vld [vmem:[%s1431] ss:$8 sm:$0xf]
    %s1433 = scalar_lea.vmem [#allocation0], 833
    %v1434 = vld [vmem:[%s1433] ss:$8 sm:$0xf0]
    %vm1435 = vcmask 1047556
    %v1436 = vsel %vm1435, %v1434, %v1432
    %1437 = vrot.lane.b32.xlu0 %v1436, 8
    %v1438 = vpop.permute.xlu0 %1437
    %vm1439 = vcmask 130112
    %s1440 = scalar_lea.vmem %s1, 104
    %1441 = vst.msk [vmem:[%s1440] sm:$0xff] %vm1439, %v1438
    %s1442 = scalar_lea.vmem [#allocation0], 1089
    %v1443 = vld [vmem:[%s1442] ss:$8 sm:$0xf]
    %s1444 = scalar_lea.vmem [#allocation0], 1089
    %v1445 = vld [vmem:[%s1444] ss:$8 sm:$0xf0]
    %vm1446 = vcmask 1047556
    %v1447 = vsel %vm1446, %v1445, %v1443
    %1448 = vrot.lane.b32.xlu0 %v1447, 8
    %v1449 = vpop.permute.xlu0 %1448
    %vm1450 = vcmask 130112
    %s1451 = scalar_lea.vmem %s1, 136
    %1452 = vst.msk [vmem:[%s1451] sm:$0xff] %vm1450, %v1449
    %s1453 = scalar_lea.vmem [#allocation0], 1345
    %v1454 = vld [vmem:[%s1453] ss:$8 sm:$0xf]
    %s1455 = scalar_lea.vmem [#allocation0], 1345
    %v1456 = vld [vmem:[%s1455] ss:$8 sm:$0xf0]
    %vm1457 = vcmask 1047556
    %v1458 = vsel %vm1457, %v1456, %v1454
    %1459 = vrot.lane.b32.xlu0 %v1458, 8
    %v1460 = vpop.permute.xlu0 %1459
    %vm1461 = vcmask 130112
    %s1462 = scalar_lea.vmem %s1, 168
    %1463 = vst.msk [vmem:[%s1462] sm:$0xff] %vm1461, %v1460
    %s1464 = scalar_lea.vmem [#allocation0], 1601
    %v1465 = vld [vmem:[%s1464] ss:$8 sm:$0xf]
    %s1466 = scalar_lea.vmem [#allocation0], 1601
    %v1467 = vld [vmem:[%s1466] ss:$8 sm:$0xf0]
    %vm1468 = vcmask 1047556
    %v1469 = vsel %vm1468, %v1467, %v1465
    %1470 = vrot.lane.b32.xlu0 %v1469, 8
    %v1471 = vpop.permute.xlu0 %1470
    %vm1472 = vcmask 130112
    %s1473 = scalar_lea.vmem %s1, 200
    %1474 = vst.msk [vmem:[%s1473] sm:$0xff] %vm1472, %v1471
    %s1475 = scalar_lea.vmem [#allocation0], 1857
    %v1476 = vld [vmem:[%s1475] ss:$8 sm:$0xf]
    %s1477 = scalar_lea.vmem [#allocation0], 1857
    %v1478 = vld [vmem:[%s1477] ss:$8 sm:$0xf0]
    %vm1479 = vcmask 1047556
    %v1480 = vsel %vm1479, %v1478, %v1476
    %1481 = vrot.lane.b32.xlu0 %v1480, 8
    %v1482 = vpop.permute.xlu0 %1481
    %vm1483 = vcmask 130112
    %s1484 = scalar_lea.vmem %s1, 232
    %1485 = vst.msk [vmem:[%s1484] sm:$0xff] %vm1483, %v1482
    %s1486 = scalar_lea.vmem [#allocation0], 129
    %v1487 = vld [vmem:[%s1486] ss:$8 sm:$0xf]
    %s1488 = scalar_lea.vmem [#allocation0], 129
    %v1489 = vld [vmem:[%s1488] ss:$8 sm:$0xf0]
    %vm1490 = vcmask 1047556
    %v1491 = vsel %vm1490, %v1489, %v1487
    %1492 = vrot.lane.b32.xlu0 %v1491, 8
    %v1493 = vpop.permute.xlu0 %1492
    %vm1494 = vcmask 130112
    %s1495 = scalar_lea.vmem %s1, 16
    %1496 = vst.msk [vmem:[%s1495] sm:$0xff] %vm1494, %v1493
    %s1497 = scalar_lea.vmem [#allocation0], 385
    %v1498 = vld [vmem:[%s1497] ss:$8 sm:$0xf]
    %s1499 = scalar_lea.vmem [#allocation0], 385
    %v1500 = vld [vmem:[%s1499] ss:$8 sm:$0xf0]
    %vm1501 = vcmask 1047556
    %v1502 = vsel %vm1501, %v1500, %v1498
    %1503 = vrot.lane.b32.xlu0 %v1502, 8
    %v1504 = vpop.permute.xlu0 %1503
    %vm1505 = vcmask 130112
    %s1506 = scalar_lea.vmem %s1, 48
    %1507 = vst.msk [vmem:[%s1506] sm:$0xff] %vm1505, %v1504
    %s1508 = scalar_lea.vmem [#allocation0], 641
    %v1509 = vld [vmem:[%s1508] ss:$8 sm:$0xf]
    %s1510 = scalar_lea.vmem [#allocation0], 641
    %v1511 = vld [vmem:[%s1510] ss:$8 sm:$0xf0]
    %vm1512 = vcmask 1047556
    %v1513 = vsel %vm1512, %v1511, %v1509
    %1514 = vrot.lane.b32.xlu0 %v1513, 8
    %v1515 = vpop.permute.xlu0 %1514
    %vm1516 = vcmask 130112
    %s1517 = scalar_lea.vmem %s1, 80
    %1518 = vst.msk [vmem:[%s1517] sm:$0xff] %vm1516, %v1515
    %s1519 = scalar_lea.vmem [#allocation0], 897
    %v1520 = vld [vmem:[%s1519] ss:$8 sm:$0xf]
    %s1521 = scalar_lea.vmem [#allocation0], 897
    %v1522 = vld [vmem:[%s1521] ss:$8 sm:$0xf0]
    %vm1523 = vcmask 1047556
    %v1524 = vsel %vm1523, %v1522, %v1520
    %1525 = vrot.lane.b32.xlu0 %v1524, 8
    %v1526 = vpop.permute.xlu0 %1525
    %vm1527 = vcmask 130112
    %s1528 = scalar_lea.vmem %s1, 112
    %1529 = vst.msk [vmem:[%s1528] sm:$0xff] %vm1527, %v1526
    %s1530 = scalar_lea.vmem [#allocation0], 1153
    %v1531 = vld [vmem:[%s1530] ss:$8 sm:$0xf]
    %s1532 = scalar_lea.vmem [#allocation0], 1153
    %v1533 = vld [vmem:[%s1532] ss:$8 sm:$0xf0]
    %vm1534 = vcmask 1047556
    %v1535 = vsel %vm1534, %v1533, %v1531
    %1536 = vrot.lane.b32.xlu0 %v1535, 8
    %v1537 = vpop.permute.xlu0 %1536
    %vm1538 = vcmask 130112
    %s1539 = scalar_lea.vmem %s1, 144
    %1540 = vst.msk [vmem:[%s1539] sm:$0xff] %vm1538, %v1537
    %s1541 = scalar_lea.vmem [#allocation0], 1409
    %v1542 = vld [vmem:[%s1541] ss:$8 sm:$0xf]
    %s1543 = scalar_lea.vmem [#allocation0], 1409
    %v1544 = vld [vmem:[%s1543] ss:$8 sm:$0xf0]
    %vm1545 = vcmask 1047556
    %v1546 = vsel %vm1545, %v1544, %v1542
    %1547 = vrot.lane.b32.xlu0 %v1546, 8
    %v1548 = vpop.permute.xlu0 %1547
    %vm1549 = vcmask 130112
    %s1550 = scalar_lea.vmem %s1, 176
    %1551 = vst.msk [vmem:[%s1550] sm:$0xff] %vm1549, %v1548
    %s1552 = scalar_lea.vmem [#allocation0], 1665
    %v1553 = vld [vmem:[%s1552] ss:$8 sm:$0xf]
    %s1554 = scalar_lea.vmem [#allocation0], 1665
    %v1555 = vld [vmem:[%s1554] ss:$8 sm:$0xf0]
    %vm1556 = vcmask 1047556
    %v1557 = vsel %vm1556, %v1555, %v1553
    %1558 = vrot.lane.b32.xlu0 %v1557, 8
    %v1559 = vpop.permute.xlu0 %1558
    %vm1560 = vcmask 130112
    %s1561 = scalar_lea.vmem %s1, 208
    %1562 = vst.msk [vmem:[%s1561] sm:$0xff] %vm1560, %v1559
    %s1563 = scalar_lea.vmem [#allocation0], 1921
    %v1564 = vld [vmem:[%s1563] ss:$8 sm:$0xf]
    %s1565 = scalar_lea.vmem [#allocation0], 1921
    %v1566 = vld [vmem:[%s1565] ss:$8 sm:$0xf0]
    %vm1567 = vcmask 1047556
    %v1568 = vsel %vm1567, %v1566, %v1564
    %1569 = vrot.lane.b32.xlu0 %v1568, 8
    %v1570 = vpop.permute.xlu0 %1569
    %vm1571 = vcmask 130112
    %s1572 = scalar_lea.vmem %s1, 240
    %1573 = vst.msk [vmem:[%s1572] sm:$0xff] %vm1571, %v1570
    %s1574 = scalar_lea.vmem [#allocation0], 193
    %v1575 = vld [vmem:[%s1574] ss:$8 sm:$0xf]
    %s1576 = scalar_lea.vmem [#allocation0], 193
    %v1577 = vld [vmem:[%s1576] ss:$8 sm:$0xf0]
    %vm1578 = vcmask 1047556
    %v1579 = vsel %vm1578, %v1577, %v1575
    %1580 = vrot.lane.b32.xlu0 %v1579, 8
    %v1581 = vpop.permute.xlu0 %1580
    %vm1582 = vcmask 130112
    %s1583 = scalar_lea.vmem %s1, 24
    %1584 = vst.msk [vmem:[%s1583] sm:$0xff] %vm1582, %v1581
    %s1585 = scalar_lea.vmem [#allocation0], 449
    %v1586 = vld [vmem:[%s1585] ss:$8 sm:$0xf]
    %s1587 = scalar_lea.vmem [#allocation0], 449
    %v1588 = vld [vmem:[%s1587] ss:$8 sm:$0xf0]
    %vm1589 = vcmask 1047556
    %v1590 = vsel %vm1589, %v1588, %v1586
    %1591 = vrot.lane.b32.xlu0 %v1590, 8
    %v1592 = vpop.permute.xlu0 %1591
    %vm1593 = vcmask 130112
    %s1594 = scalar_lea.vmem %s1, 56
    %1595 = vst.msk [vmem:[%s1594] sm:$0xff] %vm1593, %v1592
    %s1596 = scalar_lea.vmem [#allocation0], 705
    %v1597 = vld [vmem:[%s1596] ss:$8 sm:$0xf]
    %s1598 = scalar_lea.vmem [#allocation0], 705
    %v1599 = vld [vmem:[%s1598] ss:$8 sm:$0xf0]
    %vm1600 = vcmask 1047556
    %v1601 = vsel %vm1600, %v1599, %v1597
    %1602 = vrot.lane.b32.xlu0 %v1601, 8
    %v1603 = vpop.permute.xlu0 %1602
    %vm1604 = vcmask 130112
    %s1605 = scalar_lea.vmem %s1, 88
    %1606 = vst.msk [vmem:[%s1605] sm:$0xff] %vm1604, %v1603
    %s1607 = scalar_lea.vmem [#allocation0], 961
    %v1608 = vld [vmem:[%s1607] ss:$8 sm:$0xf]
    %s1609 = scalar_lea.vmem [#allocation0], 961
    %v1610 = vld [vmem:[%s1609] ss:$8 sm:$0xf0]
    %vm1611 = vcmask 1047556
    %v1612 = vsel %vm1611, %v1610, %v1608
    %1613 = vrot.lane.b32.xlu0 %v1612, 8
    %v1614 = vpop.permute.xlu0 %1613
    %vm1615 = vcmask 130112
    %s1616 = scalar_lea.vmem %s1, 120
    %1617 = vst.msk [vmem:[%s1616] sm:$0xff] %vm1615, %v1614
    %s1618 = scalar_lea.vmem [#allocation0], 1217
    %v1619 = vld [vmem:[%s1618] ss:$8 sm:$0xf]
    %s1620 = scalar_lea.vmem [#allocation0], 1217
    %v1621 = vld [vmem:[%s1620] ss:$8 sm:$0xf0]
    %vm1622 = vcmask 1047556
    %v1623 = vsel %vm1622, %v1621, %v1619
    %1624 = vrot.lane.b32.xlu0 %v1623, 8
    %v1625 = vpop.permute.xlu0 %1624
    %vm1626 = vcmask 130112
    %s1627 = scalar_lea.vmem %s1, 152
    %1628 = vst.msk [vmem:[%s1627] sm:$0xff] %vm1626, %v1625
    %s1629 = scalar_lea.vmem [#allocation0], 1473
    %v1630 = vld [vmem:[%s1629] ss:$8 sm:$0xf]
    %s1631 = scalar_lea.vmem [#allocation0], 1473
    %v1632 = vld [vmem:[%s1631] ss:$8 sm:$0xf0]
    %vm1633 = vcmask 1047556
    %v1634 = vsel %vm1633, %v1632, %v1630
    %1635 = vrot.lane.b32.xlu0 %v1634, 8
    %v1636 = vpop.permute.xlu0 %1635
    %vm1637 = vcmask 130112
    %s1638 = scalar_lea.vmem %s1, 184
    %1639 = vst.msk [vmem:[%s1638] sm:$0xff] %vm1637, %v1636
    %s1640 = scalar_lea.vmem [#allocation0], 1729
    %v1641 = vld [vmem:[%s1640] ss:$8 sm:$0xf]
    %s1642 = scalar_lea.vmem [#allocation0], 1729
    %v1643 = vld [vmem:[%s1642] ss:$8 sm:$0xf0]
    %vm1644 = vcmask 1047556
    %v1645 = vsel %vm1644, %v1643, %v1641
    %1646 = vrot.lane.b32.xlu0 %v1645, 8
    %v1647 = vpop.permute.xlu0 %1646
    %vm1648 = vcmask 130112
    %s1649 = scalar_lea.vmem %s1, 216
    %1650 = vst.msk [vmem:[%s1649] sm:$0xff] %vm1648, %v1647
    %s1651 = scalar_lea.vmem [#allocation0], 1985
    %v1652 = vld [vmem:[%s1651] ss:$8 sm:$0xf]
    %s1653 = scalar_lea.vmem [#allocation0], 1985
    %v1654 = vld [vmem:[%s1653] ss:$8 sm:$0xf0]
    %vm1655 = vcmask 1047556
    %v1656 = vsel %vm1655, %v1654, %v1652
    %1657 = vrot.lane.b32.xlu0 %v1656, 8
    %v1658 = vpop.permute.xlu0 %1657
    %vm1659 = vcmask 130112
    %s1660 = scalar_lea.vmem %s1, 248
    %1661 = vst.msk [vmem:[%s1660] sm:$0xff] %vm1659, %v1658

// kernel: ffc_forward.5
$region0: #{ffc_forward.5}
  #allocation0 [shape = 'u32[]', space=smem, size = 0x4, offset = 0x4, fixed_abs, tag = 'smem constant byte address 0x4 - core index']
  #allocation1 [shape = 'u32[72,128]{1,0:T(1,128)}', space=vmem, size = 0x9000, scoped, tag = 'internal scratch']
  %s0 = inlined_call_operand.vmem [shape: f32[4,512], index: 0, kind: input, shape index: {}]
  %s1 = inlined_call_operand.vmem [shape: f32[4,512], index: 1, kind: input, shape index: {}]
  %s2 = inlined_call_operand.vmem [shape: f32[4,128], index: 2, kind: input, shape index: {}]
  %s3 = inlined_call_operand.vmem [shape: f32[8,4], index: 3, kind: input, shape index: {}]
  %s4 = inlined_call_operand.vmem [shape: f32[8,512], index: 4, kind: input, shape index: {}]
  %s5 = inlined_call_operand.vmem [shape: f32[8,512], index: 5, kind: output, shape index: {0}]
  %s6 = inlined_call_operand.vmem [shape: f32[8,128], index: 6, kind: output, shape index: {1}]
  %7 = xla_tuple %s5, %s6
  %s8 = sld [smem:[#allocation0]]
  $region38: #{ffc_forward.5} parent=0
    _
  %s10 = ssub.s32 1, %s8
  %s11 = scalar_select 0, %s10, %s8
  // Predicated region
  $region2: #{ffc_forward.5} parent=0 // pred_check
    _
  $region3: #{ffc_forward.5} parent=0 // pred_check_branch
    %13 = sbr.rel (0) target = $region5
  $region4: #{ffc_forward.5} parent=0 // pred_region
    _
  $region5: #{ffc_forward.5} parent=0 // pred_fallthru
    _
  // Predicated region
  $region6: #{ffc_forward.5} parent=0 // pred_check
    _
  $region7: #{ffc_forward.5} parent=0 // pred_check_branch
    %15 = sbr.rel (0) target = $region9
  $region8: #{ffc_forward.5} parent=0 // pred_region
    _
  $region9: #{ffc_forward.5} parent=0 // pred_fallthru
    _
  // Predicated region
  $region10: #{ffc_forward.5} parent=0 // pred_check
    _
  $region11: #{ffc_forward.5} parent=0 // pred_check_branch
    %17 = sbr.rel (0) target = $region13
  $region12: #{ffc_forward.5} parent=0 // pred_region
    _
  $region13: #{ffc_forward.5} parent=0 // pred_fallthru
    _
  // Predicated region
  $region14: #{ffc_forward.5} parent=0 // pred_check
    _
  $region15: #{ffc_forward.5} parent=0 // pred_check_branch
    %19 = sbr.rel (0) target = $region17
  $region16: #{ffc_forward.5} parent=0 // pred_region
    _
  $region17: #{ffc_forward.5} parent=0 // pred_fallthru
    _
  // Predicated region
  $region18: #{ffc_forward.5} parent=0 // pred_check
    _
  $region19: #{ffc_forward.5} parent=0 // pred_check_branch
    %21 = sbr.rel (0) target = $region21
  $region20: #{ffc_forward.5} parent=0 // pred_region
    _
  $region21: #{ffc_forward.5} parent=0 // pred_fallthru
    _
  %v22 = vld [vmem:[%s0] sm:$0xff]
  %v23 = vld [vmem:[%s0 + $0x8] sm:$0xff]
  %v24 = vld [vmem:[%s1] sm:$0xff]
  %v25 = vld [vmem:[%s1 + $0x8] sm:$0xff]
  %v26 = vadd.f32 %v22, %v24
  %v27 = vadd.f32 %v23, %v25
  %v28 = vld [vmem:[%s3] sm:$0xff]
  %v29 = vld [vmem:[%s4] sm:$0xff]
  %v30 = vld [vmem:[%s4 + $0x8] sm:$0xff]
  %v31 = vld [vmem:[%s4 + $0x10] sm:$0xff]
  %v32 = vld [vmem:[%s4 + $0x18] sm:$0xff]
  %35 = vst [vmem:[#allocation1] ss:$2 sm:$0xff] %v26
  %s36 = scalar_lea.vmem [#allocation1], 16
  %37 = vst [vmem:[%s36] ss:$2 sm:$0xff] %v27
  %v38 = vld.sshfl [vmem:[#allocation1] sm:$0xff pattern:$0x75316420]
  %v39 = vld.sshfl [vmem:[#allocation1 + $0x8] sm:$0xff pattern:$0x75316420]
  %v40 = vld.sshfl [vmem:[#allocation1 + $0x10] sm:$0xff pattern:$0x75316420]
  %v41 = vld.sshfl [vmem:[#allocation1 + $0x18] sm:$0xff pattern:$0x75316420]
  %vm42 = vcmask 31744
  %v44 = vsel %vm42, %v28, 0
  %vm46 = vcmask 1043456
  %v47 = vsel %vm46, %v38, 0
  %v49 = vsel %vm46, %v39, 0
  %v51 = vsel %vm46, %v40, 0
  %v53 = vsel %vm46, %v41, 0
  %55 = vmatpush.msra.mxu0 0.0
  %56 = vmatpush.msra.mxu0 0.0
  %57 = vmatpush.msra.mxu0 0.0
  %58 = vmatpush.msra.mxu0 0.0
  %59 = vmatpush.msra.mxu0 0.0
  %60 = vmatpush.msra.mxu0 0.0
  %61 = vmatpush.msra.mxu0 0.0
  %62 = vmatpush.msra.mxu0 0.0
  %63 = vmatpush.msra.mxu0 0.0
  %64 = vmatpush.msra.mxu0 0.0
  %65 = vmatpush.msra.mxu0 0.0
  %66 = vmatpush.msra.mxu0 0.0
  %67 = vmatpush.msra.mxu0 0.0
  %68 = vmatpush.msra.mxu0 0.0
  %69 = vmatpush.msra.mxu0 0.0
  %70 = vmatpush.msra.mxu0 %v47
  %71 = vmatmul.f32.gmra.mxu0 %v44
  %v72 = vpop.f32.mrf.mxu0
  %v73 = vadd.f32 %v29, %v72
  %74 = vdwg.mxu0
  %75 = vmatpush.msra.mxu0 0.0
  %76 = vmatpush.msra.mxu0 0.0
  %77 = vmatpush.msra.mxu0 0.0
  %78 = vmatpush.msra.mxu0 0.0
  %79 = vmatpush.msra.mxu0 0.0
  %80 = vmatpush.msra.mxu0 0.0
  %81 = vmatpush.msra.mxu0 0.0
  %82 = vmatpush.msra.mxu0 0.0
  %83 = vmatpush.msra.mxu0 0.0
  %84 = vmatpush.msra.mxu0 0.0
  %85 = vmatpush.msra.mxu0 0.0
  %86 = vmatpush.msra.mxu0 0.0
  %87 = vmatpush.msra.mxu0 0.0
  %88 = vmatpush.msra.mxu0 0.0
  %89 = vmatpush.msra.mxu0 0.0
  %90 = vmatpush.msra.mxu0 %v49
  %91 = vmatmul.f32.gmra.mxu0 %v44
  %v92 = vpop.f32.mrf.mxu0
  %v93 = vadd.f32 %v30, %v92
  %94 = vdwg.mxu0
  %95 = vmatpush.msra.mxu0 0.0
  %96 = vmatpush.msra.mxu0 0.0
  %97 = vmatpush.msra.mxu0 0.0
  %98 = vmatpush.msra.mxu0 0.0
  %99 = vmatpush.msra.mxu0 0.0
  %100 = vmatpush.msra.mxu0 0.0
  %101 = vmatpush.msra.mxu0 0.0
  %102 = vmatpush.msra.mxu0 0.0
  %103 = vmatpush.msra.mxu0 0.0
  %104 = vmatpush.msra.mxu0 0.0
  %105 = vmatpush.msra.mxu0 0.0
  %106 = vmatpush.msra.mxu0 0.0
  %107 = vmatpush.msra.mxu0 0.0
  %108 = vmatpush.msra.mxu0 0.0
  %109 = vmatpush.msra.mxu0 0.0
  %110 = vmatpush.msra.mxu0 %v51
  %111 = vmatmul.f32.gmra.mxu0 %v44
  %v112 = vpop.f32.mrf.mxu0
  %v113 = vadd.f32 %v31, %v112
  %114 = vdwg.mxu0
  %115 = vmatpush.msra.mxu0 0.0
  %116 = vmatpush.msra.mxu0 0.0
  %117 = vmatpush.msra.mxu0 0.0
  %118 = vmatpush.msra.mxu0 0.0
  %119 = vmatpush.msra.mxu0 0.0
  %120 = vmatpush.msra.mxu0 0.0
  %121 = vmatpush.msra.mxu0 0.0
  %122 = vmatpush.msra.mxu0 0.0
  %123 = vmatpush.msra.mxu0 0.0
  %124 = vmatpush.msra.mxu0 0.0
  %125 = vmatpush.msra.mxu0 0.0
  %126 = vmatpush.msra.mxu0 0.0
  %127 = vmatpush.msra.mxu0 0.0
  %128 = vmatpush.msra.mxu0 0.0
  %129 = vmatpush.msra.mxu0 0.0
  %130 = vmatpush.msra.mxu0 %v53
  %131 = vmatmul.f32.gmra.mxu0 %v44
  %v132 = vpop.f32.mrf.mxu0
  %v133 = vadd.f32 %v32, %v132
  %134 = vdwg.mxu0
  %135 = vst [vmem:[%s5] sm:$0xff] %v73
  %136 = vst [vmem:[%s5 + $0x8] sm:$0xff] %v93
  %137 = vst [vmem:[%s5 + $0x10] sm:$0xff] %v113
  %138 = vst [vmem:[%s5 + $0x18] sm:$0xff] %v133
  %v139 = vld [vmem:[%s3] sm:$0xff]
  %v140 = vld [vmem:[%s2] sm:$0xf]
  %v142 = vsel %vm42, %v139, 0
  %v145 = vsel %vm46, %v140, 0
  %147 = vmatpush.msra.mxu0 0.0
  %148 = vmatpush.msra.mxu0 0.0
  %149 = vmatpush.msra.mxu0 0.0
  %150 = vmatpush.msra.mxu0 0.0
  %151 = vmatpush.msra.mxu0 0.0
  %152 = vmatpush.msra.mxu0 0.0
  %153 = vmatpush.msra.mxu0 0.0
  %154 = vmatpush.msra.mxu0 0.0
  %155 = vmatpush.msra.mxu0 0.0
  %156 = vmatpush.msra.mxu0 0.0
  %157 = vmatpush.msra.mxu0 0.0
  %158 = vmatpush.msra.mxu0 0.0
  %159 = vmatpush.msra.mxu0 0.0
  %160 = vmatpush.msra.mxu0 0.0
  %161 = vmatpush.msra.mxu0 0.0
  %162 = vmatpush.msra.mxu0 %v145
  %163 = vmatmul.f32.gmra.mxu0 %v142
  %v164 = vpop.f32.mrf.mxu0
  %v165 = vadd.f32 0.0, %v164
  %166 = vdwg.mxu0
  %167 = vst [vmem:[%s6] sm:$0xff] %v165
  // Predicated region
  $region22: #{ffc_forward.5} parent=0 // pred_check
    _
  $region23: #{ffc_forward.5} parent=0 // pred_check_branch
    %169 = sbr.rel (0) target = $region25
  $region24: #{ffc_forward.5} parent=0 // pred_region
    _
  $region25: #{ffc_forward.5} parent=0 // pred_fallthru
    _
  // Predicated region
  $region26: #{ffc_forward.5} parent=0 // pred_check
    _
  $region27: #{ffc_forward.5} parent=0 // pred_check_branch
    %171 = sbr.rel (0) target = $region29
  $region28: #{ffc_forward.5} parent=0 // pred_region
    _
  $region29: #{ffc_forward.5} parent=0 // pred_fallthru
    _
  // Predicated region
  $region30: #{ffc_forward.5} parent=0 // pred_check
    _
  $region31: #{ffc_forward.5} parent=0 // pred_check_branch
    %173 = sbr.rel (0) target = $region33
  $region32: #{ffc_forward.5} parent=0 // pred_region
    _
  $region33: #{ffc_forward.5} parent=0 // pred_fallthru
    _
  // Predicated region
  $region34: #{ffc_forward.5} parent=0 // pred_check
    _
  $region35: #{ffc_forward.5} parent=0 // pred_check_branch
    %175 = sbr.rel (0) target = $region37
  $region36: #{ffc_forward.5} parent=0 // pred_region
    _
  $region37: #{ffc_forward.5} parent=0 // pred_fallthru
    _

</llo_original>
